<compile_context>
chip_gen: v7x
topology: tpu7x:2x2x1
jax: 0.10.0
libtpu: 0.0.40
codegen_flags: <defaults>
</compile_context>

<pallas_src>
import jax
import jax.numpy as jnp
from jax.experimental import pallas as pl
from jax.experimental.pallas import tpu as pltpu

IN_DIM, H1, H2, OUT_DIM = 28 * 28, 500, 256, 10

# f32 bytes streamed through VMEM per batch row (x in + 6 activation streams out)
_PER_ROW_STREAM_BYTES = 4 * (IN_DIM + 2 * H1 + 2 * H2 + 2 * OUT_DIM)
# f32 bytes of the VMEM-resident weights/biases
_WEIGHT_BYTES = 4 * (IN_DIM * H1 + H1 + H1 * H2 + H2 + H2 * OUT_DIM + OUT_DIM)


def mlp_kernel(x_ref, w1_ref, b1_ref, w2_ref, b2_ref, w3_ref, b3_ref,
               t1_ref, t2_ref, t3_ref, t4_ref, t5_ref, t6_ref):
    x = x_ref[...]

    # fc1 + tanh
    t1 = jnp.dot(x, w1_ref[...], preferred_element_type=jnp.float32) + b1_ref[...]
    t2 = jnp.tanh(t1)

    # fc2 + tanh
    t3 = jnp.dot(t2, w2_ref[...], preferred_element_type=jnp.float32) + b2_ref[...]
    t4 = jnp.tanh(t3)

    # fc3 + softmax (over last axis, numerically stabilized)
    t5 = jnp.dot(t4, w3_ref[...], preferred_element_type=jnp.float32) + b3_ref[...]
    m = jnp.max(t5, axis=-1, keepdims=True)
    e = jnp.exp(t5 - m)
    denom = jnp.sum(e, axis=-1, keepdims=True)
    inv = pl.reciprocal(denom, approx=True)     # EUP vrcp (free slot)
    inv = inv * (2.0 - denom * inv)             # one Newton step -> f32 accuracy
    t6 = e * inv

    t1_ref[...] = t1
    t2_ref[...] = t2
    t3_ref[...] = t3
    t4_ref[...] = t4
    t5_ref[...] = t5
    t6_ref[...] = t6


def _round_up(n, m):
    return (n + m - 1) // m * m


def mlp_tanh_parsing(x, w1, b1, w2, b2, w3, b3, *, block_b=1024):
    """x: (B, 784) float32. Returns (t1, t2, t3, t4, t5, t6)."""
    B = x.shape[0]

    # ---- batch-tile selection ------------------------------------------
    #  * multiple of 8 (sublane), capped at 2048 (VMEM budget)
    #  * >= 2 grid steps when the batch allows it (v7x: both TensorCores work)
    #  * tile need not divide B: boundary block is masked by Pallas, so no
    #    pre-pad copy of x and no post-slice of the outputs is needed.
    tb_cap = max(8, min(int(block_b), 2048))
    num_tiles = pl.cdiv(B, tb_cap)
    if num_tiles < 2 and B >= 16:
        num_tiles = 2
    tb = _round_up(pl.cdiv(B, num_tiles), 8)
    grid = (pl.cdiv(B, tb),)

    # ---- VMEM budget: scale with the tile, don't hard-code --------------
    # double-buffered streamed blocks + (worst case) double-buffered weights
    # + 4 MiB headroom; clamp to [16 MiB, 64 MiB] (v7x physical VMEM = 64 MiB).
    vmem_limit = 2 * tb * _PER_ROW_STREAM_BYTES + 2 * _WEIGHT_BYTES + (4 << 20)
    vmem_limit = min(max(vmem_limit, 16 << 20), 64 << 20)

    out_shape = (
        jax.ShapeDtypeStruct((B, H1), jnp.float32),       # t1
        jax.ShapeDtypeStruct((B, H1), jnp.float32),       # t2
        jax.ShapeDtypeStruct((B, H2), jnp.float32),       # t3
        jax.ShapeDtypeStruct((B, H2), jnp.float32),       # t4
        jax.ShapeDtypeStruct((B, OUT_DIM), jnp.float32),  # t5
        jax.ShapeDtypeStruct((B, OUT_DIM), jnp.float32),  # t6
    )

    def batch_spec(feat):
        # tiled along batch; streamed (double-buffered) across grid steps
        return pl.BlockSpec((tb, feat), lambda i: (i, 0))

    def const_spec(shape, single_buffer):
        # full-array block with a constant index_map: fetched once, VMEM-resident
        idx_map = lambda i: tuple(0 for _ in shape)
        if single_buffer:
            # block never changes across grid steps -> one buffer suffices
            return pl.BlockSpec(shape, idx_map, pipeline_mode=pl.Buffered(1))
        return pl.BlockSpec(shape, idx_map)

    def make_call(single_buffer_weights):
        return pl.pallas_call(
            mlp_kernel,
            out_shape=out_shape,
            grid_spec=pl.GridSpec(
                grid=grid,
                in_specs=[
                    batch_spec(IN_DIM),
                    const_spec(w1.shape, single_buffer_weights),
                    const_spec(b1.shape, single_buffer_weights),
                    const_spec(w2.shape, single_buffer_weights),
                    const_spec(b2.shape, single_buffer_weights),
                    const_spec(w3.shape, single_buffer_weights),
                    const_spec(b3.shape, single_buffer_weights),
                ],
                out_specs=[
                    batch_spec(H1), batch_spec(H1),
                    batch_spec(H2), batch_spec(H2),
                    batch_spec(OUT_DIM), batch_spec(OUT_DIM),
                ],
            ),
            compiler_params=pltpu.CompilerParams(
                dimension_semantics=("parallel",),  # v7x: shard batch tiles over 2 TCs
                vmem_limit_bytes=vmem_limit,
            ),
        )

    try:
        outs = make_call(single_buffer_weights=True)(x, w1, b1, w2, b2, w3, b3)
    except Exception:
        # pipeline_mode=pl.Buffered(1) not accepted by this build -> default
        # double buffering (correct, just ~2 MiB more VMEM for the weights).
        outs = make_call(single_buffer_weights=False)(x, w1, b1, w2, b2, w3, b3)
    return outs


def init_params(key):
    """Deterministic init matching PyTorch Linear shapes (stored transposed)."""
    ks = jax.random.split(key, 6)

    def linear(kw, kb, fan_in, fan_out):
        bound = 1.0 / jnp.sqrt(fan_in)
        w = jax.random.uniform(kw, (fan_in, fan_out), jnp.float32, -bound, bound)
        b = jax.random.uniform(kb, (1, fan_out), jnp.float32, -bound, bound)
        return w, b

    w1, b1 = linear(ks[0], ks[1], IN_DIM, H1)
    w2, b2 = linear(ks[2], ks[3], H1, H2)
    w3, b3 = linear(ks[4], ks[5], H2, OUT_DIM)
    return w1, b1, w2, b2, w3, b3


if __name__ == "__main__":
    key = jax.random.PRNGKey(0)
    k_x, k_p = jax.random.split(key)

    # B=28 is deliberately NOT a multiple of the batch tile: exercises the
    # masked boundary block (no pre-pad / post-slice), the >=2-grid-step
    # split, and the VMEM-resident weights across multiple grid steps.
    B = 28
    x = jax.random.normal(k_x, (B, IN_DIM), jnp.float32)
    params = init_params(k_p)
    w1, b1, w2, b2, w3, b3 = params

    # reference in plain JAX
    r1 = x @ w1 + b1
    r2 = jnp.tanh(r1)
    r3 = r2 @ w2 + b2
    r4 = jnp.tanh(r3)
    r5 = r4 @ w3 + b3
    r6 = jax.nn.softmax(r5, axis=-1)
    refs = (r1, r2, r3, r4, r5, r6)

    # default tile (auto-split into >=2 grid steps) and a tiny explicit tile
    # (4 grid steps, partial last block).
    for blk in (1024, 8):
        outs = mlp_tanh_parsing(x, *params, block_b=blk)
        outs = jax.block_until_ready(outs)
        for o, r in zip(outs, refs):
            assert o.shape == r.shape and o.dtype == r.dtype
            assert jnp.max(jnp.abs(o - r)) < 1e-4

    print("KERNEL_OK")
</pallas_src>

<mosaic_0001>
module attributes {stable_mosaic.version = 11 : i64} {
  func.func @mlp_kernel(%arg0: i32, %arg1: memref<16x784xf32, #tpu.memory_space<vmem>>, %arg2: memref<784x500xf32, #tpu.memory_space<vmem>>, %arg3: memref<1x500xf32, #tpu.memory_space<vmem>>, %arg4: memref<500x256xf32, #tpu.memory_space<vmem>>, %arg5: memref<1x256xf32, #tpu.memory_space<vmem>>, %arg6: memref<256x10xf32, #tpu.memory_space<vmem>>, %arg7: memref<1x10xf32, #tpu.memory_space<vmem>>, %arg8: memref<16x500xf32, #tpu.memory_space<vmem>>, %arg9: memref<16x500xf32, #tpu.memory_space<vmem>>, %arg10: memref<16x256xf32, #tpu.memory_space<vmem>>, %arg11: memref<16x256xf32, #tpu.memory_space<vmem>>, %arg12: memref<16x10xf32, #tpu.memory_space<vmem>>, %arg13: memref<16x10xf32, #tpu.memory_space<vmem>>) attributes {dimension_semantics = [#tpu.dimension_semantics<parallel>], iteration_bounds = array<i64: 2>, scalar_prefetch = 0 : i64, scratch_operands = 0 : i64, tpu.core_type = #tpu.core_type<tc>, window_params = [{transform_indices = @transform_0, window_bounds = array<i64: 16, 784>}, {pipeline_mode = #tpu.pipeline_mode<synchronous>, transform_indices = @transform_1, window_bounds = array<i64: 784, 500>}, {pipeline_mode = #tpu.pipeline_mode<synchronous>, transform_indices = @transform_2, window_bounds = array<i64: 1, 500>}, {pipeline_mode = #tpu.pipeline_mode<synchronous>, transform_indices = @transform_3, window_bounds = array<i64: 500, 256>}, {pipeline_mode = #tpu.pipeline_mode<synchronous>, transform_indices = @transform_4, window_bounds = array<i64: 1, 256>}, {pipeline_mode = #tpu.pipeline_mode<synchronous>, transform_indices = @transform_5, window_bounds = array<i64: 256, 10>}, {pipeline_mode = #tpu.pipeline_mode<synchronous>, transform_indices = @transform_6, window_bounds = array<i64: 1, 10>}, {transform_indices = @transform_7, window_bounds = array<i64: 16, 500>}, {transform_indices = @transform_8, window_bounds = array<i64: 16, 500>}, {transform_indices = @transform_9, window_bounds = array<i64: 16, 256>}, {transform_indices = @transform_10, window_bounds = array<i64: 16, 256>}, {transform_indices = @transform_11, window_bounds = array<i64: 16, 10>}, {transform_indices = @transform_12, window_bounds = array<i64: 16, 10>}]} {
    %c0 = arith.constant 0 : index
    %c0_0 = arith.constant 0 : index
    %0 = vector.load %arg1[%c0, %c0_0] : memref<16x784xf32, #tpu.memory_space<vmem>>, vector<16x784xf32>
    %c0_1 = arith.constant 0 : index
    %c0_2 = arith.constant 0 : index
    %1 = vector.load %arg2[%c0_1, %c0_2] : memref<784x500xf32, #tpu.memory_space<vmem>>, vector<784x500xf32>
    %cst = arith.constant dense<0.000000e+00> : vector<16x500xf32>
    %2 = tpu.matmul %0, %1, %cst {dimension_numbers = #tpu.dot_dimension_numbers<[1], [0], [0], [1], [0, 0, 1, 1], [], []>} : vector<16x784xf32>, vector<784x500xf32>, vector<16x500xf32> -> vector<16x500xf32>
    %c0_3 = arith.constant 0 : index
    %c0_4 = arith.constant 0 : index
    %3 = vector.load %arg3[%c0_3, %c0_4] : memref<1x500xf32, #tpu.memory_space<vmem>>, vector<1x500xf32>
    %4 = vector.broadcast %3 : vector<1x500xf32> to vector<16x500xf32>
    %5 = arith.addf %2, %4 : vector<16x500xf32>
    %6 = math.tanh %5 : vector<16x500xf32>
    %c0_5 = arith.constant 0 : index
    %c0_6 = arith.constant 0 : index
    %7 = vector.load %arg4[%c0_5, %c0_6] : memref<500x256xf32, #tpu.memory_space<vmem>>, vector<500x256xf32>
    %cst_7 = arith.constant dense<0.000000e+00> : vector<16x256xf32>
    %8 = tpu.matmul %6, %7, %cst_7 {dimension_numbers = #tpu.dot_dimension_numbers<[1], [0], [0], [1], [0, 0, 1, 1], [], []>} : vector<16x500xf32>, vector<500x256xf32>, vector<16x256xf32> -> vector<16x256xf32>
    %c0_8 = arith.constant 0 : index
    %c0_9 = arith.constant 0 : index
    %9 = vector.load %arg5[%c0_8, %c0_9] : memref<1x256xf32, #tpu.memory_space<vmem>>, vector<1x256xf32>
    %10 = vector.broadcast %9 : vector<1x256xf32> to vector<16x256xf32>
    %11 = arith.addf %8, %10 : vector<16x256xf32>
    %12 = math.tanh %11 : vector<16x256xf32>
    %c0_10 = arith.constant 0 : index
    %c0_11 = arith.constant 0 : index
    %13 = vector.load %arg6[%c0_10, %c0_11] : memref<256x10xf32, #tpu.memory_space<vmem>>, vector<256x10xf32>
    %cst_12 = arith.constant dense<0.000000e+00> : vector<16x10xf32>
    %14 = tpu.matmul %12, %13, %cst_12 {dimension_numbers = #tpu.dot_dimension_numbers<[1], [0], [0], [1], [0, 0, 1, 1], [], []>} : vector<16x256xf32>, vector<256x10xf32>, vector<16x10xf32> -> vector<16x10xf32>
    %c0_13 = arith.constant 0 : index
    %c0_14 = arith.constant 0 : index
    %15 = vector.load %arg7[%c0_13, %c0_14] : memref<1x10xf32, #tpu.memory_space<vmem>>, vector<1x10xf32>
    %16 = vector.broadcast %15 : vector<1x10xf32> to vector<16x10xf32>
    %17 = arith.addf %14, %16 : vector<16x10xf32>
    %cst_15 = arith.constant dense<0xFF800000> : vector<16xf32>
    %18 = vector.multi_reduction <maximumf>, %17, %cst_15 [1] : vector<16x10xf32> to vector<16xf32>
    %19 = vector.shape_cast %18 : vector<16xf32> to vector<16x1xf32>
    %20 = vector.broadcast %19 : vector<16x1xf32> to vector<16x10xf32>
    %21 = arith.subf %17, %20 : vector<16x10xf32>
    %22 = math.exp %21 : vector<16x10xf32>
    %cst_16 = arith.constant dense<0.000000e+00> : vector<16xf32>
    %23 = vector.multi_reduction <add>, %22, %cst_16 [1] : vector<16x10xf32> to vector<16xf32>
    %24 = vector.shape_cast %23 : vector<16xf32> to vector<16x1xf32>
    %25 = tpu.reciprocal %24 {approx = true} : vector<16x1xf32> -> vector<16x1xf32>
    %26 = arith.mulf %24, %25 : vector<16x1xf32>
    %cst_17 = arith.constant 2.000000e+00 : f32
    %27 = vector.broadcast %cst_17 : f32 to vector<16x1xf32>
    %28 = arith.subf %27, %26 : vector<16x1xf32>
    %29 = arith.mulf %25, %28 : vector<16x1xf32>
    %30 = vector.broadcast %29 : vector<16x1xf32> to vector<16x10xf32>
    %31 = arith.mulf %22, %30 : vector<16x10xf32>
    %c0_18 = arith.constant 0 : index
    %c0_19 = arith.constant 0 : index
    %32 = vector.load %arg8[%c0_18, %c0_19] : memref<16x500xf32, #tpu.memory_space<vmem>>, vector<16x500xf32>
    tpu.vector_store %arg8[%c0_18, %c0_19], %5 {strides = array<i32>} : memref<16x500xf32, #tpu.memory_space<vmem>>, vector<16x500xf32>,
    %c0_20 = arith.constant 0 : index
    %c0_21 = arith.constant 0 : index
    %33 = vector.load %arg9[%c0_20, %c0_21] : memref<16x500xf32, #tpu.memory_space<vmem>>, vector<16x500xf32>
    tpu.vector_store %arg9[%c0_20, %c0_21], %6 {strides = array<i32>} : memref<16x500xf32, #tpu.memory_space<vmem>>, vector<16x500xf32>,
    %c0_22 = arith.constant 0 : index
    %c0_23 = arith.constant 0 : index
    %34 = vector.load %arg10[%c0_22, %c0_23] : memref<16x256xf32, #tpu.memory_space<vmem>>, vector<16x256xf32>
    tpu.vector_store %arg10[%c0_22, %c0_23], %11 {strides = array<i32>} : memref<16x256xf32, #tpu.memory_space<vmem>>, vector<16x256xf32>,
    %c0_24 = arith.constant 0 : index
    %c0_25 = arith.constant 0 : index
    %35 = vector.load %arg11[%c0_24, %c0_25] : memref<16x256xf32, #tpu.memory_space<vmem>>, vector<16x256xf32>
    tpu.vector_store %arg11[%c0_24, %c0_25], %12 {strides = array<i32>} : memref<16x256xf32, #tpu.memory_space<vmem>>, vector<16x256xf32>,
    %c0_26 = arith.constant 0 : index
    %c0_27 = arith.constant 0 : index
    %36 = vector.load %arg12[%c0_26, %c0_27] : memref<16x10xf32, #tpu.memory_space<vmem>>, vector<16x10xf32>
    tpu.vector_store %arg12[%c0_26, %c0_27], %17 {strides = array<i32>} : memref<16x10xf32, #tpu.memory_space<vmem>>, vector<16x10xf32>,
    %c0_28 = arith.constant 0 : index
    %c0_29 = arith.constant 0 : index
    %37 = vector.load %arg13[%c0_28, %c0_29] : memref<16x10xf32, #tpu.memory_space<vmem>>, vector<16x10xf32>
    tpu.vector_store %arg13[%c0_28, %c0_29], %31 {strides = array<i32>} : memref<16x10xf32, #tpu.memory_space<vmem>>, vector<16x10xf32>,
    return
  }
  func.func @transform_0(%arg0: i32) -> (i32, i32) {
    %c0_i32 = arith.constant 0 : i32
    %c0_i32_0 = arith.constant 0 : i32
    return %arg0, %c0_i32 : i32, i32
  }
  func.func @transform_1(%arg0: i32) -> (i32, i32) {
    %c0_i32 = arith.constant 0 : i32
    %c0_i32_0 = arith.constant 0 : i32
    %c0_i32_1 = arith.constant 0 : i32
    return %c0_i32, %c0_i32_0 : i32, i32
  }
  func.func @transform_2(%arg0: i32) -> (i32, i32) {
    %c0_i32 = arith.constant 0 : i32
    %c0_i32_0 = arith.constant 0 : i32
    %c0_i32_1 = arith.constant 0 : i32
    return %c0_i32, %c0_i32_0 : i32, i32
  }
  func.func @transform_3(%arg0: i32) -> (i32, i32) {
    %c0_i32 = arith.constant 0 : i32
    %c0_i32_0 = arith.constant 0 : i32
    %c0_i32_1 = arith.constant 0 : i32
    return %c0_i32, %c0_i32_0 : i32, i32
  }
  func.func @transform_4(%arg0: i32) -> (i32, i32) {
    %c0_i32 = arith.constant 0 : i32
    %c0_i32_0 = arith.constant 0 : i32
    %c0_i32_1 = arith.constant 0 : i32
    return %c0_i32, %c0_i32_0 : i32, i32
  }
  func.func @transform_5(%arg0: i32) -> (i32, i32) {
    %c0_i32 = arith.constant 0 : i32
    %c0_i32_0 = arith.constant 0 : i32
    %c0_i32_1 = arith.constant 0 : i32
    return %c0_i32, %c0_i32_0 : i32, i32
  }
  func.func @transform_6(%arg0: i32) -> (i32, i32) {
    %c0_i32 = arith.constant 0 : i32
    %c0_i32_0 = arith.constant 0 : i32
    %c0_i32_1 = arith.constant 0 : i32
    return %c0_i32, %c0_i32_0 : i32, i32
  }
  func.func @transform_7(%arg0: i32) -> (i32, i32) {
    %c0_i32 = arith.constant 0 : i32
    %c0_i32_0 = arith.constant 0 : i32
    return %arg0, %c0_i32 : i32, i32
  }
  func.func @transform_8(%arg0: i32) -> (i32, i32) {
    %c0_i32 = arith.constant 0 : i32
    %c0_i32_0 = arith.constant 0 : i32
    return %arg0, %c0_i32 : i32, i32
  }
  func.func @transform_9(%arg0: i32) -> (i32, i32) {
    %c0_i32 = arith.constant 0 : i32
    %c0_i32_0 = arith.constant 0 : i32
    return %arg0, %c0_i32 : i32, i32
  }
  func.func @transform_10(%arg0: i32) -> (i32, i32) {
    %c0_i32 = arith.constant 0 : i32
    %c0_i32_0 = arith.constant 0 : i32
    return %arg0, %c0_i32 : i32, i32
  }
  func.func @transform_11(%arg0: i32) -> (i32, i32) {
    %c0_i32 = arith.constant 0 : i32
    %c0_i32_0 = arith.constant 0 : i32
    return %arg0, %c0_i32 : i32, i32
  }
  func.func @transform_12(%arg0: i32) -> (i32, i32) {
    %c0_i32 = arith.constant 0 : i32
    %c0_i32_0 = arith.constant 0 : i32
    return %arg0, %c0_i32 : i32, i32
  }
}

module attributes {stable_mosaic.version = 11 : i64} {
  func.func @mlp_kernel(%arg0: i32, %arg1: memref<16x784xf32, #tpu.memory_space<vmem>>, %arg2: memref<784x500xf32, #tpu.memory_space<vmem>>, %arg3: memref<1x500xf32, #tpu.memory_space<vmem>>, %arg4: memref<500x256xf32, #tpu.memory_space<vmem>>, %arg5: memref<1x256xf32, #tpu.memory_space<vmem>>, %arg6: memref<256x10xf32, #tpu.memory_space<vmem>>, %arg7: memref<1x10xf32, #tpu.memory_space<vmem>>, %arg8: memref<16x500xf32, #tpu.memory_space<vmem>>, %arg9: memref<16x500xf32, #tpu.memory_space<vmem>>, %arg10: memref<16x256xf32, #tpu.memory_space<vmem>>, %arg11: memref<16x256xf32, #tpu.memory_space<vmem>>, %arg12: memref<16x10xf32, #tpu.memory_space<vmem>>, %arg13: memref<16x10xf32, #tpu.memory_space<vmem>>) attributes {dimension_semantics = [#tpu.dimension_semantics<parallel>], iteration_bounds = array<i64: 2>, scalar_prefetch = 0 : i64, scratch_operands = 0 : i64, tpu.core_type = #tpu.core_type<tc>, window_params = [{transform_indices = @transform_0, window_bounds = array<i64: 16, 784>}, {pipeline_mode = #tpu.pipeline_mode<synchronous>, transform_indices = @transform_1, window_bounds = array<i64: 784, 500>}, {pipeline_mode = #tpu.pipeline_mode<synchronous>, transform_indices = @transform_2, window_bounds = array<i64: 1, 500>}, {pipeline_mode = #tpu.pipeline_mode<synchronous>, transform_indices = @transform_3, window_bounds = array<i64: 500, 256>}, {pipeline_mode = #tpu.pipeline_mode<synchronous>, transform_indices = @transform_4, window_bounds = array<i64: 1, 256>}, {pipeline_mode = #tpu.pipeline_mode<synchronous>, transform_indices = @transform_5, window_bounds = array<i64: 256, 10>}, {pipeline_mode = #tpu.pipeline_mode<synchronous>, transform_indices = @transform_6, window_bounds = array<i64: 1, 10>}, {transform_indices = @transform_7, window_bounds = array<i64: 16, 500>}, {transform_indices = @transform_8, window_bounds = array<i64: 16, 500>}, {transform_indices = @transform_9, window_bounds = array<i64: 16, 256>}, {transform_indices = @transform_10, window_bounds = array<i64: 16, 256>}, {transform_indices = @transform_11, window_bounds = array<i64: 16, 10>}, {transform_indices = @transform_12, window_bounds = array<i64: 16, 10>}]} {
    %c0 = arith.constant 0 : index
    %c0_0 = arith.constant 0 : index
    %0 = vector.load %arg1[%c0, %c0_0] : memref<16x784xf32, #tpu.memory_space<vmem>>, vector<16x784xf32>
    %c0_1 = arith.constant 0 : index
    %c0_2 = arith.constant 0 : index
    %1 = vector.load %arg2[%c0_1, %c0_2] : memref<784x500xf32, #tpu.memory_space<vmem>>, vector<784x500xf32>
    %cst = arith.constant dense<0.000000e+00> : vector<16x500xf32>
    %2 = tpu.matmul %0, %1, %cst {dimension_numbers = #tpu.dot_dimension_numbers<[1], [0], [0], [1], [0, 0, 1, 1], [], []>} : vector<16x784xf32>, vector<784x500xf32>, vector<16x500xf32> -> vector<16x500xf32>
    %c0_3 = arith.constant 0 : index
    %c0_4 = arith.constant 0 : index
    %3 = vector.load %arg3[%c0_3, %c0_4] : memref<1x500xf32, #tpu.memory_space<vmem>>, vector<1x500xf32>
    %4 = vector.broadcast %3 : vector<1x500xf32> to vector<16x500xf32>
    %5 = arith.addf %2, %4 : vector<16x500xf32>
    %6 = math.tanh %5 : vector<16x500xf32>
    %c0_5 = arith.constant 0 : index
    %c0_6 = arith.constant 0 : index
    %7 = vector.load %arg4[%c0_5, %c0_6] : memref<500x256xf32, #tpu.memory_space<vmem>>, vector<500x256xf32>
    %cst_7 = arith.constant dense<0.000000e+00> : vector<16x256xf32>
    %8 = tpu.matmul %6, %7, %cst_7 {dimension_numbers = #tpu.dot_dimension_numbers<[1], [0], [0], [1], [0, 0, 1, 1], [], []>} : vector<16x500xf32>, vector<500x256xf32>, vector<16x256xf32> -> vector<16x256xf32>
    %c0_8 = arith.constant 0 : index
    %c0_9 = arith.constant 0 : index
    %9 = vector.load %arg5[%c0_8, %c0_9] : memref<1x256xf32, #tpu.memory_space<vmem>>, vector<1x256xf32>
    %10 = vector.broadcast %9 : vector<1x256xf32> to vector<16x256xf32>
    %11 = arith.addf %8, %10 : vector<16x256xf32>
    %12 = math.tanh %11 : vector<16x256xf32>
    %c0_10 = arith.constant 0 : index
    %c0_11 = arith.constant 0 : index
    %13 = vector.load %arg6[%c0_10, %c0_11] : memref<256x10xf32, #tpu.memory_space<vmem>>, vector<256x10xf32>
    %cst_12 = arith.constant dense<0.000000e+00> : vector<16x10xf32>
    %14 = tpu.matmul %12, %13, %cst_12 {dimension_numbers = #tpu.dot_dimension_numbers<[1], [0], [0], [1], [0, 0, 1, 1], [], []>} : vector<16x256xf32>, vector<256x10xf32>, vector<16x10xf32> -> vector<16x10xf32>
    %c0_13 = arith.constant 0 : index
    %c0_14 = arith.constant 0 : index
    %15 = vector.load %arg7[%c0_13, %c0_14] : memref<1x10xf32, #tpu.memory_space<vmem>>, vector<1x10xf32>
    %16 = vector.broadcast %15 : vector<1x10xf32> to vector<16x10xf32>
    %17 = arith.addf %14, %16 : vector<16x10xf32>
    %cst_15 = arith.constant dense<0xFF800000> : vector<16xf32>
    %18 = vector.multi_reduction <maximumf>, %17, %cst_15 [1] : vector<16x10xf32> to vector<16xf32>
    %19 = vector.shape_cast %18 : vector<16xf32> to vector<16x1xf32>
    %20 = vector.broadcast %19 : vector<16x1xf32> to vector<16x10xf32>
    %21 = arith.subf %17, %20 : vector<16x10xf32>
    %22 = math.exp %21 : vector<16x10xf32>
    %cst_16 = arith.constant dense<0.000000e+00> : vector<16xf32>
    %23 = vector.multi_reduction <add>, %22, %cst_16 [1] : vector<16x10xf32> to vector<16xf32>
    %24 = vector.shape_cast %23 : vector<16xf32> to vector<16x1xf32>
    %25 = tpu.reciprocal %24 {approx = true} : vector<16x1xf32> -> vector<16x1xf32>
    %26 = arith.mulf %24, %25 : vector<16x1xf32>
    %cst_17 = arith.constant 2.000000e+00 : f32
    %27 = vector.broadcast %cst_17 : f32 to vector<16x1xf32>
    %28 = arith.subf %27, %26 : vector<16x1xf32>
    %29 = arith.mulf %25, %28 : vector<16x1xf32>
    %30 = vector.broadcast %29 : vector<16x1xf32> to vector<16x10xf32>
    %31 = arith.mulf %22, %30 : vector<16x10xf32>
    %c0_18 = arith.constant 0 : index
    %c0_19 = arith.constant 0 : index
    %32 = vector.load %arg8[%c0_18, %c0_19] : memref<16x500xf32, #tpu.memory_space<vmem>>, vector<16x500xf32>
    tpu.vector_store %arg8[%c0_18, %c0_19], %5 {strides = array<i32>} : memref<16x500xf32, #tpu.memory_space<vmem>>, vector<16x500xf32>,
    %c0_20 = arith.constant 0 : index
    %c0_21 = arith.constant 0 : index
    %33 = vector.load %arg9[%c0_20, %c0_21] : memref<16x500xf32, #tpu.memory_space<vmem>>, vector<16x500xf32>
    tpu.vector_store %arg9[%c0_20, %c0_21], %6 {strides = array<i32>} : memref<16x500xf32, #tpu.memory_space<vmem>>, vector<16x500xf32>,
    %c0_22 = arith.constant 0 : index
    %c0_23 = arith.constant 0 : index
    %34 = vector.load %arg10[%c0_22, %c0_23] : memref<16x256xf32, #tpu.memory_space<vmem>>, vector<16x256xf32>
    tpu.vector_store %arg10[%c0_22, %c0_23], %11 {strides = array<i32>} : memref<16x256xf32, #tpu.memory_space<vmem>>, vector<16x256xf32>,
    %c0_24 = arith.constant 0 : index
    %c0_25 = arith.constant 0 : index
    %35 = vector.load %arg11[%c0_24, %c0_25] : memref<16x256xf32, #tpu.memory_space<vmem>>, vector<16x256xf32>
    tpu.vector_store %arg11[%c0_24, %c0_25], %12 {strides = array<i32>} : memref<16x256xf32, #tpu.memory_space<vmem>>, vector<16x256xf32>,
    %c0_26 = arith.constant 0 : index
    %c0_27 = arith.constant 0 : index
    %36 = vector.load %arg12[%c0_26, %c0_27] : memref<16x10xf32, #tpu.memory_space<vmem>>, vector<16x10xf32>
    tpu.vector_store %arg12[%c0_26, %c0_27], %17 {strides = array<i32>} : memref<16x10xf32, #tpu.memory_space<vmem>>, vector<16x10xf32>,
    %c0_28 = arith.constant 0 : index
    %c0_29 = arith.constant 0 : index
    %37 = vector.load %arg13[%c0_28, %c0_29] : memref<16x10xf32, #tpu.memory_space<vmem>>, vector<16x10xf32>
    tpu.vector_store %arg13[%c0_28, %c0_29], %31 {strides = array<i32>} : memref<16x10xf32, #tpu.memory_space<vmem>>, vector<16x10xf32>,
    return
  }
  func.func @transform_0(%arg0: i32) -> (i32, i32) {
    %c0_i32 = arith.constant 0 : i32
    %c0_i32_0 = arith.constant 0 : i32
    return %arg0, %c0_i32 : i32, i32
  }
  func.func @transform_1(%arg0: i32) -> (i32, i32) {
    %c0_i32 = arith.constant 0 : i32
    %c0_i32_0 = arith.constant 0 : i32
    %c0_i32_1 = arith.constant 0 : i32
    return %c0_i32, %c0_i32_0 : i32, i32
  }
  func.func @transform_2(%arg0: i32) -> (i32, i32) {
    %c0_i32 = arith.constant 0 : i32
    %c0_i32_0 = arith.constant 0 : i32
    %c0_i32_1 = arith.constant 0 : i32
    return %c0_i32, %c0_i32_0 : i32, i32
  }
  func.func @transform_3(%arg0: i32) -> (i32, i32) {
    %c0_i32 = arith.constant 0 : i32
    %c0_i32_0 = arith.constant 0 : i32
    %c0_i32_1 = arith.constant 0 : i32
    return %c0_i32, %c0_i32_0 : i32, i32
  }
  func.func @transform_4(%arg0: i32) -> (i32, i32) {
    %c0_i32 = arith.constant 0 : i32
    %c0_i32_0 = arith.constant 0 : i32
    %c0_i32_1 = arith.constant 0 : i32
    return %c0_i32, %c0_i32_0 : i32, i32
  }
  func.func @transform_5(%arg0: i32) -> (i32, i32) {
    %c0_i32 = arith.constant 0 : i32
    %c0_i32_0 = arith.constant 0 : i32
    %c0_i32_1 = arith.constant 0 : i32
    return %c0_i32, %c0_i32_0 : i32, i32
  }
  func.func @transform_6(%arg0: i32) -> (i32, i32) {
    %c0_i32 = arith.constant 0 : i32
    %c0_i32_0 = arith.constant 0 : i32
    %c0_i32_1 = arith.constant 0 : i32
    return %c0_i32, %c0_i32_0 : i32, i32
  }
  func.func @transform_7(%arg0: i32) -> (i32, i32) {
    %c0_i32 = arith.constant 0 : i32
    %c0_i32_0 = arith.constant 0 : i32
    return %arg0, %c0_i32 : i32, i32
  }
  func.func @transform_8(%arg0: i32) -> (i32, i32) {
    %c0_i32 = arith.constant 0 : i32
    %c0_i32_0 = arith.constant 0 : i32
    return %arg0, %c0_i32 : i32, i32
  }
  func.func @transform_9(%arg0: i32) -> (i32, i32) {
    %c0_i32 = arith.constant 0 : i32
    %c0_i32_0 = arith.constant 0 : i32
    return %arg0, %c0_i32 : i32, i32
  }
  func.func @transform_10(%arg0: i32) -> (i32, i32) {
    %c0_i32 = arith.constant 0 : i32
    %c0_i32_0 = arith.constant 0 : i32
    return %arg0, %c0_i32 : i32, i32
  }
  func.func @transform_11(%arg0: i32) -> (i32, i32) {
    %c0_i32 = arith.constant 0 : i32
    %c0_i32_0 = arith.constant 0 : i32
    return %arg0, %c0_i32 : i32, i32
  }
  func.func @transform_12(%arg0: i32) -> (i32, i32) {
    %c0_i32 = arith.constant 0 : i32
    %c0_i32_0 = arith.constant 0 : i32
    return %arg0, %c0_i32 : i32, i32
  }
}

</mosaic_0001>

<llo_original>
// kernel: tpu_custom_call.1
$region0: #{tpu_custom_call.1}
  #allocation0 [shape = 'u32[]', space=smem, size = 0x4, offset = 0x4, fixed_abs, tag = 'smem constant byte address 0x4 - core index']
  #allocation1 [shape = 'u32[144,128]{1,0:T(1,128)}', space=vmem, size = 0x12000, scoped, tag = 'internal scratch']
  %s0 = inlined_call_operand.hbm [shape: f32[28,784], index: 0, kind: input, shape index: {}]
  %s1 = inlined_call_operand.hbm [shape: f32[784,500], index: 1, kind: input, shape index: {}]
  %s2 = inlined_call_operand.hbm [shape: f32[1,500], index: 2, kind: input, shape index: {}]
  %s3 = inlined_call_operand.hbm [shape: f32[500,256], index: 3, kind: input, shape index: {}]
  %s4 = inlined_call_operand.hbm [shape: f32[1,256], index: 4, kind: input, shape index: {}]
  %s5 = inlined_call_operand.vmem [shape: f32[256,10], index: 5, kind: input, shape index: {}]
  %s6 = inlined_call_operand.hbm [shape: f32[1,10], index: 6, kind: input, shape index: {}]
  %s7 = inlined_call_operand.hbm [shape: f32[28,500], index: 7, kind: output, shape index: {0}]
  %s8 = inlined_call_operand.hbm [shape: f32[28,500], index: 8, kind: output, shape index: {1}]
  %s9 = inlined_call_operand.hbm [shape: f32[28,256], index: 9, kind: output, shape index: {2}]
  %s10 = inlined_call_operand.hbm [shape: f32[28,256], index: 10, kind: output, shape index: {3}]
  %s11 = inlined_call_operand.vmem [shape: f32[28,10], index: 11, kind: output, shape index: {4}]
  %s12 = inlined_call_operand.vmem [shape: f32[28,10], index: 12, kind: output, shape index: {5}]
  %13 = xla_tuple %s7, %s8, %s9, %s10, %s11, %s12
  %s14 = sld [smem:[#allocation0]]
  $region125: #{tpu_custom_call.1} parent=0
    _
  %s16 = ssub.s32 1, %s14
  %s17 = scalar_select 0, %s16, %s14
  $region1: #{tpu_custom_call.1} parent=0
    #allocation2 [shape = 'u8[114688]{0}', space=vmem, size = 0x1c000, scoped, tag = 'input window, operand 0']
    #allocation3 [shape = 's32[2]{0}', space=sflag, size = 0x8, scoped, tag = 'scoped memory for tpu_custom_call.1']
    #allocation4 [shape = 's32[2]{0}', space=sflag, size = 0x8, scoped, tag = 'scoped memory for tpu_custom_call.1']
    #allocation5 [shape = 'u8[1605632]{0}', space=vmem, size = 0x188000, scoped, tag = 'input window, operand 1, single buffered']
    #allocation6 [shape = 's32[1]{0}', space=sflag, size = 0x4, scoped, tag = 'scoped memory for tpu_custom_call.1']
    #allocation7 [shape = 'u8[2048]{0}', space=vmem, size = 0x800, scoped, tag = 'input window, operand 2, single buffered']
    #allocation8 [shape = 'u8[516096]{0}', space=vmem, size = 0x7e000, scoped, tag = 'input window, operand 3, single buffered']
    #allocation9 [shape = 's32[1]{0}', space=sflag, size = 0x4, scoped, tag = 'scoped memory for tpu_custom_call.1']
    #allocation10 [shape = 'u8[1024]{0}', space=vmem, size = 0x400, scoped, tag = 'input window, operand 4, single buffered']
    #allocation11 [shape = 'u8[512]{0}', space=vmem, size = 0x400, scoped, tag = 'input window, operand 6, single buffered']
    #allocation12 [shape = 's32[1]{0}', space=sflag, size = 0x4, scoped, tag = 'scoped memory for tpu_custom_call.1']
    #allocation13 [shape = 'u8[65536]{0}', space=vmem, size = 0x10000, scoped, tag = 'output window, operand 0']
    #allocation14 [shape = 'u8[65536]{0}', space=vmem, size = 0x10000, scoped, tag = 'output window, operand 1']
    #allocation15 [shape = 's32[2]{0}', space=sflag, size = 0x8, scoped, tag = 'scoped memory for tpu_custom_call.1']
    #allocation16 [shape = 'u8[32768]{0}', space=vmem, size = 0x8000, scoped, tag = 'output window, operand 2']
    #allocation17 [shape = 'u8[32768]{0}', space=vmem, size = 0x8000, scoped, tag = 'output window, operand 3']
    #allocation18 [shape = 's32[2]{0}', space=sflag, size = 0x8, scoped, tag = 'scoped memory for tpu_custom_call.1']
    %18 = vsyncpa [#allocation3], 0
    %s19 = scalar_lea.sflag [#allocation3], 1
    %20 = vsyncpa %s19, 0
    %21 = vsyncpa [#allocation6], 0
    %22 = vsyncpa [#allocation9], 0
    %23 = vsyncpa [#allocation12], 0
    %24 = vsyncpa [#allocation4], 0
    %s25 = scalar_lea.sflag [#allocation4], 1
    %26 = vsyncpa %s25, 0
    %27 = vsyncpa [#allocation15], 0
    %s28 = scalar_lea.sflag [#allocation15], 1
    %29 = vsyncpa %s28, 0
    %30 = vsyncpa [#allocation18], 0
    %s31 = scalar_lea.sflag [#allocation18], 1
    %32 = vsyncpa %s31, 0
    loop: start=0, step=1, limit=4
    $region2: #{tpu_custom_call.1} parent=1 // loop_pre_header
      _
    $region3: #{tpu_custom_call.1} parent=1 // loop_header
      %s34 = sphi 0, %s38
      %p35 = scmp.ge.s32.totalorder %s34, 4
      %s44 = sphi 0, %s46
      %s47 = sphi 0, %s44
      %s48 = sphi 0, %s47
      %s64 = sphi 0, %s48
      %s68 = sphi 0, %s68
      %s70 = sphi 0, %s68
      %s71 = sphi 0, %s70
      %s85 = sphi 0, %s71
      %s89 = sphi 0, %s89
      %s91 = sphi 0, %s89
      %s92 = sphi 0, %s91
      %s106 = sphi 0, %s92
      %s110 = sphi 0, %s110
      %s112 = sphi 0, %s110
      %s113 = sphi 0, %s112
      %s127 = sphi 0, %s113
      %s131 = sphi 0, %s131
      %s133 = sphi 0, %s131
      %s134 = sphi 0, %s133
      %s148 = sphi 0, %s134
      %s152 = sphi 0, %s152
      %s154 = sphi 0, %s152
      %s155 = sphi 0, %s154
      %s169 = sphi 0, %s155
      %s173 = sphi 0, %s173
      %s175 = sphi 0, %s173
      %s176 = sphi 0, %s175
      %s190 = sphi 0, %s176
      %s196 = sphi 0, %s198
      %s199 = sphi 0, %s196
      %s200 = sphi 0, %s199
      %s216 = sphi 0, %s200
      %s222 = sphi 0, %s224
      %s225 = sphi 0, %s222
      %s226 = sphi 0, %s225
      %s242 = sphi 0, %s226
      %s248 = sphi 0, %s250
      %s251 = sphi 0, %s248
      %s252 = sphi 0, %s251
      %s268 = sphi 0, %s252
      %s274 = sphi 0, %s276
      %s277 = sphi 0, %s274
      %s278 = sphi 0, %s277
      %s294 = sphi 0, %s278
      %s300 = sphi 0, %s302
      %s303 = sphi 0, %s300
      %s304 = sphi 0, %s303
      %s320 = sphi 0, %s304
      %s326 = sphi 0, %s328
      %s329 = sphi 0, %s326
      %s330 = sphi 0, %s329
      %s346 = sphi 0, %s330
    $region4: #{tpu_custom_call.1} parent=1 // loop_header_branch
      %37 = sbr.rel (%p35) target = $region8
    $region5: #{tpu_custom_call.1} parent=1 // loop_body
      %s39 = ssub.s32 %s34, 1
      %s40 = ssub.s32 %s34, 2
      %s41 = sadd.s32 %s34, 1
      %s42 = ssub.s32 %s34, %s41
      %p43 = scmp.eq.s32.totalorder %s42, 0
      %s45 = sadd.s32 %s44, 1
      %s46 = scalar_select %p43, %s44, %s45
      %p49 = pneg %p43
      %p50 = scmp.eq.s32.totalorder %s34, 1
      %p51 = por %p49, %p50
      %p52 = scmp.ne.s32.totalorder %s44, %s47
      %p53 = scmp.eq.s32.totalorder %s34, 0
      %p54 = por %p52, %p53
      %p55 = scmp.ne.s32.totalorder %s44, %s47
      %p56 = scmp.eq.s32.totalorder %s39, 1
      %p57 = por %p55, %p56
      %p58 = scmp.ne.s32.totalorder %s47, %s48
      %p59 = scmp.eq.s32.totalorder %s39, 0
      %p60 = por %p58, %p59
      %p61 = scmp.ne.s32.totalorder %s47, %s48
      %p62 = scmp.eq.s32.totalorder %s40, 1
      %p63 = por %p61, %p62
      %p65 = scmp.ne.s32.totalorder %s48, %s64
      %p66 = scmp.eq.s32.totalorder %s40, 0
      %p67 = por %p65, %p66
      %s69 = sadd.s32 %s68, 1
      %p72 = scmp.eq.s32.totalorder %s34, 1
      %p73 = scmp.ne.s32.totalorder %s68, %s70
      %p74 = scmp.eq.s32.totalorder %s34, 0
      %p75 = por %p73, %p74
      %p76 = scmp.ne.s32.totalorder %s68, %s70
      %p77 = scmp.eq.s32.totalorder %s39, 1
      %p78 = por %p76, %p77
      %p79 = scmp.ne.s32.totalorder %s70, %s71
      %p80 = scmp.eq.s32.totalorder %s39, 0
      %p81 = por %p79, %p80
      %p82 = scmp.ne.s32.totalorder %s70, %s71
      %p83 = scmp.eq.s32.totalorder %s40, 1
      %p84 = por %p82, %p83
      %p86 = scmp.ne.s32.totalorder %s71, %s85
      %p87 = scmp.eq.s32.totalorder %s40, 0
      %p88 = por %p86, %p87
      %s90 = sadd.s32 %s89, 1
      %p93 = scmp.eq.s32.totalorder %s34, 1
      %p94 = scmp.ne.s32.totalorder %s89, %s91
      %p95 = scmp.eq.s32.totalorder %s34, 0
      %p96 = por %p94, %p95
      %p97 = scmp.ne.s32.totalorder %s89, %s91
      %p98 = scmp.eq.s32.totalorder %s39, 1
      %p99 = por %p97, %p98
      %p100 = scmp.ne.s32.totalorder %s91, %s92
      %p101 = scmp.eq.s32.totalorder %s39, 0
      %p102 = por %p100, %p101
      %p103 = scmp.ne.s32.totalorder %s91, %s92
      %p104 = scmp.eq.s32.totalorder %s40, 1
      %p105 = por %p103, %p104
      %p107 = scmp.ne.s32.totalorder %s92, %s106
      %p108 = scmp.eq.s32.totalorder %s40, 0
      %p109 = por %p107, %p108
      %s111 = sadd.s32 %s110, 1
      %p114 = scmp.eq.s32.totalorder %s34, 1
      %p115 = scmp.ne.s32.totalorder %s110, %s112
      %p116 = scmp.eq.s32.totalorder %s34, 0
      %p117 = por %p115, %p116
      %p118 = scmp.ne.s32.totalorder %s110, %s112
      %p119 = scmp.eq.s32.totalorder %s39, 1
      %p120 = por %p118, %p119
      %p121 = scmp.ne.s32.totalorder %s112, %s113
      %p122 = scmp.eq.s32.totalorder %s39, 0
      %p123 = por %p121, %p122
      %p124 = scmp.ne.s32.totalorder %s112, %s113
      %p125 = scmp.eq.s32.totalorder %s40, 1
      %p126 = por %p124, %p125
      %p128 = scmp.ne.s32.totalorder %s113, %s127
      %p129 = scmp.eq.s32.totalorder %s40, 0
      %p130 = por %p128, %p129
      %s132 = sadd.s32 %s131, 1
      %p135 = scmp.eq.s32.totalorder %s34, 1
      %p136 = scmp.ne.s32.totalorder %s131, %s133
      %p137 = scmp.eq.s32.totalorder %s34, 0
      %p138 = por %p136, %p137
      %p139 = scmp.ne.s32.totalorder %s131, %s133
      %p140 = scmp.eq.s32.totalorder %s39, 1
      %p141 = por %p139, %p140
      %p142 = scmp.ne.s32.totalorder %s133, %s134
      %p143 = scmp.eq.s32.totalorder %s39, 0
      %p144 = por %p142, %p143
      %p145 = scmp.ne.s32.totalorder %s133, %s134
      %p146 = scmp.eq.s32.totalorder %s40, 1
      %p147 = por %p145, %p146
      %p149 = scmp.ne.s32.totalorder %s134, %s148
      %p150 = scmp.eq.s32.totalorder %s40, 0
      %p151 = por %p149, %p150
      %s153 = sadd.s32 %s152, 1
      %p156 = scmp.eq.s32.totalorder %s34, 1
      %p157 = scmp.ne.s32.totalorder %s152, %s154
      %p158 = scmp.eq.s32.totalorder %s34, 0
      %p159 = por %p157, %p158
      %p160 = scmp.ne.s32.totalorder %s152, %s154
      %p161 = scmp.eq.s32.totalorder %s39, 1
      %p162 = por %p160, %p161
      %p163 = scmp.ne.s32.totalorder %s154, %s155
      %p164 = scmp.eq.s32.totalorder %s39, 0
      %p165 = por %p163, %p164
      %p166 = scmp.ne.s32.totalorder %s154, %s155
      %p167 = scmp.eq.s32.totalorder %s40, 1
      %p168 = por %p166, %p167
      %p170 = scmp.ne.s32.totalorder %s155, %s169
      %p171 = scmp.eq.s32.totalorder %s40, 0
      %p172 = por %p170, %p171
      %s174 = sadd.s32 %s173, 1
      %p177 = scmp.eq.s32.totalorder %s34, 1
      %p178 = scmp.ne.s32.totalorder %s173, %s175
      %p179 = scmp.eq.s32.totalorder %s34, 0
      %p180 = por %p178, %p179
      %p181 = scmp.ne.s32.totalorder %s173, %s175
      %p182 = scmp.eq.s32.totalorder %s39, 1
      %p183 = por %p181, %p182
      %p184 = scmp.ne.s32.totalorder %s175, %s176
      %p185 = scmp.eq.s32.totalorder %s39, 0
      %p186 = por %p184, %p185
      %p187 = scmp.ne.s32.totalorder %s175, %s176
      %p188 = scmp.eq.s32.totalorder %s40, 1
      %p189 = por %p187, %p188
      %p191 = scmp.ne.s32.totalorder %s176, %s190
      %p192 = scmp.eq.s32.totalorder %s40, 0
      %p193 = por %p191, %p192
      %s194 = ssub.s32 %s34, %s41
      %p195 = scmp.eq.s32.totalorder %s194, 0
      %s197 = sadd.s32 %s196, 1
      %s198 = scalar_select %p195, %s196, %s197
      %p201 = pneg %p195
      %p202 = scmp.eq.s32.totalorder %s34, 1
      %p203 = por %p201, %p202
      %p204 = scmp.ne.s32.totalorder %s196, %s199
      %p205 = scmp.eq.s32.totalorder %s34, 0
      %p206 = por %p204, %p205
      %p207 = scmp.ne.s32.totalorder %s196, %s199
      %p208 = scmp.eq.s32.totalorder %s39, 1
      %p209 = por %p207, %p208
      %p210 = scmp.ne.s32.totalorder %s199, %s200
      %p211 = scmp.eq.s32.totalorder %s39, 0
      %p212 = por %p210, %p211
      %p213 = scmp.ne.s32.totalorder %s199, %s200
      %p214 = scmp.eq.s32.totalorder %s40, 1
      %p215 = por %p213, %p214
      %p217 = scmp.ne.s32.totalorder %s200, %s216
      %p218 = scmp.eq.s32.totalorder %s40, 0
      %p219 = por %p217, %p218
      %s220 = ssub.s32 %s34, %s41
      %p221 = scmp.eq.s32.totalorder %s220, 0
      %s223 = sadd.s32 %s222, 1
      %s224 = scalar_select %p221, %s222, %s223
      %p227 = pneg %p221
      %p228 = scmp.eq.s32.totalorder %s34, 1
      %p229 = por %p227, %p228
      %p230 = scmp.ne.s32.totalorder %s222, %s225
      %p231 = scmp.eq.s32.totalorder %s34, 0
      %p232 = por %p230, %p231
      %p233 = scmp.ne.s32.totalorder %s222, %s225
      %p234 = scmp.eq.s32.totalorder %s39, 1
      %p235 = por %p233, %p234
      %p236 = scmp.ne.s32.totalorder %s225, %s226
      %p237 = scmp.eq.s32.totalorder %s39, 0
      %p238 = por %p236, %p237
      %p239 = scmp.ne.s32.totalorder %s225, %s226
      %p240 = scmp.eq.s32.totalorder %s40, 1
      %p241 = por %p239, %p240
      %p243 = scmp.ne.s32.totalorder %s226, %s242
      %p244 = scmp.eq.s32.totalorder %s40, 0
      %p245 = por %p243, %p244
      %s246 = ssub.s32 %s34, %s41
      %p247 = scmp.eq.s32.totalorder %s246, 0
      %s249 = sadd.s32 %s248, 1
      %s250 = scalar_select %p247, %s248, %s249
      %p253 = pneg %p247
      %p254 = scmp.eq.s32.totalorder %s34, 1
      %p255 = por %p253, %p254
      %p256 = scmp.ne.s32.totalorder %s248, %s251
      %p257 = scmp.eq.s32.totalorder %s34, 0
      %p258 = por %p256, %p257
      %p259 = scmp.ne.s32.totalorder %s248, %s251
      %p260 = scmp.eq.s32.totalorder %s39, 1
      %p261 = por %p259, %p260
      %p262 = scmp.ne.s32.totalorder %s251, %s252
      %p263 = scmp.eq.s32.totalorder %s39, 0
      %p264 = por %p262, %p263
      %p265 = scmp.ne.s32.totalorder %s251, %s252
      %p266 = scmp.eq.s32.totalorder %s40, 1
      %p267 = por %p265, %p266
      %p269 = scmp.ne.s32.totalorder %s252, %s268
      %p270 = scmp.eq.s32.totalorder %s40, 0
      %p271 = por %p269, %p270
      %s272 = ssub.s32 %s34, %s41
      %p273 = scmp.eq.s32.totalorder %s272, 0
      %s275 = sadd.s32 %s274, 1
      %s276 = scalar_select %p273, %s274, %s275
      %p279 = pneg %p273
      %p280 = scmp.eq.s32.totalorder %s34, 1
      %p281 = por %p279, %p280
      %p282 = scmp.ne.s32.totalorder %s274, %s277
      %p283 = scmp.eq.s32.totalorder %s34, 0
      %p284 = por %p282, %p283
      %p285 = scmp.ne.s32.totalorder %s274, %s277
      %p286 = scmp.eq.s32.totalorder %s39, 1
      %p287 = por %p285, %p286
      %p288 = scmp.ne.s32.totalorder %s277, %s278
      %p289 = scmp.eq.s32.totalorder %s39, 0
      %p290 = por %p288, %p289
      %p291 = scmp.ne.s32.totalorder %s277, %s278
      %p292 = scmp.eq.s32.totalorder %s40, 1
      %p293 = por %p291, %p292
      %p295 = scmp.ne.s32.totalorder %s278, %s294
      %p296 = scmp.eq.s32.totalorder %s40, 0
      %p297 = por %p295, %p296
      %s298 = ssub.s32 %s34, %s41
      %p299 = scmp.eq.s32.totalorder %s298, 0
      %s301 = sadd.s32 %s300, 1
      %s302 = scalar_select %p299, %s300, %s301
      %p305 = pneg %p299
      %p306 = scmp.eq.s32.totalorder %s34, 1
      %p307 = por %p305, %p306
      %p308 = scmp.ne.s32.totalorder %s300, %s303
      %p309 = scmp.eq.s32.totalorder %s34, 0
      %p310 = por %p308, %p309
      %p311 = scmp.ne.s32.totalorder %s300, %s303
      %p312 = scmp.eq.s32.totalorder %s39, 1
      %p313 = por %p311, %p312
      %p314 = scmp.ne.s32.totalorder %s303, %s304
      %p315 = scmp.eq.s32.totalorder %s39, 0
      %p316 = por %p314, %p315
      %p317 = scmp.ne.s32.totalorder %s303, %s304
      %p318 = scmp.eq.s32.totalorder %s40, 1
      %p319 = por %p317, %p318
      %p321 = scmp.ne.s32.totalorder %s304, %s320
      %p322 = scmp.eq.s32.totalorder %s40, 0
      %p323 = por %p321, %p322
      %s324 = ssub.s32 %s34, %s41
      %p325 = scmp.eq.s32.totalorder %s324, 0
      %s327 = sadd.s32 %s326, 1
      %s328 = scalar_select %p325, %s326, %s327
      %p331 = pneg %p325
      %p332 = scmp.eq.s32.totalorder %s34, 1
      %p333 = por %p331, %p332
      %p334 = scmp.ne.s32.totalorder %s326, %s329
      %p335 = scmp.eq.s32.totalorder %s34, 0
      %p336 = por %p334, %p335
      %p337 = scmp.ne.s32.totalorder %s326, %s329
      %p338 = scmp.eq.s32.totalorder %s39, 1
      %p339 = por %p337, %p338
      %p340 = scmp.ne.s32.totalorder %s329, %s330
      %p341 = scmp.eq.s32.totalorder %s39, 0
      %p342 = por %p340, %p341
      %p343 = scmp.ne.s32.totalorder %s329, %s330
      %p344 = scmp.eq.s32.totalorder %s40, 1
      %p345 = por %p343, %p344
      %p347 = scmp.ne.s32.totalorder %s330, %s346
      %p348 = scmp.eq.s32.totalorder %s40, 0
      %p349 = por %p347, %p348
      %p350 = scmp.le.s32.totalorder 1, %s34
      %p351 = scmp.lt.s32.totalorder %s34, 3
      %p352 = pnand %p350, %p351
      %p353 = pneg %p352
      // Predicated region
      $region9: #{tpu_custom_call.1} parent=5 // pred_check
        _
      $region10: #{tpu_custom_call.1} parent=5 // pred_check_branch
        %355 = sbr.rel (%p352) target = $region12
      $region11: #{tpu_custom_call.1} parent=5 // pred_region
        %s356 = ssub.s32 %s34, 1
        // Predicated region
        $region13: #{tpu_custom_call.1} parent=11 // pred_check
          %p357 = pneg %p81
        $region14: #{tpu_custom_call.1} parent=11 // pred_check_branch
          %359 = sbr.rel (%p357) target = $region16
        $region15: #{tpu_custom_call.1} parent=11 // pred_region
          %s361 = ssub.s32 50176, 50176
          %362 = vsyncadd [#allocation6], %s361
          %s363 = sshll.u32 [#allocation5], 4
          %s364 = int_to_ptr.vmem [resolvable:$true] %s363
          %369 = dma.hbm_to_vmem [thread:$0]  %s1, 50176, %s364, [#allocation6], 512, 512, 32
        $region16: #{tpu_custom_call.1} parent=11 // pred_fallthru
          _
        // Predicated region
        $region17: #{tpu_custom_call.1} parent=11 // pred_check
          %p370 = pneg %p102
        $region18: #{tpu_custom_call.1} parent=11 // pred_check_branch
          %372 = sbr.rel (%p370) target = $region20
        $region19: #{tpu_custom_call.1} parent=11 // pred_region
          %s374 = ssub.s32 64, 64
          %375 = vsyncadd [#allocation6], %s374
          %s377 = sshll.u32 [#allocation7], 4
          %s378 = int_to_ptr.vmem [resolvable:$true] %s377
          %380 = dma.hbm_to_vmem [thread:$0]  %s2, 64, %s378, [#allocation6]
        $region20: #{tpu_custom_call.1} parent=11 // pred_fallthru
          _
        // Predicated region
        $region21: #{tpu_custom_call.1} parent=11 // pred_check
          %p381 = pneg %p123
        $region22: #{tpu_custom_call.1} parent=11 // pred_check_branch
          %383 = sbr.rel (%p381) target = $region24
        $region23: #{tpu_custom_call.1} parent=11 // pred_region
          %s385 = ssub.s32 16128, 16128
          %386 = vsyncadd [#allocation9], %s385
          %s387 = sshll.u32 [#allocation8], 4
          %s388 = int_to_ptr.vmem [resolvable:$true] %s387
          %393 = dma.hbm_to_vmem [thread:$0]  %s3, 16128, %s388, [#allocation9], 256, 256, 16
        $region24: #{tpu_custom_call.1} parent=11 // pred_fallthru
          _
        // Predicated region
        $region25: #{tpu_custom_call.1} parent=11 // pred_check
          %p394 = pneg %p144
        $region26: #{tpu_custom_call.1} parent=11 // pred_check_branch
          %396 = sbr.rel (%p394) target = $region28
        $region27: #{tpu_custom_call.1} parent=11 // pred_region
          %s398 = ssub.s32 32, 32
          %399 = vsyncadd [#allocation9], %s398
          %s401 = sshll.u32 [#allocation10], 4
          %s402 = int_to_ptr.vmem [resolvable:$true] %s401
          %404 = dma.hbm_to_vmem [thread:$0]  %s4, 32, %s402, [#allocation9]
        $region28: #{tpu_custom_call.1} parent=11 // pred_fallthru
          _
        // Predicated region
        $region29: #{tpu_custom_call.1} parent=11 // pred_check
          %p405 = pneg %p165
        $region30: #{tpu_custom_call.1} parent=11 // pred_check_branch
          %407 = sbr.rel (%p405) target = $region32
        $region31: #{tpu_custom_call.1} parent=11 // pred_region
          _
        $region32: #{tpu_custom_call.1} parent=11 // pred_fallthru
          _
        // Predicated region
        $region33: #{tpu_custom_call.1} parent=11 // pred_check
          %p408 = pneg %p186
        $region34: #{tpu_custom_call.1} parent=11 // pred_check_branch
          %410 = sbr.rel (%p408) target = $region36
        $region35: #{tpu_custom_call.1} parent=11 // pred_region
          %s412 = ssub.s32 16, 16
          %413 = vsyncadd [#allocation12], %s412
          %s415 = sshll.u32 [#allocation11], 4
          %s416 = int_to_ptr.vmem [resolvable:$true] %s415
          %418 = dma.hbm_to_vmem [thread:$0]  %s6, 16, %s416, [#allocation12]
        $region36: #{tpu_custom_call.1} parent=11 // pred_fallthru
          _
      $region12: #{tpu_custom_call.1} parent=5 // pred_fallthru
        _
      %p419 = scmp.lt.s32.totalorder %s34, 2
      // Predicated region
      $region37: #{tpu_custom_call.1} parent=5 // pred_check
        %p420 = pneg %p419
      $region38: #{tpu_custom_call.1} parent=5 // pred_check_branch
        %422 = sbr.rel (%p420) target = $region40
      $region39: #{tpu_custom_call.1} parent=5 // pred_region
        // Predicated region
        $region41: #{tpu_custom_call.1} parent=39 // pred_check
          %p423 = pneg %p54
        $region42: #{tpu_custom_call.1} parent=39 // pred_check_branch
          %425 = sbr.rel (%p423) target = $region44
        $region43: #{tpu_custom_call.1} parent=39 // pred_region
          %s426 = sand.u32 %s44, 1
          %s427 = scalar_lea.sflag [#allocation3], %s426
          %s428 = sand.u32 %s44, 1
          %s429 = smul.addr %s428, 112
          %s430 = scalar_lea.vmem [#allocation2], %s429
          %s431 = smul.u32 2, %s34
          %s433 = ssub.s32 1792, 1792
          %434 = vsyncadd %s427, %s433
          %s435 = smul.addr %s431, 7
          %s436 = smul.addr %s435, 128
          %s437 = scalar_lea.hbm %s0, %s436
          %s438 = sshll.u32 %s430, 4
          %s439 = int_to_ptr.vmem [resolvable:$true] %s438
          %444 = dma.hbm_to_vmem [thread:$0]  %s437, 1792, %s439, %s427, 896, 896, 56
        $region44: #{tpu_custom_call.1} parent=39 // pred_fallthru
          _
      $region40: #{tpu_custom_call.1} parent=5 // pred_fallthru
        _
      %p445 = scmp.le.s32.totalorder 1, %s34
      %p446 = scmp.lt.s32.totalorder %s34, 3
      %p447 = pnand %p445, %p446
      %p448 = pneg %p447
      // Predicated region
      $region45: #{tpu_custom_call.1} parent=5 // pred_check
        _
      $region46: #{tpu_custom_call.1} parent=5 // pred_check_branch
        %450 = sbr.rel (%p447) target = $region48
      $region47: #{tpu_custom_call.1} parent=5 // pred_region
        %s451 = ssub.s32 %s34, 1
        %s452 = sand.u32 %s47, 1
        %s453 = scalar_lea.sflag [#allocation3], %s452
        %s454 = sand.u32 %s47, 1
        %s455 = smul.addr %s454, 112
        %s456 = scalar_lea.vmem [#allocation2], %s455
        // Predicated region
        $region49: #{tpu_custom_call.1} parent=47 // pred_check
          %p457 = pneg %p60
        $region50: #{tpu_custom_call.1} parent=47 // pred_check_branch
          %459 = sbr.rel (%p457) target = $region52
        $region51: #{tpu_custom_call.1} parent=47 // pred_region
          %460 = dma.done %s453, 1792
        $region52: #{tpu_custom_call.1} parent=47 // pred_fallthru
          _
        // Predicated region
        $region53: #{tpu_custom_call.1} parent=47 // pred_check
          %p461 = pneg %p81
        $region54: #{tpu_custom_call.1} parent=47 // pred_check_branch
          %463 = sbr.rel (%p461) target = $region56
        $region55: #{tpu_custom_call.1} parent=47 // pred_region
          %464 = dma.done [#allocation6], 50176
        $region56: #{tpu_custom_call.1} parent=47 // pred_fallthru
          _
        // Predicated region
        $region57: #{tpu_custom_call.1} parent=47 // pred_check
          %p465 = pneg %p102
        $region58: #{tpu_custom_call.1} parent=47 // pred_check_branch
          %467 = sbr.rel (%p465) target = $region60
        $region59: #{tpu_custom_call.1} parent=47 // pred_region
          %468 = dma.done [#allocation6], 64
        $region60: #{tpu_custom_call.1} parent=47 // pred_fallthru
          _
        // Predicated region
        $region61: #{tpu_custom_call.1} parent=47 // pred_check
          %p469 = pneg %p123
        $region62: #{tpu_custom_call.1} parent=47 // pred_check_branch
          %471 = sbr.rel (%p469) target = $region64
        $region63: #{tpu_custom_call.1} parent=47 // pred_region
          %472 = dma.done [#allocation9], 16128
        $region64: #{tpu_custom_call.1} parent=47 // pred_fallthru
          _
        // Predicated region
        $region65: #{tpu_custom_call.1} parent=47 // pred_check
          %p473 = pneg %p144
        $region66: #{tpu_custom_call.1} parent=47 // pred_check_branch
          %475 = sbr.rel (%p473) target = $region68
        $region67: #{tpu_custom_call.1} parent=47 // pred_region
          %476 = dma.done [#allocation9], 32
        $region68: #{tpu_custom_call.1} parent=47 // pred_fallthru
          _
        // Predicated region
        $region69: #{tpu_custom_call.1} parent=47 // pred_check
          %p477 = pneg %p186
        $region70: #{tpu_custom_call.1} parent=47 // pred_check_branch
          %479 = sbr.rel (%p477) target = $region72
        $region71: #{tpu_custom_call.1} parent=47 // pred_region
          %480 = dma.done [#allocation12], 16
        $region72: #{tpu_custom_call.1} parent=47 // pred_fallthru
          _
        %s481 = sand.u32 %s47, 1
        %s482 = scalar_lea.sflag [#allocation3], %s481
        %s483 = sand.u32 %s47, 1
        %s484 = smul.addr %s483, 112
        %s485 = scalar_lea.vmem [#allocation2], %s484
        %p486 = pneg %p60
        %p487 = pneg %p57
        %p488 = pneg %p81
        %p489 = pneg %p78
        %p490 = pneg %p102
        %p491 = pneg %p99
        %p492 = pneg %p123
        %p493 = pneg %p120
        %p494 = pneg %p144
        %p495 = pneg %p141
        %p496 = pneg %p165
        %p497 = pneg %p162
        %p498 = pneg %p186
        %p499 = pneg %p183
        %p500 = pneg %p212
        %p501 = pneg %p209
        %s502 = sand.u32 %s199, 1
        %s503 = scalar_lea.sflag [#allocation4], %s502
        %s504 = sand.u32 %s199, 1
        %s505 = smul.addr %s504, 64
        %s506 = scalar_lea.vmem [#allocation13], %s505
        %p507 = pneg %p238
        %p508 = pneg %p235
        %s509 = sand.u32 %s39, 1
        %s510 = scalar_lea.sflag [#allocation15], %s509
        %s511 = sand.u32 %s225, 1
        %s512 = smul.addr %s511, 64
        %s513 = scalar_lea.vmem [#allocation14], %s512
        %p514 = pneg %p264
        %p515 = pneg %p261
        %s516 = sand.u32 %s39, 1
        %s517 = scalar_lea.sflag [#allocation15], %s516
        %s518 = sand.u32 %s251, 1
        %s519 = smul.addr %s518, 32
        %s520 = scalar_lea.vmem [#allocation16], %s519
        %p521 = pneg %p290
        %p522 = pneg %p287
        %s523 = sand.u32 %s277, 1
        %s524 = scalar_lea.sflag [#allocation18], %s523
        %s525 = sand.u32 %s277, 1
        %s526 = smul.addr %s525, 32
        %s527 = scalar_lea.vmem [#allocation17], %s526
        %p528 = pneg %p316
        %p529 = pneg %p313
        %s530 = smul.u32 2, %s39
        %p531 = scmp.lt.s32.totalorder %s530, 3
        %s532 = scalar_select %p531, %s530, 3
        %s533 = smul.addr %s532, 8
        %s534 = scalar_lea.vmem %s11, %s533
        %p535 = pneg %p342
        %p536 = pneg %p339
        %s537 = smul.u32 2, %s39
        %p538 = scmp.lt.s32.totalorder %s537, 3
        %s539 = scalar_select %p538, %s537, 3
        %s540 = smul.addr %s539, 8
        %s541 = scalar_lea.vmem %s12, %s540
        %s542 = smul.u32 2, %s39
        %s543 = smul.u32 2, %s39
        %s544 = smul.u32 2, %s39
        %s545 = smul.u32 2, %s39
        %s546 = smul.u32 2, %s39
        %s547 = smul.u32 2, %s39
        %p548 = scmp.lt.s32.totalorder %s547, 3
        %s549 = scalar_select %p548, %s547, 3
        %s550 = smul.addr %s549, 8
        %s551 = scalar_lea.vmem %s11, %s550
        %s552 = smul.u32 2, %s39
        %s553 = smul.u32 2, %s39
        %p554 = scmp.lt.s32.totalorder %s553, 3
        %s555 = scalar_select %p554, %s553, 3
        %s556 = smul.addr %s555, 8
        %s557 = scalar_lea.vmem %s12, %s556
        %s558 = smul.u32 2, %s39
        %v559 = vld [vmem:[%s456] sm:$0xff]
        %v560 = vld [vmem:[%s456 + $0x8] sm:$0xff]
        %v561 = vld [vmem:[%s456 + $0x10] sm:$0xff]
        %v562 = vld [vmem:[%s456 + $0x18] sm:$0xff]
        %v563 = vld [vmem:[%s456 + $0x20] sm:$0xff]
        %v564 = vld [vmem:[%s456 + $0x28] sm:$0xff]
        %v565 = vld [vmem:[%s456 + $0x30] sm:$0xff]
        %v566 = vld [vmem:[%s456 + $0x38] sm:$0xff]
        %v567 = vld [vmem:[%s456 + $0x40] sm:$0xff]
        %v568 = vld [vmem:[%s456 + $0x48] sm:$0xff]
        %v569 = vld [vmem:[%s456 + $0x50] sm:$0xff]
        %v570 = vld [vmem:[%s456 + $0x58] sm:$0xff]
        %v571 = vld [vmem:[%s456 + $0x60] sm:$0xff]
        %v572 = vld [vmem:[%s456 + $0x68] sm:$0xff]
        %v573 = vld [vmem:[#allocation5] sm:$0xff]
        %v574 = vld [vmem:[#allocation5 + $0x8] sm:$0xff]
        %v575 = vld [vmem:[#allocation5 + $0x10] sm:$0xff]
        %v576 = vld [vmem:[#allocation5 + $0x18] sm:$0xff]
        %v577 = vld [vmem:[#allocation5 + $0x20] sm:$0xff]
        %v578 = vld [vmem:[#allocation5 + $0x28] sm:$0xff]
        %v579 = vld [vmem:[#allocation5 + $0x30] sm:$0xff]
        %v580 = vld [vmem:[#allocation5 + $0x38] sm:$0xff]
        %v581 = vld [vmem:[#allocation5 + $0x40] sm:$0xff]
        %v582 = vld [vmem:[#allocation5 + $0x48] sm:$0xff]
        %v583 = vld [vmem:[#allocation5 + $0x50] sm:$0xff]
        %v584 = vld [vmem:[#allocation5 + $0x58] sm:$0xff]
        %v585 = vld [vmem:[#allocation5 + $0x60] sm:$0xff]
        %v586 = vld [vmem:[#allocation5 + $0x68] sm:$0xff]
        %v587 = vld [vmem:[#allocation5 + $0x70] sm:$0xff]
        %v588 = vld [vmem:[#allocation5 + $0x78] sm:$0xff]
        %v589 = vld [vmem:[#allocation5 + $0x80] sm:$0xff]
        %v590 = vld [vmem:[#allocation5 + $0x88] sm:$0xff]
        %v591 = vld [vmem:[#allocation5 + $0x90] sm:$0xff]
        %v592 = vld [vmem:[#allocation5 + $0x98] sm:$0xff]
        %v593 = vld [vmem:[#allocation5 + $0xa0] sm:$0xff]
        %v594 = vld [vmem:[#allocation5 + $0xa8] sm:$0xff]
        %v595 = vld [vmem:[#allocation5 + $0xb0] sm:$0xff]
        %v596 = vld [vmem:[#allocation5 + $0xb8] sm:$0xff]
        %v597 = vld [vmem:[#allocation5 + $0xc0] sm:$0xff]
        %v598 = vld [vmem:[#allocation5 + $0xc8] sm:$0xff]
        %v599 = vld [vmem:[#allocation5 + $0xd0] sm:$0xff]
        %v600 = vld [vmem:[#allocation5 + $0xd8] sm:$0xff]
        %v601 = vld [vmem:[#allocation5 + $0xe0] sm:$0xff]
        %v602 = vld [vmem:[#allocation5 + $0xe8] sm:$0xff]
        %v603 = vld [vmem:[#allocation5 + $0xf0] sm:$0xff]
        %v604 = vld [vmem:[#allocation5 + $0xf8] sm:$0xff]
        %v605 = vld [vmem:[#allocation5 + $0x100] sm:$0xff]
        %v606 = vld [vmem:[#allocation5 + $0x108] sm:$0xff]
        %v607 = vld [vmem:[#allocation5 + $0x110] sm:$0xff]
        %v608 = vld [vmem:[#allocation5 + $0x118] sm:$0xff]
        %v609 = vld [vmem:[#allocation5 + $0x120] sm:$0xff]
        %v610 = vld [vmem:[#allocation5 + $0x128] sm:$0xff]
        %v611 = vld [vmem:[#allocation5 + $0x130] sm:$0xff]
        %v612 = vld [vmem:[#allocation5 + $0x138] sm:$0xff]
        %v613 = vld [vmem:[#allocation5 + $0x140] sm:$0xff]
        %v614 = vld [vmem:[#allocation5 + $0x148] sm:$0xff]
        %v615 = vld [vmem:[#allocation5 + $0x150] sm:$0xff]
        %v616 = vld [vmem:[#allocation5 + $0x158] sm:$0xff]
        %v617 = vld [vmem:[#allocation5 + $0x160] sm:$0xff]
        %v618 = vld [vmem:[#allocation5 + $0x168] sm:$0xff]
        %v619 = vld [vmem:[#allocation5 + $0x170] sm:$0xff]
        %v620 = vld [vmem:[#allocation5 + $0x178] sm:$0xff]
        %v621 = vld [vmem:[#allocation5 + $0x180] sm:$0xff]
        %v622 = vld [vmem:[#allocation5 + $0x188] sm:$0xff]
        %v623 = vld [vmem:[#allocation5 + $0x190] sm:$0xff]
        %v624 = vld [vmem:[#allocation5 + $0x198] sm:$0xff]
        %v625 = vld [vmem:[#allocation5 + $0x1a0] sm:$0xff]
        %v626 = vld [vmem:[#allocation5 + $0x1a8] sm:$0xff]
        %v627 = vld [vmem:[#allocation5 + $0x1b0] sm:$0xff]
        %v628 = vld [vmem:[#allocation5 + $0x1b8] sm:$0xff]
        %v629 = vld [vmem:[#allocation5 + $0x1c0] sm:$0xff]
        %v630 = vld [vmem:[#allocation5 + $0x1c8] sm:$0xff]
        %v631 = vld [vmem:[#allocation5 + $0x1d0] sm:$0xff]
        %v632 = vld [vmem:[#allocation5 + $0x1d8] sm:$0xff]
        %v633 = vld [vmem:[#allocation5 + $0x1e0] sm:$0xff]
        %v634 = vld [vmem:[#allocation5 + $0x1e8] sm:$0xff]
        %v635 = vld [vmem:[#allocation5 + $0x1f0] sm:$0xff]
        %v636 = vld [vmem:[#allocation5 + $0x1f8] sm:$0xff]
        %v637 = vld [vmem:[#allocation5 + $0x200] sm:$0xff]
        %v638 = vld [vmem:[#allocation5 + $0x208] sm:$0xff]
        %v639 = vld [vmem:[#allocation5 + $0x210] sm:$0xff]
        %v640 = vld [vmem:[#allocation5 + $0x218] sm:$0xff]
        %v641 = vld [vmem:[#allocation5 + $0x220] sm:$0xff]
        %v642 = vld [vmem:[#allocation5 + $0x228] sm:$0xff]
        %v643 = vld [vmem:[#allocation5 + $0x230] sm:$0xff]
        %v644 = vld [vmem:[#allocation5 + $0x238] sm:$0xff]
        %v645 = vld [vmem:[#allocation5 + $0x240] sm:$0xff]
        %v646 = vld [vmem:[#allocation5 + $0x248] sm:$0xff]
        %v647 = vld [vmem:[#allocation5 + $0x250] sm:$0xff]
        %v648 = vld [vmem:[#allocation5 + $0x258] sm:$0xff]
        %v649 = vld [vmem:[#allocation5 + $0x260] sm:$0xff]
        %v650 = vld [vmem:[#allocation5 + $0x268] sm:$0xff]
        %v651 = vld [vmem:[#allocation5 + $0x270] sm:$0xff]
        %v652 = vld [vmem:[#allocation5 + $0x278] sm:$0xff]
        %v653 = vld [vmem:[#allocation5 + $0x280] sm:$0xff]
        %v654 = vld [vmem:[#allocation5 + $0x288] sm:$0xff]
        %v655 = vld [vmem:[#allocation5 + $0x290] sm:$0xff]
        %v656 = vld [vmem:[#allocation5 + $0x298] sm:$0xff]
        %v657 = vld [vmem:[#allocation5 + $0x2a0] sm:$0xff]
        %v658 = vld [vmem:[#allocation5 + $0x2a8] sm:$0xff]
        %v659 = vld [vmem:[#allocation5 + $0x2b0] sm:$0xff]
        %v660 = vld [vmem:[#allocation5 + $0x2b8] sm:$0xff]
        %v661 = vld [vmem:[#allocation5 + $0x2c0] sm:$0xff]
        %v662 = vld [vmem:[#allocation5 + $0x2c8] sm:$0xff]
        %v663 = vld [vmem:[#allocation5 + $0x2d0] sm:$0xff]
        %v664 = vld [vmem:[#allocation5 + $0x2d8] sm:$0xff]
        %v665 = vld [vmem:[#allocation5 + $0x2e0] sm:$0xff]
        %v666 = vld [vmem:[#allocation5 + $0x2e8] sm:$0xff]
        %v667 = vld [vmem:[#allocation5 + $0x2f0] sm:$0xff]
        %v668 = vld [vmem:[#allocation5 + $0x2f8] sm:$0xff]
        %v669 = vld [vmem:[#allocation5 + $0x300] sm:$0xff]
        %v670 = vld [vmem:[#allocation5 + $0x308] sm:$0xff]
        %v671 = vld [vmem:[#allocation5 + $0x310] sm:$0xff]
        %v672 = vld [vmem:[#allocation5 + $0x318] sm:$0xff]
        %v673 = vld [vmem:[#allocation5 + $0x320] sm:$0xff]
        %v674 = vld [vmem:[#allocation5 + $0x328] sm:$0xff]
        %v675 = vld [vmem:[#allocation5 + $0x330] sm:$0xff]
        %v676 = vld [vmem:[#allocation5 + $0x338] sm:$0xff]
        %v677 = vld [vmem:[#allocation5 + $0x340] sm:$0xff]
        %v678 = vld [vmem:[#allocation5 + $0x348] sm:$0xff]
        %v679 = vld [vmem:[#allocation5 + $0x350] sm:$0xff]
        %v680 = vld [vmem:[#allocation5 + $0x358] sm:$0xff]
        %v681 = vld [vmem:[#allocation5 + $0x360] sm:$0xff]
        %v682 = vld [vmem:[#allocation5 + $0x368] sm:$0xff]
        %v683 = vld [vmem:[#allocation5 + $0x370] sm:$0xff]
        %v684 = vld [vmem:[#allocation5 + $0x378] sm:$0xff]
        %v685 = vld [vmem:[#allocation5 + $0x380] sm:$0xff]
        %v686 = vld [vmem:[#allocation5 + $0x388] sm:$0xff]
        %v687 = vld [vmem:[#allocation5 + $0x390] sm:$0xff]
        %v688 = vld [vmem:[#allocation5 + $0x398] sm:$0xff]
        %v689 = vld [vmem:[#allocation5 + $0x3a0] sm:$0xff]
        %v690 = vld [vmem:[#allocation5 + $0x3a8] sm:$0xff]
        %v691 = vld [vmem:[#allocation5 + $0x3b0] sm:$0xff]
        %v692 = vld [vmem:[#allocation5 + $0x3b8] sm:$0xff]
        %v693 = vld [vmem:[#allocation5 + $0x3c0] sm:$0xff]
        %v694 = vld [vmem:[#allocation5 + $0x3c8] sm:$0xff]
        %v695 = vld [vmem:[#allocation5 + $0x3d0] sm:$0xff]
        %v696 = vld [vmem:[#allocation5 + $0x3d8] sm:$0xff]
        %v697 = vld [vmem:[#allocation5 + $0x3e0] sm:$0xff]
        %v698 = vld [vmem:[#allocation5 + $0x3e8] sm:$0xff]
        %v699 = vld [vmem:[#allocation5 + $0x3f0] sm:$0xff]
        %v700 = vld [vmem:[#allocation5 + $0x3f8] sm:$0xff]
        %v701 = vld [vmem:[#allocation5 + $0x400] sm:$0xff]
        %v702 = vld [vmem:[#allocation5 + $0x408] sm:$0xff]
        %v703 = vld [vmem:[#allocation5 + $0x410] sm:$0xff]
        %v704 = vld [vmem:[#allocation5 + $0x418] sm:$0xff]
        %v705 = vld [vmem:[#allocation5 + $0x420] sm:$0xff]
        %v706 = vld [vmem:[#allocation5 + $0x428] sm:$0xff]
        %v707 = vld [vmem:[#allocation5 + $0x430] sm:$0xff]
        %v708 = vld [vmem:[#allocation5 + $0x438] sm:$0xff]
        %v709 = vld [vmem:[#allocation5 + $0x440] sm:$0xff]
        %v710 = vld [vmem:[#allocation5 + $0x448] sm:$0xff]
        %v711 = vld [vmem:[#allocation5 + $0x450] sm:$0xff]
        %v712 = vld [vmem:[#allocation5 + $0x458] sm:$0xff]
        %v713 = vld [vmem:[#allocation5 + $0x460] sm:$0xff]
        %v714 = vld [vmem:[#allocation5 + $0x468] sm:$0xff]
        %v715 = vld [vmem:[#allocation5 + $0x470] sm:$0xff]
        %v716 = vld [vmem:[#allocation5 + $0x478] sm:$0xff]
        %v717 = vld [vmem:[#allocation5 + $0x480] sm:$0xff]
        %v718 = vld [vmem:[#allocation5 + $0x488] sm:$0xff]
        %v719 = vld [vmem:[#allocation5 + $0x490] sm:$0xff]
        %v720 = vld [vmem:[#allocation5 + $0x498] sm:$0xff]
        %v721 = vld [vmem:[#allocation5 + $0x4a0] sm:$0xff]
        %v722 = vld [vmem:[#allocation5 + $0x4a8] sm:$0xff]
        %v723 = vld [vmem:[#allocation5 + $0x4b0] sm:$0xff]
        %v724 = vld [vmem:[#allocation5 + $0x4b8] sm:$0xff]
        %v725 = vld [vmem:[#allocation5 + $0x4c0] sm:$0xff]
        %v726 = vld [vmem:[#allocation5 + $0x4c8] sm:$0xff]
        %v727 = vld [vmem:[#allocation5 + $0x4d0] sm:$0xff]
        %v728 = vld [vmem:[#allocation5 + $0x4d8] sm:$0xff]
        %v729 = vld [vmem:[#allocation5 + $0x4e0] sm:$0xff]
        %v730 = vld [vmem:[#allocation5 + $0x4e8] sm:$0xff]
        %v731 = vld [vmem:[#allocation5 + $0x4f0] sm:$0xff]
        %v732 = vld [vmem:[#allocation5 + $0x4f8] sm:$0xff]
        %v733 = vld [vmem:[#allocation5 + $0x500] sm:$0xff]
        %v734 = vld [vmem:[#allocation5 + $0x508] sm:$0xff]
        %v735 = vld [vmem:[#allocation5 + $0x510] sm:$0xff]
        %v736 = vld [vmem:[#allocation5 + $0x518] sm:$0xff]
        %v737 = vld [vmem:[#allocation5 + $0x520] sm:$0xff]
        %v738 = vld [vmem:[#allocation5 + $0x528] sm:$0xff]
        %v739 = vld [vmem:[#allocation5 + $0x530] sm:$0xff]
        %v740 = vld [vmem:[#allocation5 + $0x538] sm:$0xff]
        %v741 = vld [vmem:[#allocation5 + $0x540] sm:$0xff]
        %v742 = vld [vmem:[#allocation5 + $0x548] sm:$0xff]
        %v743 = vld [vmem:[#allocation5 + $0x550] sm:$0xff]
        %v744 = vld [vmem:[#allocation5 + $0x558] sm:$0xff]
        %v745 = vld [vmem:[#allocation5 + $0x560] sm:$0xff]
        %v746 = vld [vmem:[#allocation5 + $0x568] sm:$0xff]
        %v747 = vld [vmem:[#allocation5 + $0x570] sm:$0xff]
        %v748 = vld [vmem:[#allocation5 + $0x578] sm:$0xff]
        %v749 = vld [vmem:[#allocation5 + $0x580] sm:$0xff]
        %v750 = vld [vmem:[#allocation5 + $0x588] sm:$0xff]
        %v751 = vld [vmem:[#allocation5 + $0x590] sm:$0xff]
        %v752 = vld [vmem:[#allocation5 + $0x598] sm:$0xff]
        %v753 = vld [vmem:[#allocation5 + $0x5a0] sm:$0xff]
        %v754 = vld [vmem:[#allocation5 + $0x5a8] sm:$0xff]
        %v755 = vld [vmem:[#allocation5 + $0x5b0] sm:$0xff]
        %v756 = vld [vmem:[#allocation5 + $0x5b8] sm:$0xff]
        %v757 = vld [vmem:[#allocation5 + $0x5c0] sm:$0xff]
        %v758 = vld [vmem:[#allocation5 + $0x5c8] sm:$0xff]
        %v759 = vld [vmem:[#allocation5 + $0x5d0] sm:$0xff]
        %v760 = vld [vmem:[#allocation5 + $0x5d8] sm:$0xff]
        %v761 = vld [vmem:[#allocation5 + $0x5e0] sm:$0xff]
        %v762 = vld [vmem:[#allocation5 + $0x5e8] sm:$0xff]
        %v763 = vld [vmem:[#allocation5 + $0x5f0] sm:$0xff]
        %v764 = vld [vmem:[#allocation5 + $0x5f8] sm:$0xff]
        %v765 = vld [vmem:[#allocation5 + $0x600] sm:$0xff]
        %v766 = vld [vmem:[#allocation5 + $0x608] sm:$0xff]
        %v767 = vld [vmem:[#allocation5 + $0x610] sm:$0xff]
        %v768 = vld [vmem:[#allocation5 + $0x618] sm:$0xff]
        %v769 = vld [vmem:[#allocation5 + $0x620] sm:$0xff]
        %v770 = vld [vmem:[#allocation5 + $0x628] sm:$0xff]
        %v771 = vld [vmem:[#allocation5 + $0x630] sm:$0xff]
        %v772 = vld [vmem:[#allocation5 + $0x638] sm:$0xff]
        %v773 = vld [vmem:[#allocation5 + $0x640] sm:$0xff]
        %v774 = vld [vmem:[#allocation5 + $0x648] sm:$0xff]
        %v775 = vld [vmem:[#allocation5 + $0x650] sm:$0xff]
        %v776 = vld [vmem:[#allocation5 + $0x658] sm:$0xff]
        %v777 = vld [vmem:[#allocation5 + $0x660] sm:$0xff]
        %v778 = vld [vmem:[#allocation5 + $0x668] sm:$0xff]
        %v779 = vld [vmem:[#allocation5 + $0x670] sm:$0xff]
        %v780 = vld [vmem:[#allocation5 + $0x678] sm:$0xff]
        %v781 = vld [vmem:[#allocation5 + $0x680] sm:$0xff]
        %v782 = vld [vmem:[#allocation5 + $0x688] sm:$0xff]
        %v783 = vld [vmem:[#allocation5 + $0x690] sm:$0xff]
        %v784 = vld [vmem:[#allocation5 + $0x698] sm:$0xff]
        %v785 = vld [vmem:[#allocation5 + $0x6a0] sm:$0xff]
        %v786 = vld [vmem:[#allocation5 + $0x6a8] sm:$0xff]
        %v787 = vld [vmem:[#allocation5 + $0x6b0] sm:$0xff]
        %v788 = vld [vmem:[#allocation5 + $0x6b8] sm:$0xff]
        %v789 = vld [vmem:[#allocation5 + $0x6c0] sm:$0xff]
        %v790 = vld [vmem:[#allocation5 + $0x6c8] sm:$0xff]
        %v791 = vld [vmem:[#allocation5 + $0x6d0] sm:$0xff]
        %v792 = vld [vmem:[#allocation5 + $0x6d8] sm:$0xff]
        %v793 = vld [vmem:[#allocation5 + $0x6e0] sm:$0xff]
        %v794 = vld [vmem:[#allocation5 + $0x6e8] sm:$0xff]
        %v795 = vld [vmem:[#allocation5 + $0x6f0] sm:$0xff]
        %v796 = vld [vmem:[#allocation5 + $0x6f8] sm:$0xff]
        %v797 = vld [vmem:[#allocation5 + $0x700] sm:$0xff]
        %v798 = vld [vmem:[#allocation5 + $0x708] sm:$0xff]
        %v799 = vld [vmem:[#allocation5 + $0x710] sm:$0xff]
        %v800 = vld [vmem:[#allocation5 + $0x718] sm:$0xff]
        %v801 = vld [vmem:[#allocation5 + $0x720] sm:$0xff]
        %v802 = vld [vmem:[#allocation5 + $0x728] sm:$0xff]
        %v803 = vld [vmem:[#allocation5 + $0x730] sm:$0xff]
        %v804 = vld [vmem:[#allocation5 + $0x738] sm:$0xff]
        %v805 = vld [vmem:[#allocation5 + $0x740] sm:$0xff]
        %v806 = vld [vmem:[#allocation5 + $0x748] sm:$0xff]
        %v807 = vld [vmem:[#allocation5 + $0x750] sm:$0xff]
        %v808 = vld [vmem:[#allocation5 + $0x758] sm:$0xff]
        %v809 = vld [vmem:[#allocation5 + $0x760] sm:$0xff]
        %v810 = vld [vmem:[#allocation5 + $0x768] sm:$0xff]
        %v811 = vld [vmem:[#allocation5 + $0x770] sm:$0xff]
        %v812 = vld [vmem:[#allocation5 + $0x778] sm:$0xff]
        %v813 = vld [vmem:[#allocation5 + $0x780] sm:$0xff]
        %v814 = vld [vmem:[#allocation5 + $0x788] sm:$0xff]
        %v815 = vld [vmem:[#allocation5 + $0x790] sm:$0xff]
        %v816 = vld [vmem:[#allocation5 + $0x798] sm:$0xff]
        %v817 = vld [vmem:[#allocation5 + $0x7a0] sm:$0xff]
        %v818 = vld [vmem:[#allocation5 + $0x7a8] sm:$0xff]
        %v819 = vld [vmem:[#allocation5 + $0x7b0] sm:$0xff]
        %v820 = vld [vmem:[#allocation5 + $0x7b8] sm:$0xff]
        %v821 = vld [vmem:[#allocation5 + $0x7c0] sm:$0xff]
        %v822 = vld [vmem:[#allocation5 + $0x7c8] sm:$0xff]
        %v823 = vld [vmem:[#allocation5 + $0x7d0] sm:$0xff]
        %v824 = vld [vmem:[#allocation5 + $0x7d8] sm:$0xff]
        %v825 = vld [vmem:[#allocation5 + $0x7e0] sm:$0xff]
        %v826 = vld [vmem:[#allocation5 + $0x7e8] sm:$0xff]
        %v827 = vld [vmem:[#allocation5 + $0x7f0] sm:$0xff]
        %v828 = vld [vmem:[#allocation5 + $0x7f8] sm:$0xff]
        %v829 = vld [vmem:[#allocation5 + $0x800] sm:$0xff]
        %v830 = vld [vmem:[#allocation5 + $0x808] sm:$0xff]
        %v831 = vld [vmem:[#allocation5 + $0x810] sm:$0xff]
        %v832 = vld [vmem:[#allocation5 + $0x818] sm:$0xff]
        %v833 = vld [vmem:[#allocation5 + $0x820] sm:$0xff]
        %v834 = vld [vmem:[#allocation5 + $0x828] sm:$0xff]
        %v835 = vld [vmem:[#allocation5 + $0x830] sm:$0xff]
        %v836 = vld [vmem:[#allocation5 + $0x838] sm:$0xff]
        %v837 = vld [vmem:[#allocation5 + $0x840] sm:$0xff]
        %v838 = vld [vmem:[#allocation5 + $0x848] sm:$0xff]
        %v839 = vld [vmem:[#allocation5 + $0x850] sm:$0xff]
        %v840 = vld [vmem:[#allocation5 + $0x858] sm:$0xff]
        %v841 = vld [vmem:[#allocation5 + $0x860] sm:$0xff]
        %v842 = vld [vmem:[#allocation5 + $0x868] sm:$0xff]
        %v843 = vld [vmem:[#allocation5 + $0x870] sm:$0xff]
        %v844 = vld [vmem:[#allocation5 + $0x878] sm:$0xff]
        %v845 = vld [vmem:[#allocation5 + $0x880] sm:$0xff]
        %v846 = vld [vmem:[#allocation5 + $0x888] sm:$0xff]
        %v847 = vld [vmem:[#allocation5 + $0x890] sm:$0xff]
        %v848 = vld [vmem:[#allocation5 + $0x898] sm:$0xff]
        %v849 = vld [vmem:[#allocation5 + $0x8a0] sm:$0xff]
        %v850 = vld [vmem:[#allocation5 + $0x8a8] sm:$0xff]
        %v851 = vld [vmem:[#allocation5 + $0x8b0] sm:$0xff]
        %v852 = vld [vmem:[#allocation5 + $0x8b8] sm:$0xff]
        %v853 = vld [vmem:[#allocation5 + $0x8c0] sm:$0xff]
        %v854 = vld [vmem:[#allocation5 + $0x8c8] sm:$0xff]
        %v855 = vld [vmem:[#allocation5 + $0x8d0] sm:$0xff]
        %v856 = vld [vmem:[#allocation5 + $0x8d8] sm:$0xff]
        %v857 = vld [vmem:[#allocation5 + $0x8e0] sm:$0xff]
        %v858 = vld [vmem:[#allocation5 + $0x8e8] sm:$0xff]
        %v859 = vld [vmem:[#allocation5 + $0x8f0] sm:$0xff]
        %v860 = vld [vmem:[#allocation5 + $0x8f8] sm:$0xff]
        %v861 = vld [vmem:[#allocation5 + $0x900] sm:$0xff]
        %v862 = vld [vmem:[#allocation5 + $0x908] sm:$0xff]
        %v863 = vld [vmem:[#allocation5 + $0x910] sm:$0xff]
        %v864 = vld [vmem:[#allocation5 + $0x918] sm:$0xff]
        %v865 = vld [vmem:[#allocation5 + $0x920] sm:$0xff]
        %v866 = vld [vmem:[#allocation5 + $0x928] sm:$0xff]
        %v867 = vld [vmem:[#allocation5 + $0x930] sm:$0xff]
        %v868 = vld [vmem:[#allocation5 + $0x938] sm:$0xff]
        %v869 = vld [vmem:[#allocation5 + $0x940] sm:$0xff]
        %v870 = vld [vmem:[#allocation5 + $0x948] sm:$0xff]
        %v871 = vld [vmem:[#allocation5 + $0x950] sm:$0xff]
        %v872 = vld [vmem:[#allocation5 + $0x958] sm:$0xff]
        %v873 = vld [vmem:[#allocation5 + $0x960] sm:$0xff]
        %v874 = vld [vmem:[#allocation5 + $0x968] sm:$0xff]
        %v875 = vld [vmem:[#allocation5 + $0x970] sm:$0xff]
        %v876 = vld [vmem:[#allocation5 + $0x978] sm:$0xff]
        %v877 = vld [vmem:[#allocation5 + $0x980] sm:$0xff]
        %v878 = vld [vmem:[#allocation5 + $0x988] sm:$0xff]
        %v879 = vld [vmem:[#allocation5 + $0x990] sm:$0xff]
        %v880 = vld [vmem:[#allocation5 + $0x998] sm:$0xff]
        %v881 = vld [vmem:[#allocation5 + $0x9a0] sm:$0xff]
        %v882 = vld [vmem:[#allocation5 + $0x9a8] sm:$0xff]
        %v883 = vld [vmem:[#allocation5 + $0x9b0] sm:$0xff]
        %v884 = vld [vmem:[#allocation5 + $0x9b8] sm:$0xff]
        %v885 = vld [vmem:[#allocation5 + $0x9c0] sm:$0xff]
        %v886 = vld [vmem:[#allocation5 + $0x9c8] sm:$0xff]
        %v887 = vld [vmem:[#allocation5 + $0x9d0] sm:$0xff]
        %v888 = vld [vmem:[#allocation5 + $0x9d8] sm:$0xff]
        %v889 = vld [vmem:[#allocation5 + $0x9e0] sm:$0xff]
        %v890 = vld [vmem:[#allocation5 + $0x9e8] sm:$0xff]
        %v891 = vld [vmem:[#allocation5 + $0x9f0] sm:$0xff]
        %v892 = vld [vmem:[#allocation5 + $0x9f8] sm:$0xff]
        %v893 = vld [vmem:[#allocation5 + $0xa00] sm:$0xff]
        %v894 = vld [vmem:[#allocation5 + $0xa08] sm:$0xff]
        %v895 = vld [vmem:[#allocation5 + $0xa10] sm:$0xff]
        %v896 = vld [vmem:[#allocation5 + $0xa18] sm:$0xff]
        %v897 = vld [vmem:[#allocation5 + $0xa20] sm:$0xff]
        %v898 = vld [vmem:[#allocation5 + $0xa28] sm:$0xff]
        %v899 = vld [vmem:[#allocation5 + $0xa30] sm:$0xff]
        %v900 = vld [vmem:[#allocation5 + $0xa38] sm:$0xff]
        %v901 = vld [vmem:[#allocation5 + $0xa40] sm:$0xff]
        %v902 = vld [vmem:[#allocation5 + $0xa48] sm:$0xff]
        %v903 = vld [vmem:[#allocation5 + $0xa50] sm:$0xff]
        %v904 = vld [vmem:[#allocation5 + $0xa58] sm:$0xff]
        %v905 = vld [vmem:[#allocation5 + $0xa60] sm:$0xff]
        %v906 = vld [vmem:[#allocation5 + $0xa68] sm:$0xff]
        %v907 = vld [vmem:[#allocation5 + $0xa70] sm:$0xff]
        %v908 = vld [vmem:[#allocation5 + $0xa78] sm:$0xff]
        %v909 = vld [vmem:[#allocation5 + $0xa80] sm:$0xff]
        %v910 = vld [vmem:[#allocation5 + $0xa88] sm:$0xff]
        %v911 = vld [vmem:[#allocation5 + $0xa90] sm:$0xff]
        %v912 = vld [vmem:[#allocation5 + $0xa98] sm:$0xff]
        %v913 = vld [vmem:[#allocation5 + $0xaa0] sm:$0xff]
        %v914 = vld [vmem:[#allocation5 + $0xaa8] sm:$0xff]
        %v915 = vld [vmem:[#allocation5 + $0xab0] sm:$0xff]
        %v916 = vld [vmem:[#allocation5 + $0xab8] sm:$0xff]
        %v917 = vld [vmem:[#allocation5 + $0xac0] sm:$0xff]
        %v918 = vld [vmem:[#allocation5 + $0xac8] sm:$0xff]
        %v919 = vld [vmem:[#allocation5 + $0xad0] sm:$0xff]
        %v920 = vld [vmem:[#allocation5 + $0xad8] sm:$0xff]
        %v921 = vld [vmem:[#allocation5 + $0xae0] sm:$0xff]
        %v922 = vld [vmem:[#allocation5 + $0xae8] sm:$0xff]
        %v923 = vld [vmem:[#allocation5 + $0xaf0] sm:$0xff]
        %v924 = vld [vmem:[#allocation5 + $0xaf8] sm:$0xff]
        %v925 = vld [vmem:[#allocation5 + $0xb00] sm:$0xff]
        %v926 = vld [vmem:[#allocation5 + $0xb08] sm:$0xff]
        %v927 = vld [vmem:[#allocation5 + $0xb10] sm:$0xff]
        %v928 = vld [vmem:[#allocation5 + $0xb18] sm:$0xff]
        %v929 = vld [vmem:[#allocation5 + $0xb20] sm:$0xff]
        %v930 = vld [vmem:[#allocation5 + $0xb28] sm:$0xff]
        %v931 = vld [vmem:[#allocation5 + $0xb30] sm:$0xff]
        %v932 = vld [vmem:[#allocation5 + $0xb38] sm:$0xff]
        %v933 = vld [vmem:[#allocation5 + $0xb40] sm:$0xff]
        %v934 = vld [vmem:[#allocation5 + $0xb48] sm:$0xff]
        %v935 = vld [vmem:[#allocation5 + $0xb50] sm:$0xff]
        %v936 = vld [vmem:[#allocation5 + $0xb58] sm:$0xff]
        %v937 = vld [vmem:[#allocation5 + $0xb60] sm:$0xff]
        %v938 = vld [vmem:[#allocation5 + $0xb68] sm:$0xff]
        %v939 = vld [vmem:[#allocation5 + $0xb70] sm:$0xff]
        %v940 = vld [vmem:[#allocation5 + $0xb78] sm:$0xff]
        %v941 = vld [vmem:[#allocation5 + $0xb80] sm:$0xff]
        %v942 = vld [vmem:[#allocation5 + $0xb88] sm:$0xff]
        %v943 = vld [vmem:[#allocation5 + $0xb90] sm:$0xff]
        %v944 = vld [vmem:[#allocation5 + $0xb98] sm:$0xff]
        %v945 = vld [vmem:[#allocation5 + $0xba0] sm:$0xff]
        %v946 = vld [vmem:[#allocation5 + $0xba8] sm:$0xff]
        %v947 = vld [vmem:[#allocation5 + $0xbb0] sm:$0xff]
        %v948 = vld [vmem:[#allocation5 + $0xbb8] sm:$0xff]
        %v949 = vld [vmem:[#allocation5 + $0xbc0] sm:$0xff]
        %v950 = vld [vmem:[#allocation5 + $0xbc8] sm:$0xff]
        %v951 = vld [vmem:[#allocation5 + $0xbd0] sm:$0xff]
        %v952 = vld [vmem:[#allocation5 + $0xbd8] sm:$0xff]
        %v953 = vld [vmem:[#allocation5 + $0xbe0] sm:$0xff]
        %v954 = vld [vmem:[#allocation5 + $0xbe8] sm:$0xff]
        %v955 = vld [vmem:[#allocation5 + $0xbf0] sm:$0xff]
        %v956 = vld [vmem:[#allocation5 + $0xbf8] sm:$0xff]
        %v957 = vld [vmem:[#allocation5 + $0xc00] sm:$0xff]
        %v958 = vld [vmem:[#allocation5 + $0xc08] sm:$0xff]
        %v959 = vld [vmem:[#allocation5 + $0xc10] sm:$0xff]
        %v960 = vld [vmem:[#allocation5 + $0xc18] sm:$0xff]
        %v961 = vld [vmem:[#allocation5 + $0xc20] sm:$0xff]
        %v962 = vld [vmem:[#allocation5 + $0xc28] sm:$0xff]
        %v963 = vld [vmem:[#allocation5 + $0xc30] sm:$0xff]
        %v964 = vld [vmem:[#allocation5 + $0xc38] sm:$0xff]
        %v965 = vld [vmem:[#allocation7] sm:$0xf]
        %v967 = vlaneseq
        %v968 = vshrl.u32 %v967, 7
        %v969 = vsub.s32 0, %v968
        %v970 = vrot.slane %v965, %v969
        %v971 = vlaneseq
        %v972 = vshrl.u32 %v971, 7
        %v973 = vsub.s32 1, %v972
        %v974 = vrot.slane %v965, %v973
        %v975 = vlaneseq
        %v976 = vshrl.u32 %v975, 7
        %v977 = vsub.s32 2, %v976
        %v978 = vrot.slane %v965, %v977
        %v979 = vlaneseq
        %v980 = vshrl.u32 %v979, 7
        %v981 = vsub.s32 3, %v980
        %v982 = vrot.slane %v965, %v981
        %vm987 = vcmask 130048
        %v989 = vsel %vm987, %v565, 0
        %v992 = vsel %vm987, %v572, 0
        %994 = vmatprep.subr.mxu0 %v574
        %995 = vmatpush1.msra.mxu0 %v573
        %996 = vmatprep.subr.mxu0 %v578
        %997 = vmatpush1.msra.mxu0 %v577
        %998 = vmatprep.subr.mxu0 %v582
        %999 = vmatpush1.msra.mxu0 %v581
        %1000 = vmatprep.subr.mxu0 %v586
        %1001 = vmatpush1.msra.mxu0 %v585
        %1002 = vmatprep.subr.mxu0 %v590
        %1003 = vmatpush1.msra.mxu0 %v589
        %1004 = vmatprep.subr.mxu0 %v594
        %1005 = vmatpush1.msra.mxu0 %v593
        %1006 = vmatprep.subr.mxu0 %v598
        %1007 = vmatpush1.msra.mxu0 %v597
        %1008 = vmatprep.subr.mxu0 %v602
        %1009 = vmatpush1.msra.mxu0 %v601
        %1010 = vmatprep.subr.mxu0 %v606
        %1011 = vmatpush1.msra.mxu0 %v605
        %1012 = vmatprep.subr.mxu0 %v610
        %1013 = vmatpush1.msra.mxu0 %v609
        %1014 = vmatprep.subr.mxu0 %v614
        %1015 = vmatpush1.msra.mxu0 %v613
        %1016 = vmatprep.subr.mxu0 %v618
        %1017 = vmatpush1.msra.mxu0 %v617
        %1018 = vmatprep.subr.mxu0 %v622
        %1019 = vmatpush1.msra.mxu0 %v621
        %1020 = vmatprep.subr.mxu0 %v626
        %1021 = vmatpush1.msra.mxu0 %v625
        %1022 = vmatprep.subr.mxu0 %v630
        %1023 = vmatpush1.msra.mxu0 %v629
        %1024 = vmatprep.subr.mxu0 %v634
        %1025 = vmatpush1.msra.mxu0 %v633
        %1026 = vmatprep.subr.mxu0 %v638
        %1027 = vmatpush1.msra.mxu0 %v637
        %1028 = vmatprep.subr.mxu0 %v642
        %1029 = vmatpush1.msra.mxu0 %v641
        %1030 = vmatprep.subr.mxu0 %v646
        %1031 = vmatpush1.msra.mxu0 %v645
        %1032 = vmatprep.subr.mxu0 %v650
        %1033 = vmatpush1.msra.mxu0 %v649
        %1034 = vmatprep.subr.mxu0 %v654
        %1035 = vmatpush1.msra.mxu0 %v653
        %1036 = vmatprep.subr.mxu0 %v658
        %1037 = vmatpush1.msra.mxu0 %v657
        %1038 = vmatprep.subr.mxu0 %v662
        %1039 = vmatpush1.msra.mxu0 %v661
        %1040 = vmatprep.subr.mxu0 %v666
        %1041 = vmatpush1.msra.mxu0 %v665
        %1042 = vmatprep.subr.mxu0 %v670
        %1043 = vmatpush1.msra.mxu0 %v669
        %1044 = vmatprep.subr.mxu0 %v674
        %1045 = vmatpush1.msra.mxu0 %v673
        %1046 = vmatprep.subr.mxu0 %v678
        %1047 = vmatpush1.msra.mxu0 %v677
        %1048 = vmatprep.subr.mxu0 %v682
        %1049 = vmatpush1.msra.mxu0 %v681
        %1050 = vmatprep.subr.mxu0 %v686
        %1051 = vmatpush1.msra.mxu0 %v685
        %1052 = vmatprep.subr.mxu0 %v690
        %1053 = vmatpush1.msra.mxu0 %v689
        %1054 = vmatprep.subr.mxu0 %v694
        %1055 = vmatpush1.msra.mxu0 %v693
        %1056 = vmatprep.subr.mxu0 %v698
        %1057 = vmatpush1.msra.mxu0 %v697
        %1058 = vmatprep.mubr.f32.mxu0 %v560
        %1059 = vmatmul.mubr.f32.gmra.mrb[0].mxu0 %v559
        %v1060 = vpop.f32.mrb[0].mxu0
        %v1061 = vadd.f32 %v970, %v1060
        %v1062 = vpop.f32.mrb[0].mxu0
        %v1063 = vadd.f32 %v974, %v1062
        %1064 = vmatprep.mubr.f32.mxu0 %v567
        %1065 = vmatmul.mubr.f32.gmra.mrb[0].mxu0 %v566
        %v1066 = vpop.f32.mrb[0].mxu0
        %v1067 = vadd.f32 %v970, %v1066
        %v1068 = vpop.f32.mrb[0].mxu0
        %v1069 = vadd.f32 %v974, %v1068
        %1070 = vdwg.mxu0
        %1071 = vmatprep.subr.mxu0 %v702
        %1072 = vmatpush1.msra.mxu0 %v701
        %1073 = vmatprep.subr.mxu0 %v706
        %1074 = vmatpush1.msra.mxu0 %v705
        %1075 = vmatprep.subr.mxu0 %v710
        %1076 = vmatpush1.msra.mxu0 %v709
        %1077 = vmatprep.subr.mxu0 %v714
        %1078 = vmatpush1.msra.mxu0 %v713
        %1079 = vmatprep.subr.mxu0 %v718
        %1080 = vmatpush1.msra.mxu0 %v717
        %1081 = vmatprep.subr.mxu0 %v722
        %1082 = vmatpush1.msra.mxu0 %v721
        %1083 = vmatprep.subr.mxu0 %v726
        %1084 = vmatpush1.msra.mxu0 %v725
        %1085 = vmatprep.subr.mxu0 %v730
        %1086 = vmatpush1.msra.mxu0 %v729
        %1087 = vmatprep.subr.mxu0 %v734
        %1088 = vmatpush1.msra.mxu0 %v733
        %1089 = vmatprep.subr.mxu0 %v738
        %1090 = vmatpush1.msra.mxu0 %v737
        %1091 = vmatprep.subr.mxu0 %v742
        %1092 = vmatpush1.msra.mxu0 %v741
        %1093 = vmatprep.subr.mxu0 %v746
        %1094 = vmatpush1.msra.mxu0 %v745
        %1095 = vmatprep.subr.mxu0 %v750
        %1096 = vmatpush1.msra.mxu0 %v749
        %1097 = vmatprep.subr.mxu0 %v754
        %1098 = vmatpush1.msra.mxu0 %v753
        %1099 = vmatprep.subr.mxu0 %v758
        %1100 = vmatpush1.msra.mxu0 %v757
        %1101 = vmatprep.subr.mxu0 %v762
        %1102 = vmatpush1.msra.mxu0 %v761
        %1103 = vmatprep.subr.mxu0 %v766
        %1104 = vmatpush1.msra.mxu0 %v765
        %1105 = vmatprep.subr.mxu0 %v770
        %1106 = vmatpush1.msra.mxu0 %v769
        %1107 = vmatprep.subr.mxu0 %v774
        %1108 = vmatpush1.msra.mxu0 %v773
        %1109 = vmatprep.subr.mxu0 %v778
        %1110 = vmatpush1.msra.mxu0 %v777
        %1111 = vmatprep.subr.mxu0 %v782
        %1112 = vmatpush1.msra.mxu0 %v781
        %1113 = vmatprep.subr.mxu0 %v786
        %1114 = vmatpush1.msra.mxu0 %v785
        %1115 = vmatprep.subr.mxu0 %v790
        %1116 = vmatpush1.msra.mxu0 %v789
        %1117 = vmatprep.subr.mxu0 %v794
        %1118 = vmatpush1.msra.mxu0 %v793
        %1119 = vmatprep.subr.mxu0 %v798
        %1120 = vmatpush1.msra.mxu0 %v797
        %1121 = vmatprep.subr.mxu0 %v802
        %1122 = vmatpush1.msra.mxu0 %v801
        %1123 = vmatprep.subr.mxu0 %v806
        %1124 = vmatpush1.msra.mxu0 %v805
        %1125 = vmatprep.subr.mxu0 %v810
        %1126 = vmatpush1.msra.mxu0 %v809
        %1127 = vmatprep.subr.mxu0 %v814
        %1128 = vmatpush1.msra.mxu0 %v813
        %1129 = vmatprep.subr.mxu0 %v818
        %1130 = vmatpush1.msra.mxu0 %v817
        %1131 = vmatprep.subr.mxu0 %v822
        %1132 = vmatpush1.msra.mxu0 %v821
        %1133 = vmatprep.subr.mxu0 %v826
        %1134 = vmatpush1.msra.mxu0 %v825
        %1135 = vmatprep.mubr.f32.mxu0 %v562
        %1136 = vmatmul.mubr.f32.gmra.mrb[0].mxu0 %v561
        %v1137 = vpop.f32.mrb[0].mxu0
        %v1138 = vadd.f32 %v1061, %v1137
        %v1139 = vpop.f32.mrb[0].mxu0
        %v1140 = vadd.f32 %v1063, %v1139
        %1141 = vmatprep.mubr.f32.mxu0 %v569
        %1142 = vmatmul.mubr.f32.gmra.mrb[0].mxu0 %v568
        %v1143 = vpop.f32.mrb[0].mxu0
        %v1144 = vadd.f32 %v1067, %v1143
        %v1145 = vpop.f32.mrb[0].mxu0
        %v1146 = vadd.f32 %v1069, %v1145
        %1147 = vdwg.mxu0
        %1148 = vmatprep.subr.mxu0 %v830
        %1149 = vmatpush1.msra.mxu0 %v829
        %1150 = vmatprep.subr.mxu0 %v834
        %1151 = vmatpush1.msra.mxu0 %v833
        %1152 = vmatprep.subr.mxu0 %v838
        %1153 = vmatpush1.msra.mxu0 %v837
        %1154 = vmatprep.subr.mxu0 %v842
        %1155 = vmatpush1.msra.mxu0 %v841
        %1156 = vmatprep.subr.mxu0 %v846
        %1157 = vmatpush1.msra.mxu0 %v845
        %1158 = vmatprep.subr.mxu0 %v850
        %1159 = vmatpush1.msra.mxu0 %v849
        %1160 = vmatprep.subr.mxu0 %v854
        %1161 = vmatpush1.msra.mxu0 %v853
        %1162 = vmatprep.subr.mxu0 %v858
        %1163 = vmatpush1.msra.mxu0 %v857
        %1164 = vmatprep.subr.mxu0 %v862
        %1165 = vmatpush1.msra.mxu0 %v861
        %1166 = vmatprep.subr.mxu0 %v866
        %1167 = vmatpush1.msra.mxu0 %v865
        %1168 = vmatprep.subr.mxu0 %v870
        %1169 = vmatpush1.msra.mxu0 %v869
        %1170 = vmatprep.subr.mxu0 %v874
        %1171 = vmatpush1.msra.mxu0 %v873
        %1172 = vmatprep.subr.mxu0 %v878
        %1173 = vmatpush1.msra.mxu0 %v877
        %1174 = vmatprep.subr.mxu0 %v882
        %1175 = vmatpush1.msra.mxu0 %v881
        %1176 = vmatprep.subr.mxu0 %v886
        %1177 = vmatpush1.msra.mxu0 %v885
        %1178 = vmatprep.subr.mxu0 %v890
        %1179 = vmatpush1.msra.mxu0 %v889
        %1180 = vmatprep.subr.mxu0 %v894
        %1181 = vmatpush1.msra.mxu0 %v893
        %1182 = vmatprep.subr.mxu0 %v898
        %1183 = vmatpush1.msra.mxu0 %v897
        %1184 = vmatprep.subr.mxu0 %v902
        %1185 = vmatpush1.msra.mxu0 %v901
        %1186 = vmatprep.subr.mxu0 %v906
        %1187 = vmatpush1.msra.mxu0 %v905
        %1188 = vmatprep.subr.mxu0 %v910
        %1189 = vmatpush1.msra.mxu0 %v909
        %1190 = vmatprep.subr.mxu0 %v914
        %1191 = vmatpush1.msra.mxu0 %v913
        %1192 = vmatprep.subr.mxu0 %v918
        %1193 = vmatpush1.msra.mxu0 %v917
        %1194 = vmatprep.subr.mxu0 %v922
        %1195 = vmatpush1.msra.mxu0 %v921
        %1196 = vmatprep.subr.mxu0 %v926
        %1197 = vmatpush1.msra.mxu0 %v925
        %1198 = vmatprep.subr.mxu0 %v930
        %1199 = vmatpush1.msra.mxu0 %v929
        %1200 = vmatprep.subr.mxu0 %v934
        %1201 = vmatpush1.msra.mxu0 %v933
        %1202 = vmatprep.subr.mxu0 %v938
        %1203 = vmatpush1.msra.mxu0 %v937
        %1204 = vmatprep.subr.mxu0 %v942
        %1205 = vmatpush1.msra.mxu0 %v941
        %1206 = vmatprep.subr.mxu0 %v946
        %1207 = vmatpush1.msra.mxu0 %v945
        %1208 = vmatprep.subr.mxu0 %v950
        %1209 = vmatpush1.msra.mxu0 %v949
        %1210 = vmatprep.subr.mxu0 %v954
        %1211 = vmatpush1.msra.mxu0 %v953
        %1212 = vmatprep.mubr.f32.mxu0 %v564
        %1213 = vmatmul.mubr.f32.gmra.mrb[0].mxu0 %v563
        %v1214 = vpop.f32.mrb[0].mxu0
        %v1215 = vadd.f32 %v1138, %v1214
        %v1216 = vpop.f32.mrb[0].mxu0
        %v1217 = vadd.f32 %v1140, %v1216
        %1218 = vmatprep.mubr.f32.mxu0 %v571
        %1219 = vmatmul.mubr.f32.gmra.mrb[0].mxu0 %v570
        %v1220 = vpop.f32.mrb[0].mxu0
        %v1221 = vadd.f32 %v1144, %v1220
        %v1222 = vpop.f32.mrb[0].mxu0
        %v1223 = vadd.f32 %v1146, %v1222
        %1224 = vdwg.mxu0
        %1225 = vmatprep.subr.mxu0 %v958
        %1226 = vmatpush1.msra.mxu0 %v957
        %1227 = vmatprep.subr.mxu0 %v962
        %1228 = vmatpush1.msra.mxu0 %v961
        %1229 = vmatprep.subr.mxu0 0.0
        %1230 = vmatpush1.msra.mxu0 0.0
        %1231 = vmatprep.subr.mxu0 0.0
        %1232 = vmatpush1.msra.mxu0 0.0
        %1233 = vmatprep.subr.mxu0 0.0
        %1234 = vmatpush1.msra.mxu0 0.0
        %1235 = vmatprep.subr.mxu0 0.0
        %1236 = vmatpush1.msra.mxu0 0.0
        %1237 = vmatprep.subr.mxu0 0.0
        %1238 = vmatpush1.msra.mxu0 0.0
        %1239 = vmatprep.subr.mxu0 0.0
        %1240 = vmatpush1.msra.mxu0 0.0
        %1241 = vmatprep.subr.mxu0 0.0
        %1242 = vmatpush1.msra.mxu0 0.0
        %1243 = vmatprep.subr.mxu0 0.0
        %1244 = vmatpush1.msra.mxu0 0.0
        %1245 = vmatprep.subr.mxu0 0.0
        %1246 = vmatpush1.msra.mxu0 0.0
        %1247 = vmatprep.subr.mxu0 0.0
        %1248 = vmatpush1.msra.mxu0 0.0
        %1249 = vmatprep.subr.mxu0 0.0
        %1250 = vmatpush1.msra.mxu0 0.0
        %1251 = vmatprep.subr.mxu0 0.0
        %1252 = vmatpush1.msra.mxu0 0.0
        %1253 = vmatprep.subr.mxu0 0.0
        %1254 = vmatpush1.msra.mxu0 0.0
        %1255 = vmatprep.subr.mxu0 0.0
        %1256 = vmatpush1.msra.mxu0 0.0
        %1257 = vmatprep.subr.mxu0 0.0
        %1258 = vmatpush1.msra.mxu0 0.0
        %1259 = vmatprep.subr.mxu0 0.0
        %1260 = vmatpush1.msra.mxu0 0.0
        %1261 = vmatprep.subr.mxu0 0.0
        %1262 = vmatpush1.msra.mxu0 0.0
        %1263 = vmatprep.subr.mxu0 0.0
        %1264 = vmatpush1.msra.mxu0 0.0
        %1265 = vmatprep.subr.mxu0 0.0
        %1266 = vmatpush1.msra.mxu0 0.0
        %1267 = vmatprep.subr.mxu0 0.0
        %1268 = vmatpush1.msra.mxu0 0.0
        %1269 = vmatprep.subr.mxu0 0.0
        %1270 = vmatpush1.msra.mxu0 0.0
        %1271 = vmatprep.subr.mxu0 0.0
        %1272 = vmatpush1.msra.mxu0 0.0
        %1273 = vmatprep.subr.mxu0 0.0
        %1274 = vmatpush1.msra.mxu0 0.0
        %1275 = vmatprep.subr.mxu0 0.0
        %1276 = vmatpush1.msra.mxu0 0.0
        %1277 = vmatprep.subr.mxu0 0.0
        %1278 = vmatpush1.msra.mxu0 0.0
        %1279 = vmatprep.subr.mxu0 0.0
        %1280 = vmatpush1.msra.mxu0 0.0
        %1281 = vmatprep.subr.mxu0 0.0
        %1282 = vmatpush1.msra.mxu0 0.0
        %1283 = vmatprep.subr.mxu0 0.0
        %1284 = vmatpush1.msra.mxu0 0.0
        %1285 = vmatprep.subr.mxu0 0.0
        %1286 = vmatpush1.msra.mxu0 0.0
        %1287 = vmatprep.subr.mxu0 0.0
        %1288 = vmatpush1.msra.mxu0 0.0
        %1289 = vmatprep.mubr.f32.mxu0 0.0
        %1290 = vmatmul.mubr.f32.gmra.mrb[0].mxu0 %v989
        %v1291 = vpop.f32.mrb[0].mxu0
        %v1292 = vadd.f32 %v1215, %v1291
        %v1293 = vpop.f32.mrb[0].mxu0
        %v1294 = vadd.f32 %v1217, %v1293
        %1295 = vmatprep.mubr.f32.mxu0 0.0
        %1296 = vmatmul.mubr.f32.gmra.mrb[0].mxu0 %v992
        %v1297 = vpop.f32.mrb[0].mxu0
        %v1298 = vadd.f32 %v1221, %v1297
        %v1299 = vpop.f32.mrb[0].mxu0
        %v1300 = vadd.f32 %v1223, %v1299
        %1301 = vdwg.mxu0
        %1302 = vmatprep.subr.mxu0 %v576
        %1303 = vmatpush1.msra.mxu0 %v575
        %1304 = vmatprep.subr.mxu0 %v580
        %1305 = vmatpush1.msra.mxu0 %v579
        %1306 = vmatprep.subr.mxu0 %v584
        %1307 = vmatpush1.msra.mxu0 %v583
        %1308 = vmatprep.subr.mxu0 %v588
        %1309 = vmatpush1.msra.mxu0 %v587
        %1310 = vmatprep.subr.mxu0 %v592
        %1311 = vmatpush1.msra.mxu0 %v591
        %1312 = vmatprep.subr.mxu0 %v596
        %1313 = vmatpush1.msra.mxu0 %v595
        %1314 = vmatprep.subr.mxu0 %v600
        %1315 = vmatpush1.msra.mxu0 %v599
        %1316 = vmatprep.subr.mxu0 %v604
        %1317 = vmatpush1.msra.mxu0 %v603
        %1318 = vmatprep.subr.mxu0 %v608
        %1319 = vmatpush1.msra.mxu0 %v607
        %1320 = vmatprep.subr.mxu0 %v612
        %1321 = vmatpush1.msra.mxu0 %v611
        %1322 = vmatprep.subr.mxu0 %v616
        %1323 = vmatpush1.msra.mxu0 %v615
        %1324 = vmatprep.subr.mxu0 %v620
        %1325 = vmatpush1.msra.mxu0 %v619
        %1326 = vmatprep.subr.mxu0 %v624
        %1327 = vmatpush1.msra.mxu0 %v623
        %1328 = vmatprep.subr.mxu0 %v628
        %1329 = vmatpush1.msra.mxu0 %v627
        %1330 = vmatprep.subr.mxu0 %v632
        %1331 = vmatpush1.msra.mxu0 %v631
        %1332 = vmatprep.subr.mxu0 %v636
        %1333 = vmatpush1.msra.mxu0 %v635
        %1334 = vmatprep.subr.mxu0 %v640
        %1335 = vmatpush1.msra.mxu0 %v639
        %1336 = vmatprep.subr.mxu0 %v644
        %1337 = vmatpush1.msra.mxu0 %v643
        %1338 = vmatprep.subr.mxu0 %v648
        %1339 = vmatpush1.msra.mxu0 %v647
        %1340 = vmatprep.subr.mxu0 %v652
        %1341 = vmatpush1.msra.mxu0 %v651
        %1342 = vmatprep.subr.mxu0 %v656
        %1343 = vmatpush1.msra.mxu0 %v655
        %1344 = vmatprep.subr.mxu0 %v660
        %1345 = vmatpush1.msra.mxu0 %v659
        %1346 = vmatprep.subr.mxu0 %v664
        %1347 = vmatpush1.msra.mxu0 %v663
        %1348 = vmatprep.subr.mxu0 %v668
        %1349 = vmatpush1.msra.mxu0 %v667
        %1350 = vmatprep.subr.mxu0 %v672
        %1351 = vmatpush1.msra.mxu0 %v671
        %1352 = vmatprep.subr.mxu0 %v676
        %1353 = vmatpush1.msra.mxu0 %v675
        %1354 = vmatprep.subr.mxu0 %v680
        %1355 = vmatpush1.msra.mxu0 %v679
        %1356 = vmatprep.subr.mxu0 %v684
        %1357 = vmatpush1.msra.mxu0 %v683
        %1358 = vmatprep.subr.mxu0 %v688
        %1359 = vmatpush1.msra.mxu0 %v687
        %1360 = vmatprep.subr.mxu0 %v692
        %1361 = vmatpush1.msra.mxu0 %v691
        %1362 = vmatprep.subr.mxu0 %v696
        %1363 = vmatpush1.msra.mxu0 %v695
        %1364 = vmatprep.subr.mxu0 %v700
        %1365 = vmatpush1.msra.mxu0 %v699
        %1366 = vmatprep.mubr.f32.mxu0 %v560
        %1367 = vmatmul.mubr.f32.gmra.mrb[0].mxu0 %v559
        %v1368 = vpop.f32.mrb[0].mxu0
        %v1369 = vadd.f32 %v978, %v1368
        %v1370 = vpop.f32.mrb[0].mxu0
        %v1371 = vadd.f32 %v982, %v1370
        %1372 = vmatprep.mubr.f32.mxu0 %v567
        %1373 = vmatmul.mubr.f32.gmra.mrb[0].mxu0 %v566
        %v1374 = vpop.f32.mrb[0].mxu0
        %v1375 = vadd.f32 %v978, %v1374
        %v1376 = vpop.f32.mrb[0].mxu0
        %v1377 = vadd.f32 %v982, %v1376
        %1378 = vdwg.mxu0
        %1379 = vmatprep.subr.mxu0 %v704
        %1380 = vmatpush1.msra.mxu0 %v703
        %1381 = vmatprep.subr.mxu0 %v708
        %1382 = vmatpush1.msra.mxu0 %v707
        %1383 = vmatprep.subr.mxu0 %v712
        %1384 = vmatpush1.msra.mxu0 %v711
        %1385 = vmatprep.subr.mxu0 %v716
        %1386 = vmatpush1.msra.mxu0 %v715
        %1387 = vmatprep.subr.mxu0 %v720
        %1388 = vmatpush1.msra.mxu0 %v719
        %1389 = vmatprep.subr.mxu0 %v724
        %1390 = vmatpush1.msra.mxu0 %v723
        %1391 = vmatprep.subr.mxu0 %v728
        %1392 = vmatpush1.msra.mxu0 %v727
        %1393 = vmatprep.subr.mxu0 %v732
        %1394 = vmatpush1.msra.mxu0 %v731
        %1395 = vmatprep.subr.mxu0 %v736
        %1396 = vmatpush1.msra.mxu0 %v735
        %1397 = vmatprep.subr.mxu0 %v740
        %1398 = vmatpush1.msra.mxu0 %v739
        %1399 = vmatprep.subr.mxu0 %v744
        %1400 = vmatpush1.msra.mxu0 %v743
        %1401 = vmatprep.subr.mxu0 %v748
        %1402 = vmatpush1.msra.mxu0 %v747
        %1403 = vmatprep.subr.mxu0 %v752
        %1404 = vmatpush1.msra.mxu0 %v751
        %1405 = vmatprep.subr.mxu0 %v756
        %1406 = vmatpush1.msra.mxu0 %v755
        %1407 = vmatprep.subr.mxu0 %v760
        %1408 = vmatpush1.msra.mxu0 %v759
        %1409 = vmatprep.subr.mxu0 %v764
        %1410 = vmatpush1.msra.mxu0 %v763
        %1411 = vmatprep.subr.mxu0 %v768
        %1412 = vmatpush1.msra.mxu0 %v767
        %1413 = vmatprep.subr.mxu0 %v772
        %1414 = vmatpush1.msra.mxu0 %v771
        %1415 = vmatprep.subr.mxu0 %v776
        %1416 = vmatpush1.msra.mxu0 %v775
        %1417 = vmatprep.subr.mxu0 %v780
        %1418 = vmatpush1.msra.mxu0 %v779
        %1419 = vmatprep.subr.mxu0 %v784
        %1420 = vmatpush1.msra.mxu0 %v783
        %1421 = vmatprep.subr.mxu0 %v788
        %1422 = vmatpush1.msra.mxu0 %v787
        %1423 = vmatprep.subr.mxu0 %v792
        %1424 = vmatpush1.msra.mxu0 %v791
        %1425 = vmatprep.subr.mxu0 %v796
        %1426 = vmatpush1.msra.mxu0 %v795
        %1427 = vmatprep.subr.mxu0 %v800
        %1428 = vmatpush1.msra.mxu0 %v799
        %1429 = vmatprep.subr.mxu0 %v804
        %1430 = vmatpush1.msra.mxu0 %v803
        %1431 = vmatprep.subr.mxu0 %v808
        %1432 = vmatpush1.msra.mxu0 %v807
        %1433 = vmatprep.subr.mxu0 %v812
        %1434 = vmatpush1.msra.mxu0 %v811
        %1435 = vmatprep.subr.mxu0 %v816
        %1436 = vmatpush1.msra.mxu0 %v815
        %1437 = vmatprep.subr.mxu0 %v820
        %1438 = vmatpush1.msra.mxu0 %v819
        %1439 = vmatprep.subr.mxu0 %v824
        %1440 = vmatpush1.msra.mxu0 %v823
        %1441 = vmatprep.subr.mxu0 %v828
        %1442 = vmatpush1.msra.mxu0 %v827
        %1443 = vmatprep.mubr.f32.mxu0 %v562
        %1444 = vmatmul.mubr.f32.gmra.mrb[0].mxu0 %v561
        %v1445 = vpop.f32.mrb[0].mxu0
        %v1446 = vadd.f32 %v1369, %v1445
        %v1447 = vpop.f32.mrb[0].mxu0
        %v1448 = vadd.f32 %v1371, %v1447
        %1449 = vmatprep.mubr.f32.mxu0 %v569
        %1450 = vmatmul.mubr.f32.gmra.mrb[0].mxu0 %v568
        %v1451 = vpop.f32.mrb[0].mxu0
        %v1452 = vadd.f32 %v1375, %v1451
        %v1453 = vpop.f32.mrb[0].mxu0
        %v1454 = vadd.f32 %v1377, %v1453
        %1455 = vdwg.mxu0
        %1456 = vmatprep.subr.mxu0 %v832
        %1457 = vmatpush1.msra.mxu0 %v831
        %1458 = vmatprep.subr.mxu0 %v836
        %1459 = vmatpush1.msra.mxu0 %v835
        %1460 = vmatprep.subr.mxu0 %v840
        %1461 = vmatpush1.msra.mxu0 %v839
        %1462 = vmatprep.subr.mxu0 %v844
        %1463 = vmatpush1.msra.mxu0 %v843
        %1464 = vmatprep.subr.mxu0 %v848
        %1465 = vmatpush1.msra.mxu0 %v847
        %1466 = vmatprep.subr.mxu0 %v852
        %1467 = vmatpush1.msra.mxu0 %v851
        %1468 = vmatprep.subr.mxu0 %v856
        %1469 = vmatpush1.msra.mxu0 %v855
        %1470 = vmatprep.subr.mxu0 %v860
        %1471 = vmatpush1.msra.mxu0 %v859
        %1472 = vmatprep.subr.mxu0 %v864
        %1473 = vmatpush1.msra.mxu0 %v863
        %1474 = vmatprep.subr.mxu0 %v868
        %1475 = vmatpush1.msra.mxu0 %v867
        %1476 = vmatprep.subr.mxu0 %v872
        %1477 = vmatpush1.msra.mxu0 %v871
        %1478 = vmatprep.subr.mxu0 %v876
        %1479 = vmatpush1.msra.mxu0 %v875
        %1480 = vmatprep.subr.mxu0 %v880
        %1481 = vmatpush1.msra.mxu0 %v879
        %1482 = vmatprep.subr.mxu0 %v884
        %1483 = vmatpush1.msra.mxu0 %v883
        %1484 = vmatprep.subr.mxu0 %v888
        %1485 = vmatpush1.msra.mxu0 %v887
        %1486 = vmatprep.subr.mxu0 %v892
        %1487 = vmatpush1.msra.mxu0 %v891
        %1488 = vmatprep.subr.mxu0 %v896
        %1489 = vmatpush1.msra.mxu0 %v895
        %1490 = vmatprep.subr.mxu0 %v900
        %1491 = vmatpush1.msra.mxu0 %v899
        %1492 = vmatprep.subr.mxu0 %v904
        %1493 = vmatpush1.msra.mxu0 %v903
        %1494 = vmatprep.subr.mxu0 %v908
        %1495 = vmatpush1.msra.mxu0 %v907
        %1496 = vmatprep.subr.mxu0 %v912
        %1497 = vmatpush1.msra.mxu0 %v911
        %1498 = vmatprep.subr.mxu0 %v916
        %1499 = vmatpush1.msra.mxu0 %v915
        %1500 = vmatprep.subr.mxu0 %v920
        %1501 = vmatpush1.msra.mxu0 %v919
        %1502 = vmatprep.subr.mxu0 %v924
        %1503 = vmatpush1.msra.mxu0 %v923
        %1504 = vmatprep.subr.mxu0 %v928
        %1505 = vmatpush1.msra.mxu0 %v927
        %1506 = vmatprep.subr.mxu0 %v932
        %1507 = vmatpush1.msra.mxu0 %v931
        %1508 = vmatprep.subr.mxu0 %v936
        %1509 = vmatpush1.msra.mxu0 %v935
        %1510 = vmatprep.subr.mxu0 %v940
        %1511 = vmatpush1.msra.mxu0 %v939
        %1512 = vmatprep.subr.mxu0 %v944
        %1513 = vmatpush1.msra.mxu0 %v943
        %1514 = vmatprep.subr.mxu0 %v948
        %1515 = vmatpush1.msra.mxu0 %v947
        %1516 = vmatprep.subr.mxu0 %v952
        %1517 = vmatpush1.msra.mxu0 %v951
        %1518 = vmatprep.subr.mxu0 %v956
        %1519 = vmatpush1.msra.mxu0 %v955
        %1520 = vmatprep.mubr.f32.mxu0 %v564
        %1521 = vmatmul.mubr.f32.gmra.mrb[0].mxu0 %v563
        %v1522 = vpop.f32.mrb[0].mxu0
        %v1523 = vadd.f32 %v1446, %v1522
        %v1524 = vpop.f32.mrb[0].mxu0
        %v1525 = vadd.f32 %v1448, %v1524
        %1526 = vmatprep.mubr.f32.mxu0 %v571
        %1527 = vmatmul.mubr.f32.gmra.mrb[0].mxu0 %v570
        %v1528 = vpop.f32.mrb[0].mxu0
        %v1529 = vadd.f32 %v1452, %v1528
        %v1530 = vpop.f32.mrb[0].mxu0
        %v1531 = vadd.f32 %v1454, %v1530
        %1532 = vdwg.mxu0
        %1533 = vmatprep.subr.mxu0 %v960
        %1534 = vmatpush1.msra.mxu0 %v959
        %1535 = vmatprep.subr.mxu0 %v964
        %1536 = vmatpush1.msra.mxu0 %v963
        %1537 = vmatprep.subr.mxu0 0.0
        %1538 = vmatpush1.msra.mxu0 0.0
        %1539 = vmatprep.subr.mxu0 0.0
        %1540 = vmatpush1.msra.mxu0 0.0
        %1541 = vmatprep.subr.mxu0 0.0
        %1542 = vmatpush1.msra.mxu0 0.0
        %1543 = vmatprep.subr.mxu0 0.0
        %1544 = vmatpush1.msra.mxu0 0.0
        %1545 = vmatprep.subr.mxu0 0.0
        %1546 = vmatpush1.msra.mxu0 0.0
        %1547 = vmatprep.subr.mxu0 0.0
        %1548 = vmatpush1.msra.mxu0 0.0
        %1549 = vmatprep.subr.mxu0 0.0
        %1550 = vmatpush1.msra.mxu0 0.0
        %1551 = vmatprep.subr.mxu0 0.0
        %1552 = vmatpush1.msra.mxu0 0.0
        %1553 = vmatprep.subr.mxu0 0.0
        %1554 = vmatpush1.msra.mxu0 0.0
        %1555 = vmatprep.subr.mxu0 0.0
        %1556 = vmatpush1.msra.mxu0 0.0
        %1557 = vmatprep.subr.mxu0 0.0
        %1558 = vmatpush1.msra.mxu0 0.0
        %1559 = vmatprep.subr.mxu0 0.0
        %1560 = vmatpush1.msra.mxu0 0.0
        %1561 = vmatprep.subr.mxu0 0.0
        %1562 = vmatpush1.msra.mxu0 0.0
        %1563 = vmatprep.subr.mxu0 0.0
        %1564 = vmatpush1.msra.mxu0 0.0
        %1565 = vmatprep.subr.mxu0 0.0
        %1566 = vmatpush1.msra.mxu0 0.0
        %1567 = vmatprep.subr.mxu0 0.0
        %1568 = vmatpush1.msra.mxu0 0.0
        %1569 = vmatprep.subr.mxu0 0.0
        %1570 = vmatpush1.msra.mxu0 0.0
        %1571 = vmatprep.subr.mxu0 0.0
        %1572 = vmatpush1.msra.mxu0 0.0
        %1573 = vmatprep.subr.mxu0 0.0
        %1574 = vmatpush1.msra.mxu0 0.0
        %1575 = vmatprep.subr.mxu0 0.0
        %1576 = vmatpush1.msra.mxu0 0.0
        %1577 = vmatprep.subr.mxu0 0.0
        %1578 = vmatpush1.msra.mxu0 0.0
        %1579 = vmatprep.subr.mxu0 0.0
        %1580 = vmatpush1.msra.mxu0 0.0
        %1581 = vmatprep.subr.mxu0 0.0
        %1582 = vmatpush1.msra.mxu0 0.0
        %1583 = vmatprep.subr.mxu0 0.0
        %1584 = vmatpush1.msra.mxu0 0.0
        %1585 = vmatprep.subr.mxu0 0.0
        %1586 = vmatpush1.msra.mxu0 0.0
        %1587 = vmatprep.subr.mxu0 0.0
        %1588 = vmatpush1.msra.mxu0 0.0
        %1589 = vmatprep.subr.mxu0 0.0
        %1590 = vmatpush1.msra.mxu0 0.0
        %1591 = vmatprep.subr.mxu0 0.0
        %1592 = vmatpush1.msra.mxu0 0.0
        %1593 = vmatprep.subr.mxu0 0.0
        %1594 = vmatpush1.msra.mxu0 0.0
        %1595 = vmatprep.subr.mxu0 0.0
        %1596 = vmatpush1.msra.mxu0 0.0
        %1597 = vmatprep.mubr.f32.mxu0 0.0
        %1598 = vmatmul.mubr.f32.gmra.mrb[0].mxu0 %v989
        %v1599 = vpop.f32.mrb[0].mxu0
        %v1600 = vadd.f32 %v1523, %v1599
        %v1601 = vpop.f32.mrb[0].mxu0
        %v1602 = vadd.f32 %v1525, %v1601
        %1603 = vmatprep.mubr.f32.mxu0 0.0
        %1604 = vmatmul.mubr.f32.gmra.mrb[0].mxu0 %v992
        %v1605 = vpop.f32.mrb[0].mxu0
        %v1606 = vadd.f32 %v1529, %v1605
        %v1607 = vpop.f32.mrb[0].mxu0
        %v1608 = vadd.f32 %v1531, %v1607
        %1609 = vdwg.mxu0
        %v1610 = vtanh.pop %v1292
        %v1611 = vtanh.pop %v1294
        %v1612 = vtanh.pop %v1600
        %v1613 = vtanh.pop %v1602
        %v1614 = vtanh.pop %v1298
        %v1615 = vtanh.pop %v1300
        %v1616 = vtanh.pop %v1606
        %v1617 = vtanh.pop %v1608
        %v1618 = vld [vmem:[#allocation8] sm:$0xff]
        %v1619 = vld [vmem:[#allocation8 + $0x8] sm:$0xff]
        %v1620 = vld [vmem:[#allocation8 + $0x10] sm:$0xff]
        %v1621 = vld [vmem:[#allocation8 + $0x18] sm:$0xff]
        %v1622 = vld [vmem:[#allocation8 + $0x20] sm:$0xff]
        %v1623 = vld [vmem:[#allocation8 + $0x28] sm:$0xff]
        %v1624 = vld [vmem:[#allocation8 + $0x30] sm:$0xff]
        %v1625 = vld [vmem:[#allocation8 + $0x38] sm:$0xff]
        %v1626 = vld [vmem:[#allocation8 + $0x40] sm:$0xff]
        %v1627 = vld [vmem:[#allocation8 + $0x48] sm:$0xff]
        %v1628 = vld [vmem:[#allocation8 + $0x50] sm:$0xff]
        %v1629 = vld [vmem:[#allocation8 + $0x58] sm:$0xff]
        %v1630 = vld [vmem:[#allocation8 + $0x60] sm:$0xff]
        %v1631 = vld [vmem:[#allocation8 + $0x68] sm:$0xff]
        %v1632 = vld [vmem:[#allocation8 + $0x70] sm:$0xff]
        %v1633 = vld [vmem:[#allocation8 + $0x78] sm:$0xff]
        %v1634 = vld [vmem:[#allocation8 + $0x80] sm:$0xff]
        %v1635 = vld [vmem:[#allocation8 + $0x88] sm:$0xff]
        %v1636 = vld [vmem:[#allocation8 + $0x90] sm:$0xff]
        %v1637 = vld [vmem:[#allocation8 + $0x98] sm:$0xff]
        %v1638 = vld [vmem:[#allocation8 + $0xa0] sm:$0xff]
        %v1639 = vld [vmem:[#allocation8 + $0xa8] sm:$0xff]
        %v1640 = vld [vmem:[#allocation8 + $0xb0] sm:$0xff]
        %v1641 = vld [vmem:[#allocation8 + $0xb8] sm:$0xff]
        %v1642 = vld [vmem:[#allocation8 + $0xc0] sm:$0xff]
        %v1643 = vld [vmem:[#allocation8 + $0xc8] sm:$0xff]
        %v1644 = vld [vmem:[#allocation8 + $0xd0] sm:$0xff]
        %v1645 = vld [vmem:[#allocation8 + $0xd8] sm:$0xff]
        %v1646 = vld [vmem:[#allocation8 + $0xe0] sm:$0xff]
        %v1647 = vld [vmem:[#allocation8 + $0xe8] sm:$0xff]
        %v1648 = vld [vmem:[#allocation8 + $0xf0] sm:$0xff]
        %v1649 = vld [vmem:[#allocation8 + $0xf8] sm:$0xff]
        %v1650 = vld [vmem:[#allocation8 + $0x100] sm:$0xff]
        %v1651 = vld [vmem:[#allocation8 + $0x108] sm:$0xff]
        %v1652 = vld [vmem:[#allocation8 + $0x110] sm:$0xff]
        %v1653 = vld [vmem:[#allocation8 + $0x118] sm:$0xff]
        %v1654 = vld [vmem:[#allocation8 + $0x120] sm:$0xff]
        %v1655 = vld [vmem:[#allocation8 + $0x128] sm:$0xff]
        %v1656 = vld [vmem:[#allocation8 + $0x130] sm:$0xff]
        %v1657 = vld [vmem:[#allocation8 + $0x138] sm:$0xff]
        %v1658 = vld [vmem:[#allocation8 + $0x140] sm:$0xff]
        %v1659 = vld [vmem:[#allocation8 + $0x148] sm:$0xff]
        %v1660 = vld [vmem:[#allocation8 + $0x150] sm:$0xff]
        %v1661 = vld [vmem:[#allocation8 + $0x158] sm:$0xff]
        %v1662 = vld [vmem:[#allocation8 + $0x160] sm:$0xff]
        %v1663 = vld [vmem:[#allocation8 + $0x168] sm:$0xff]
        %v1664 = vld [vmem:[#allocation8 + $0x170] sm:$0xff]
        %v1665 = vld [vmem:[#allocation8 + $0x178] sm:$0xff]
        %v1666 = vld [vmem:[#allocation8 + $0x180] sm:$0xff]
        %v1667 = vld [vmem:[#allocation8 + $0x188] sm:$0xff]
        %v1668 = vld [vmem:[#allocation8 + $0x190] sm:$0xff]
        %v1669 = vld [vmem:[#allocation8 + $0x198] sm:$0xff]
        %v1670 = vld [vmem:[#allocation8 + $0x1a0] sm:$0xff]
        %v1671 = vld [vmem:[#allocation8 + $0x1a8] sm:$0xff]
        %v1672 = vld [vmem:[#allocation8 + $0x1b0] sm:$0xff]
        %v1673 = vld [vmem:[#allocation8 + $0x1b8] sm:$0xff]
        %v1674 = vld [vmem:[#allocation8 + $0x1c0] sm:$0xff]
        %v1675 = vld [vmem:[#allocation8 + $0x1c8] sm:$0xff]
        %v1676 = vld [vmem:[#allocation8 + $0x1d0] sm:$0xff]
        %v1677 = vld [vmem:[#allocation8 + $0x1d8] sm:$0xff]
        %v1678 = vld [vmem:[#allocation8 + $0x1e0] sm:$0xff]
        %v1679 = vld [vmem:[#allocation8 + $0x1e8] sm:$0xff]
        %v1680 = vld [vmem:[#allocation8 + $0x1f0] sm:$0xff]
        %v1681 = vld [vmem:[#allocation8 + $0x1f8] sm:$0xff]
        %v1682 = vld [vmem:[#allocation8 + $0x200] sm:$0xff]
        %v1683 = vld [vmem:[#allocation8 + $0x208] sm:$0xff]
        %v1684 = vld [vmem:[#allocation8 + $0x210] sm:$0xff]
        %v1685 = vld [vmem:[#allocation8 + $0x218] sm:$0xff]
        %v1686 = vld [vmem:[#allocation8 + $0x220] sm:$0xff]
        %v1687 = vld [vmem:[#allocation8 + $0x228] sm:$0xff]
        %v1688 = vld [vmem:[#allocation8 + $0x230] sm:$0xff]
        %v1689 = vld [vmem:[#allocation8 + $0x238] sm:$0xff]
        %v1690 = vld [vmem:[#allocation8 + $0x240] sm:$0xff]
        %v1691 = vld [vmem:[#allocation8 + $0x248] sm:$0xff]
        %v1692 = vld [vmem:[#allocation8 + $0x250] sm:$0xff]
        %v1693 = vld [vmem:[#allocation8 + $0x258] sm:$0xff]
        %v1694 = vld [vmem:[#allocation8 + $0x260] sm:$0xff]
        %v1695 = vld [vmem:[#allocation8 + $0x268] sm:$0xff]
        %v1696 = vld [vmem:[#allocation8 + $0x270] sm:$0xff]
        %v1697 = vld [vmem:[#allocation8 + $0x278] sm:$0xff]
        %v1698 = vld [vmem:[#allocation8 + $0x280] sm:$0xff]
        %v1699 = vld [vmem:[#allocation8 + $0x288] sm:$0xff]
        %v1700 = vld [vmem:[#allocation8 + $0x290] sm:$0xff]
        %v1701 = vld [vmem:[#allocation8 + $0x298] sm:$0xff]
        %v1702 = vld [vmem:[#allocation8 + $0x2a0] sm:$0xff]
        %v1703 = vld [vmem:[#allocation8 + $0x2a8] sm:$0xff]
        %v1704 = vld [vmem:[#allocation8 + $0x2b0] sm:$0xff]
        %v1705 = vld [vmem:[#allocation8 + $0x2b8] sm:$0xff]
        %v1706 = vld [vmem:[#allocation8 + $0x2c0] sm:$0xff]
        %v1707 = vld [vmem:[#allocation8 + $0x2c8] sm:$0xff]
        %v1708 = vld [vmem:[#allocation8 + $0x2d0] sm:$0xff]
        %v1709 = vld [vmem:[#allocation8 + $0x2d8] sm:$0xff]
        %v1710 = vld [vmem:[#allocation8 + $0x2e0] sm:$0xff]
        %v1711 = vld [vmem:[#allocation8 + $0x2e8] sm:$0xff]
        %v1712 = vld [vmem:[#allocation8 + $0x2f0] sm:$0xff]
        %v1713 = vld [vmem:[#allocation8 + $0x2f8] sm:$0xff]
        %v1714 = vld [vmem:[#allocation8 + $0x300] sm:$0xff]
        %v1715 = vld [vmem:[#allocation8 + $0x308] sm:$0xff]
        %v1716 = vld [vmem:[#allocation8 + $0x310] sm:$0xff]
        %v1717 = vld [vmem:[#allocation8 + $0x318] sm:$0xff]
        %v1718 = vld [vmem:[#allocation8 + $0x320] sm:$0xff]
        %v1719 = vld [vmem:[#allocation8 + $0x328] sm:$0xff]
        %v1720 = vld [vmem:[#allocation8 + $0x330] sm:$0xff]
        %v1721 = vld [vmem:[#allocation8 + $0x338] sm:$0xff]
        %v1722 = vld [vmem:[#allocation8 + $0x340] sm:$0xff]
        %v1723 = vld [vmem:[#allocation8 + $0x348] sm:$0xff]
        %v1724 = vld [vmem:[#allocation8 + $0x350] sm:$0xff]
        %v1725 = vld [vmem:[#allocation8 + $0x358] sm:$0xff]
        %v1726 = vld [vmem:[#allocation8 + $0x360] sm:$0xff]
        %v1727 = vld [vmem:[#allocation8 + $0x368] sm:$0xff]
        %v1728 = vld [vmem:[#allocation8 + $0x370] sm:$0xff]
        %v1729 = vld [vmem:[#allocation8 + $0x378] sm:$0xff]
        %v1730 = vld [vmem:[#allocation8 + $0x380] sm:$0xff]
        %v1731 = vld [vmem:[#allocation8 + $0x388] sm:$0xff]
        %v1732 = vld [vmem:[#allocation8 + $0x390] sm:$0xff]
        %v1733 = vld [vmem:[#allocation8 + $0x398] sm:$0xff]
        %v1734 = vld [vmem:[#allocation8 + $0x3a0] sm:$0xff]
        %v1735 = vld [vmem:[#allocation8 + $0x3a8] sm:$0xff]
        %v1736 = vld [vmem:[#allocation8 + $0x3b0] sm:$0xff]
        %v1737 = vld [vmem:[#allocation8 + $0x3b8] sm:$0xff]
        %v1738 = vld [vmem:[#allocation8 + $0x3c0] sm:$0xff]
        %v1739 = vld [vmem:[#allocation8 + $0x3c8] sm:$0xff]
        %v1740 = vld [vmem:[#allocation8 + $0x3d0] sm:$0xff]
        %v1741 = vld [vmem:[#allocation8 + $0x3d8] sm:$0xff]
        %v1742 = vld [vmem:[#allocation8 + $0x3e0] sm:$0xf]
        %v1743 = vld [vmem:[#allocation8 + $0x3e8] sm:$0xf]
        %v1744 = vld [vmem:[#allocation10] sm:$0x3]
        %v1746 = vlaneseq
        %v1747 = vshrl.u32 %v1746, 7
        %v1748 = vsub.s32 0, %v1747
        %v1749 = vrot.slane %v1744, %v1748
        %v1750 = vlaneseq
        %v1751 = vshrl.u32 %v1750, 7
        %v1752 = vsub.s32 1, %v1751
        %v1753 = vrot.slane %v1744, %v1752
        %vm1756 = vcmask 949248
        %v1758 = vsel %vm1756, %v1613, 0
        %v1761 = vsel %vm1756, %v1617, 0
        %vm1763 = vcmask 1043456
        %v1765 = vsel %vm1763, %v1742, 0
        %v1768 = vsel %vm1763, %v1743, 0
        %1770 = vmatprep.subr.mxu0 %v1619
        %1771 = vmatpush1.msra.mxu0 %v1618
        %1772 = vmatprep.subr.mxu0 %v1621
        %1773 = vmatpush1.msra.mxu0 %v1620
        %1774 = vmatprep.subr.mxu0 %v1623
        %1775 = vmatpush1.msra.mxu0 %v1622
        %1776 = vmatprep.subr.mxu0 %v1625
        %1777 = vmatpush1.msra.mxu0 %v1624
        %1778 = vmatprep.subr.mxu0 %v1627
        %1779 = vmatpush1.msra.mxu0 %v1626
        %1780 = vmatprep.subr.mxu0 %v1629
        %1781 = vmatpush1.msra.mxu0 %v1628
        %1782 = vmatprep.subr.mxu0 %v1631
        %1783 = vmatpush1.msra.mxu0 %v1630
        %1784 = vmatprep.subr.mxu0 %v1633
        %1785 = vmatpush1.msra.mxu0 %v1632
        %1786 = vmatprep.subr.mxu0 %v1635
        %1787 = vmatpush1.msra.mxu0 %v1634
        %1788 = vmatprep.subr.mxu0 %v1637
        %1789 = vmatpush1.msra.mxu0 %v1636
        %1790 = vmatprep.subr.mxu0 %v1639
        %1791 = vmatpush1.msra.mxu0 %v1638
        %1792 = vmatprep.subr.mxu0 %v1641
        %1793 = vmatpush1.msra.mxu0 %v1640
        %1794 = vmatprep.subr.mxu0 %v1643
        %1795 = vmatpush1.msra.mxu0 %v1642
        %1796 = vmatprep.subr.mxu0 %v1645
        %1797 = vmatpush1.msra.mxu0 %v1644
        %1798 = vmatprep.subr.mxu0 %v1647
        %1799 = vmatpush1.msra.mxu0 %v1646
        %1800 = vmatprep.subr.mxu0 %v1649
        %1801 = vmatpush1.msra.mxu0 %v1648
        %1802 = vmatprep.subr.mxu0 %v1651
        %1803 = vmatpush1.msra.mxu0 %v1650
        %1804 = vmatprep.subr.mxu0 %v1653
        %1805 = vmatpush1.msra.mxu0 %v1652
        %1806 = vmatprep.subr.mxu0 %v1655
        %1807 = vmatpush1.msra.mxu0 %v1654
        %1808 = vmatprep.subr.mxu0 %v1657
        %1809 = vmatpush1.msra.mxu0 %v1656
        %1810 = vmatprep.subr.mxu0 %v1659
        %1811 = vmatpush1.msra.mxu0 %v1658
        %1812 = vmatprep.subr.mxu0 %v1661
        %1813 = vmatpush1.msra.mxu0 %v1660
        %1814 = vmatprep.subr.mxu0 %v1663
        %1815 = vmatpush1.msra.mxu0 %v1662
        %1816 = vmatprep.subr.mxu0 %v1665
        %1817 = vmatpush1.msra.mxu0 %v1664
        %1818 = vmatprep.subr.mxu0 %v1667
        %1819 = vmatpush1.msra.mxu0 %v1666
        %1820 = vmatprep.subr.mxu0 %v1669
        %1821 = vmatpush1.msra.mxu0 %v1668
        %1822 = vmatprep.subr.mxu0 %v1671
        %1823 = vmatpush1.msra.mxu0 %v1670
        %1824 = vmatprep.subr.mxu0 %v1673
        %1825 = vmatpush1.msra.mxu0 %v1672
        %1826 = vmatprep.subr.mxu0 %v1675
        %1827 = vmatpush1.msra.mxu0 %v1674
        %1828 = vmatprep.subr.mxu0 %v1677
        %1829 = vmatpush1.msra.mxu0 %v1676
        %1830 = vmatprep.subr.mxu0 %v1679
        %1831 = vmatpush1.msra.mxu0 %v1678
        %1832 = vmatprep.subr.mxu0 %v1681
        %1833 = vmatpush1.msra.mxu0 %v1680
        %1834 = vmatprep.mubr.f32.mxu0 %v1611
        %1835 = vmatmul.mubr.f32.gmra.mrb[0].mxu0 %v1610
        %v1836 = vpop.f32.mrb[0].mxu0
        %v1837 = vadd.f32 %v1749, %v1836
        %v1838 = vpop.f32.mrb[0].mxu0
        %v1839 = vadd.f32 %v1753, %v1838
        %1840 = vmatprep.mubr.f32.mxu0 %v1615
        %1841 = vmatmul.mubr.f32.gmra.mrb[0].mxu0 %v1614
        %v1842 = vpop.f32.mrb[0].mxu0
        %v1843 = vadd.f32 %v1749, %v1842
        %v1844 = vpop.f32.mrb[0].mxu0
        %v1845 = vadd.f32 %v1753, %v1844
        %1846 = vdwg.mxu0
        %1847 = vmatprep.subr.mxu0 %v1683
        %1848 = vmatpush1.msra.mxu0 %v1682
        %1849 = vmatprep.subr.mxu0 %v1685
        %1850 = vmatpush1.msra.mxu0 %v1684
        %1851 = vmatprep.subr.mxu0 %v1687
        %1852 = vmatpush1.msra.mxu0 %v1686
        %1853 = vmatprep.subr.mxu0 %v1689
        %1854 = vmatpush1.msra.mxu0 %v1688
        %1855 = vmatprep.subr.mxu0 %v1691
        %1856 = vmatpush1.msra.mxu0 %v1690
        %1857 = vmatprep.subr.mxu0 %v1693
        %1858 = vmatpush1.msra.mxu0 %v1692
        %1859 = vmatprep.subr.mxu0 %v1695
        %1860 = vmatpush1.msra.mxu0 %v1694
        %1861 = vmatprep.subr.mxu0 %v1697
        %1862 = vmatpush1.msra.mxu0 %v1696
        %1863 = vmatprep.subr.mxu0 %v1699
        %1864 = vmatpush1.msra.mxu0 %v1698
        %1865 = vmatprep.subr.mxu0 %v1701
        %1866 = vmatpush1.msra.mxu0 %v1700
        %1867 = vmatprep.subr.mxu0 %v1703
        %1868 = vmatpush1.msra.mxu0 %v1702
        %1869 = vmatprep.subr.mxu0 %v1705
        %1870 = vmatpush1.msra.mxu0 %v1704
        %1871 = vmatprep.subr.mxu0 %v1707
        %1872 = vmatpush1.msra.mxu0 %v1706
        %1873 = vmatprep.subr.mxu0 %v1709
        %1874 = vmatpush1.msra.mxu0 %v1708
        %1875 = vmatprep.subr.mxu0 %v1711
        %1876 = vmatpush1.msra.mxu0 %v1710
        %1877 = vmatprep.subr.mxu0 %v1713
        %1878 = vmatpush1.msra.mxu0 %v1712
        %1879 = vmatprep.subr.mxu0 %v1715
        %1880 = vmatpush1.msra.mxu0 %v1714
        %1881 = vmatprep.subr.mxu0 %v1717
        %1882 = vmatpush1.msra.mxu0 %v1716
        %1883 = vmatprep.subr.mxu0 %v1719
        %1884 = vmatpush1.msra.mxu0 %v1718
        %1885 = vmatprep.subr.mxu0 %v1721
        %1886 = vmatpush1.msra.mxu0 %v1720
        %1887 = vmatprep.subr.mxu0 %v1723
        %1888 = vmatpush1.msra.mxu0 %v1722
        %1889 = vmatprep.subr.mxu0 %v1725
        %1890 = vmatpush1.msra.mxu0 %v1724
        %1891 = vmatprep.subr.mxu0 %v1727
        %1892 = vmatpush1.msra.mxu0 %v1726
        %1893 = vmatprep.subr.mxu0 %v1729
        %1894 = vmatpush1.msra.mxu0 %v1728
        %1895 = vmatprep.subr.mxu0 %v1731
        %1896 = vmatpush1.msra.mxu0 %v1730
        %1897 = vmatprep.subr.mxu0 %v1733
        %1898 = vmatpush1.msra.mxu0 %v1732
        %1899 = vmatprep.subr.mxu0 %v1735
        %1900 = vmatpush1.msra.mxu0 %v1734
        %1901 = vmatprep.subr.mxu0 %v1737
        %1902 = vmatpush1.msra.mxu0 %v1736
        %1903 = vmatprep.subr.mxu0 %v1739
        %1904 = vmatpush1.msra.mxu0 %v1738
        %1905 = vmatprep.subr.mxu0 %v1741
        %1906 = vmatpush1.msra.mxu0 %v1740
        %1907 = vmatprep.subr.mxu0 %v1768
        %1908 = vmatpush1.msra.mxu0 %v1765
        %1909 = vmatprep.subr.mxu0 0.0
        %1910 = vmatpush1.msra.mxu0 0.0
        %1911 = vmatprep.mubr.f32.mxu0 %v1758
        %1912 = vmatmul.mubr.f32.gmra.mrb[0].mxu0 %v1612
        %v1913 = vpop.f32.mrb[0].mxu0
        %v1914 = vadd.f32 %v1837, %v1913
        %v1915 = vpop.f32.mrb[0].mxu0
        %v1916 = vadd.f32 %v1839, %v1915
        %1917 = vmatprep.mubr.f32.mxu0 %v1761
        %1918 = vmatmul.mubr.f32.gmra.mrb[0].mxu0 %v1616
        %v1919 = vpop.f32.mrb[0].mxu0
        %v1920 = vadd.f32 %v1843, %v1919
        %v1921 = vpop.f32.mrb[0].mxu0
        %v1922 = vadd.f32 %v1845, %v1921
        %1923 = vdwg.mxu0
        %v1924 = vtanh.pop %v1914
        %v1925 = vtanh.pop %v1916
        %v1926 = vtanh.pop %v1920
        %v1927 = vtanh.pop %v1922
        %v1928 = vld [vmem:[%s5] sm:$0xff]
        %v1929 = vld [vmem:[%s5 + $0x8] sm:$0xff]
        %v1930 = vld [vmem:[%s5 + $0x10] sm:$0xff]
        %v1931 = vld [vmem:[%s5 + $0x18] sm:$0xff]
        %v1932 = vld [vmem:[%s5 + $0x20] sm:$0xff]
        %v1933 = vld [vmem:[%s5 + $0x28] sm:$0xff]
        %v1934 = vld [vmem:[%s5 + $0x30] sm:$0xff]
        %v1935 = vld [vmem:[%s5 + $0x38] sm:$0xff]
        %v1936 = vld [vmem:[%s5 + $0x40] sm:$0xff]
        %v1937 = vld [vmem:[%s5 + $0x48] sm:$0xff]
        %v1938 = vld [vmem:[%s5 + $0x50] sm:$0xff]
        %v1939 = vld [vmem:[%s5 + $0x58] sm:$0xff]
        %v1940 = vld [vmem:[%s5 + $0x60] sm:$0xff]
        %v1941 = vld [vmem:[%s5 + $0x68] sm:$0xff]
        %v1942 = vld [vmem:[%s5 + $0x70] sm:$0xff]
        %v1943 = vld [vmem:[%s5 + $0x78] sm:$0xff]
        %v1944 = vld [vmem:[%s5 + $0x80] sm:$0xff]
        %v1945 = vld [vmem:[%s5 + $0x88] sm:$0xff]
        %v1946 = vld [vmem:[%s5 + $0x90] sm:$0xff]
        %v1947 = vld [vmem:[%s5 + $0x98] sm:$0xff]
        %v1948 = vld [vmem:[%s5 + $0xa0] sm:$0xff]
        %v1949 = vld [vmem:[%s5 + $0xa8] sm:$0xff]
        %v1950 = vld [vmem:[%s5 + $0xb0] sm:$0xff]
        %v1951 = vld [vmem:[%s5 + $0xb8] sm:$0xff]
        %v1952 = vld [vmem:[%s5 + $0xc0] sm:$0xff]
        %v1953 = vld [vmem:[%s5 + $0xc8] sm:$0xff]
        %v1954 = vld [vmem:[%s5 + $0xd0] sm:$0xff]
        %v1955 = vld [vmem:[%s5 + $0xd8] sm:$0xff]
        %v1956 = vld [vmem:[%s5 + $0xe0] sm:$0xff]
        %v1957 = vld [vmem:[%s5 + $0xe8] sm:$0xff]
        %v1958 = vld [vmem:[%s5 + $0xf0] sm:$0xff]
        %v1959 = vld [vmem:[%s5 + $0xf8] sm:$0xff]
        %v1960 = vld [vmem:[#allocation11] sm:$0x1]
        %v1962 = vlaneseq
        %v1963 = vshrl.u32 %v1962, 7
        %v1964 = vsub.s32 0, %v1963
        %v1965 = vrot.slane %v1960, %v1964
        %1967 = vmatprep.subr.mxu0 0.0
        %1968 = vmatpush1.msra.mxu0 %v1928
        %1969 = vmatprep.subr.mxu0 0.0
        %1970 = vmatpush1.msra.mxu0 %v1929
        %1971 = vmatprep.subr.mxu0 0.0
        %1972 = vmatpush1.msra.mxu0 %v1930
        %1973 = vmatprep.subr.mxu0 0.0
        %1974 = vmatpush1.msra.mxu0 %v1931
        %1975 = vmatprep.subr.mxu0 0.0
        %1976 = vmatpush1.msra.mxu0 %v1932
        %1977 = vmatprep.subr.mxu0 0.0
        %1978 = vmatpush1.msra.mxu0 %v1933
        %1979 = vmatprep.subr.mxu0 0.0
        %1980 = vmatpush1.msra.mxu0 %v1934
        %1981 = vmatprep.subr.mxu0 0.0
        %1982 = vmatpush1.msra.mxu0 %v1935
        %1983 = vmatprep.subr.mxu0 0.0
        %1984 = vmatpush1.msra.mxu0 %v1936
        %1985 = vmatprep.subr.mxu0 0.0
        %1986 = vmatpush1.msra.mxu0 %v1937
        %1987 = vmatprep.subr.mxu0 0.0
        %1988 = vmatpush1.msra.mxu0 %v1938
        %1989 = vmatprep.subr.mxu0 0.0
        %1990 = vmatpush1.msra.mxu0 %v1939
        %1991 = vmatprep.subr.mxu0 0.0
        %1992 = vmatpush1.msra.mxu0 %v1940
        %1993 = vmatprep.subr.mxu0 0.0
        %1994 = vmatpush1.msra.mxu0 %v1941
        %1995 = vmatprep.subr.mxu0 0.0
        %1996 = vmatpush1.msra.mxu0 %v1942
        %1997 = vmatprep.subr.mxu0 0.0
        %1998 = vmatpush1.msra.mxu0 %v1943
        %1999 = vmatprep.subr.mxu0 0.0
        %2000 = vmatpush1.msra.mxu0 %v1944
        %2001 = vmatprep.subr.mxu0 0.0
        %2002 = vmatpush1.msra.mxu0 %v1945
        %2003 = vmatprep.subr.mxu0 0.0
        %2004 = vmatpush1.msra.mxu0 %v1946
        %2005 = vmatprep.subr.mxu0 0.0
        %2006 = vmatpush1.msra.mxu0 %v1947
        %2007 = vmatprep.subr.mxu0 0.0
        %2008 = vmatpush1.msra.mxu0 %v1948
        %2009 = vmatprep.subr.mxu0 0.0
        %2010 = vmatpush1.msra.mxu0 %v1949
        %2011 = vmatprep.subr.mxu0 0.0
        %2012 = vmatpush1.msra.mxu0 %v1950
        %2013 = vmatprep.subr.mxu0 0.0
        %2014 = vmatpush1.msra.mxu0 %v1951
        %2015 = vmatprep.subr.mxu0 0.0
        %2016 = vmatpush1.msra.mxu0 %v1952
        %2017 = vmatprep.subr.mxu0 0.0
        %2018 = vmatpush1.msra.mxu0 %v1953
        %2019 = vmatprep.subr.mxu0 0.0
        %2020 = vmatpush1.msra.mxu0 %v1954
        %2021 = vmatprep.subr.mxu0 0.0
        %2022 = vmatpush1.msra.mxu0 %v1955
        %2023 = vmatprep.subr.mxu0 0.0
        %2024 = vmatpush1.msra.mxu0 %v1956
        %2025 = vmatprep.subr.mxu0 0.0
        %2026 = vmatpush1.msra.mxu0 %v1957
        %2027 = vmatprep.subr.mxu0 0.0
        %2028 = vmatpush1.msra.mxu0 %v1958
        %2029 = vmatprep.subr.mxu0 0.0
        %2030 = vmatpush1.msra.mxu0 %v1959
        %2031 = vmatprep.mubr.f32.mxu0 %v1925
        %2032 = vmatmul.mubr.f32.gmra.mrb[0].mxu0 %v1924
        %v2033 = vpop.f32.mrb[0].mxu0
        %v2034 = vadd.f32 %v1965, %v2033
        %v2035 = vpop.f32.mrb[0].mxu0
        %2036 = vmatprep.mubr.f32.mxu0 %v1927
        %2037 = vmatmul.mubr.f32.gmra.mrb[0].mxu0 %v1926
        %v2038 = vpop.f32.mrb[0].mxu0
        %v2039 = vadd.f32 %v1965, %v2038
        %v2040 = vpop.f32.mrb[0].mxu0
        %2041 = vdwg.mxu0
        %vm2042 = vcmask 80896
        %v2043 = vsel %vm2042, %v2034, -inf
        %2044 = vmax.xlane.f32.xlu0 %v2043
        %v2045 = vpop.xlane.xlu0 %2044
        %v2046 = vsel %vm2042, %v2039, -inf
        %2047 = vmax.xlane.f32.xlu0 %v2046
        %v2048 = vpop.xlane.xlu0 %2047
        %v2049 = vsub.f32 %v2034, %v2045
        %v2050 = vsub.f32 %v2039, %v2048
        %v2051 = vmul.f32 %v2049, 1.442695
        %v2052 = vpow.pop %v2051
        %v2053 = vmul.f32 %v2050, 1.442695
        %v2054 = vpow.pop %v2053
        %v2055 = vsel %vm2042, %v2052, 0.0
        %2056 = vadd.xlane.f32.xlu0 %v2055
        %v2057 = vpop.xlane.xlu0 %2056
        %v2058 = vsel %vm2042, %v2054, 0.0
        %2059 = vadd.xlane.f32.xlu0 %v2058
        %v2060 = vpop.xlane.xlu0 %2059
        %v2061 = vrcp.pop %v2057
        %v2062 = vrcp.pop %v2060
        %v2063 = vmul.f32 %v2057, %v2061
        %v2064 = vmul.f32 %v2060, %v2062
        %v2065 = vsub.f32 2.0, %v2063
        %v2066 = vsub.f32 2.0, %v2064
        %v2067 = vmul.f32 %v2061, %v2065
        %v2068 = vmul.f32 %v2062, %v2066
        %v2069 = vmul.f32 %v2052, %v2067
        %v2070 = vmul.f32 %v2054, %v2068
        %2071 = vst [vmem:[%s506] sm:$0xff] %v1292
        %2072 = vst [vmem:[%s506 + $0x8] sm:$0xff] %v1294
        %2073 = vst [vmem:[%s506 + $0x10] sm:$0xff] %v1600
        %2074 = vst.msk [vmem:[%s506 + $0x18] sm:$0xff] %vm1756, %v1602
        %2075 = vst [vmem:[%s506 + $0x20] sm:$0xff] %v1298
        %2076 = vst [vmem:[%s506 + $0x28] sm:$0xff] %v1300
        %2077 = vst [vmem:[%s506 + $0x30] sm:$0xff] %v1606
        %2078 = vst.msk [vmem:[%s506 + $0x38] sm:$0xff] %vm1756, %v1608
        %2079 = vst [vmem:[%s513] sm:$0xff] %v1610
        %2080 = vst [vmem:[%s513 + $0x8] sm:$0xff] %v1611
        %2081 = vst [vmem:[%s513 + $0x10] sm:$0xff] %v1612
        %2082 = vst.msk [vmem:[%s513 + $0x18] sm:$0xff] %vm1756, %v1613
        %2083 = vst [vmem:[%s513 + $0x20] sm:$0xff] %v1614
        %2084 = vst [vmem:[%s513 + $0x28] sm:$0xff] %v1615
        %2085 = vst [vmem:[%s513 + $0x30] sm:$0xff] %v1616
        %2086 = vst.msk [vmem:[%s513 + $0x38] sm:$0xff] %vm1756, %v1617
        %2087 = vst [vmem:[%s520] sm:$0xff] %v1914
        %2088 = vst [vmem:[%s520 + $0x8] sm:$0xff] %v1916
        %2089 = vst [vmem:[%s520 + $0x10] sm:$0xff] %v1920
        %2090 = vst [vmem:[%s520 + $0x18] sm:$0xff] %v1922
        %2091 = vst [vmem:[%s527] sm:$0xff] %v1924
        %2092 = vst [vmem:[%s527 + $0x8] sm:$0xff] %v1925
        %2093 = vst [vmem:[%s527 + $0x10] sm:$0xff] %v1926
        %2094 = vst [vmem:[%s527 + $0x18] sm:$0xff] %v1927
        %2095 = vst.msk [vmem:[%s551] sm:$0xff] %vm2042, %v2034
        %2096 = vst.msk [vmem:[%s551 + $0x8] sm:$0xff] %vm2042, %v2039
        %2097 = vst.msk [vmem:[%s557] sm:$0xff] %vm2042, %v2069
        %2098 = vst.msk [vmem:[%s557 + $0x8] sm:$0xff] %vm2042, %v2070
        %s2099 = sand.u32 %s199, 1
        %s2100 = scalar_lea.sflag [#allocation4], %s2099
        %s2101 = sand.u32 %s199, 1
        %s2102 = smul.addr %s2101, 64
        %s2103 = scalar_lea.vmem [#allocation13], %s2102
        %s2104 = sand.u32 %s39, 1
        %s2105 = scalar_lea.sflag [#allocation15], %s2104
        %s2106 = sand.u32 %s225, 1
        %s2107 = smul.addr %s2106, 64
        %s2108 = scalar_lea.vmem [#allocation14], %s2107
        %s2109 = sand.u32 %s39, 1
        %s2110 = scalar_lea.sflag [#allocation15], %s2109
        %s2111 = sand.u32 %s251, 1
        %s2112 = smul.addr %s2111, 32
        %s2113 = scalar_lea.vmem [#allocation16], %s2112
        %s2114 = sand.u32 %s277, 1
        %s2115 = scalar_lea.sflag [#allocation18], %s2114
        %s2116 = sand.u32 %s277, 1
        %s2117 = smul.addr %s2116, 32
        %s2118 = scalar_lea.vmem [#allocation17], %s2117
        %s2119 = smul.u32 2, %s39
        %p2120 = scmp.lt.s32.totalorder %s2119, 3
        %s2121 = scalar_select %p2120, %s2119, 3
        %s2122 = smul.addr %s2121, 8
        %s2123 = scalar_lea.vmem %s11, %s2122
        %s2124 = smul.u32 2, %s39
        %p2125 = scmp.lt.s32.totalorder %s2124, 3
        %s2126 = scalar_select %p2125, %s2124, 3
        %s2127 = smul.addr %s2126, 8
        %s2128 = scalar_lea.vmem %s12, %s2127
        // Predicated region
        $region73: #{tpu_custom_call.1} parent=47 // pred_check
          %p2129 = pneg %p209
        $region74: #{tpu_custom_call.1} parent=47 // pred_check_branch
          %2131 = sbr.rel (%p2129) target = $region76
        $region75: #{tpu_custom_call.1} parent=47 // pred_region
          %s2132 = smul.u32 2, %s39
          %s2134 = ssub.s32 1024, 1024
          %2135 = vsyncadd %s2100, %s2134
          %s2136 = smul.addr %s2132, 4
          %s2137 = smul.addr %s2136, 128
          %s2138 = scalar_lea.hbm %s7, %s2137
          %s2139 = sshll.u32 %s2103, 4
          %s2140 = int_to_ptr.vmem [resolvable:$true] %s2139
          %2145 = dma.vmem_to_hbm [thread:$0]  %s2140, 1024, %s2138, %s2100, 512, 512, 32
        $region76: #{tpu_custom_call.1} parent=47 // pred_fallthru
          _
        // Predicated region
        $region77: #{tpu_custom_call.1} parent=47 // pred_check
          %p2146 = pneg %p235
        $region78: #{tpu_custom_call.1} parent=47 // pred_check_branch
          %2148 = sbr.rel (%p2146) target = $region80
        $region79: #{tpu_custom_call.1} parent=47 // pred_region
          %s2149 = smul.u32 2, %s39
          %s2151 = ssub.s32 1024, 1024
          %2152 = vsyncadd %s2105, %s2151
          %s2153 = smul.addr %s2149, 4
          %s2154 = smul.addr %s2153, 128
          %s2155 = scalar_lea.hbm %s8, %s2154
          %s2156 = sshll.u32 %s2108, 4
          %s2157 = int_to_ptr.vmem [resolvable:$true] %s2156
          %2162 = dma.vmem_to_hbm [thread:$0]  %s2157, 1024, %s2155, %s2105, 512, 512, 32
        $region80: #{tpu_custom_call.1} parent=47 // pred_fallthru
          _
        // Predicated region
        $region81: #{tpu_custom_call.1} parent=47 // pred_check
          %p2163 = pneg %p261
        $region82: #{tpu_custom_call.1} parent=47 // pred_check_branch
          %2165 = sbr.rel (%p2163) target = $region84
        $region83: #{tpu_custom_call.1} parent=47 // pred_region
          %s2166 = smul.u32 2, %s39
          %s2168 = ssub.s32 512, 512
          %2169 = vsyncadd %s2110, %s2168
          %s2170 = smul.addr %s2166, 2
          %s2171 = smul.addr %s2170, 128
          %s2172 = scalar_lea.hbm %s9, %s2171
          %s2173 = sshll.u32 %s2113, 4
          %s2174 = int_to_ptr.vmem [resolvable:$true] %s2173
          %2179 = dma.vmem_to_hbm [thread:$0]  %s2174, 512, %s2172, %s2110, 256, 256, 16
        $region84: #{tpu_custom_call.1} parent=47 // pred_fallthru
          _
        // Predicated region
        $region85: #{tpu_custom_call.1} parent=47 // pred_check
          %p2180 = pneg %p287
        $region86: #{tpu_custom_call.1} parent=47 // pred_check_branch
          %2182 = sbr.rel (%p2180) target = $region88
        $region87: #{tpu_custom_call.1} parent=47 // pred_region
          %s2183 = smul.u32 2, %s39
          %s2185 = ssub.s32 512, 512
          %2186 = vsyncadd %s2115, %s2185
          %s2187 = smul.addr %s2183, 2
          %s2188 = smul.addr %s2187, 128
          %s2189 = scalar_lea.hbm %s10, %s2188
          %s2190 = sshll.u32 %s2118, 4
          %s2191 = int_to_ptr.vmem [resolvable:$true] %s2190
          %2196 = dma.vmem_to_hbm [thread:$0]  %s2191, 512, %s2189, %s2115, 256, 256, 16
        $region88: #{tpu_custom_call.1} parent=47 // pred_fallthru
          _
        // Predicated region
        $region89: #{tpu_custom_call.1} parent=47 // pred_check
          %p2197 = pneg %p313
        $region90: #{tpu_custom_call.1} parent=47 // pred_check_branch
          %2199 = sbr.rel (%p2197) target = $region92
        $region91: #{tpu_custom_call.1} parent=47 // pred_region
          %s2200 = smul.u32 2, %s39
        $region92: #{tpu_custom_call.1} parent=47 // pred_fallthru
          _
        // Predicated region
        $region93: #{tpu_custom_call.1} parent=47 // pred_check
          %p2201 = pneg %p339
        $region94: #{tpu_custom_call.1} parent=47 // pred_check_branch
          %2203 = sbr.rel (%p2201) target = $region96
        $region95: #{tpu_custom_call.1} parent=47 // pred_region
          %s2204 = smul.u32 2, %s39
        $region96: #{tpu_custom_call.1} parent=47 // pred_fallthru
          _
      $region48: #{tpu_custom_call.1} parent=5 // pred_fallthru
        _
      %p2205 = scmp.le.s32.totalorder 2, %s34
      // Predicated region
      $region97: #{tpu_custom_call.1} parent=5 // pred_check
        %p2206 = pneg %p2205
      $region98: #{tpu_custom_call.1} parent=5 // pred_check_branch
        %2208 = sbr.rel (%p2206) target = $region100
      $region99: #{tpu_custom_call.1} parent=5 // pred_region
        %s2209 = ssub.s32 %s34, 2
        // Predicated region
        $region101: #{tpu_custom_call.1} parent=99 // pred_check
          %p2210 = pneg %p215
        $region102: #{tpu_custom_call.1} parent=99 // pred_check_branch
          %2212 = sbr.rel (%p2210) target = $region104
        $region103: #{tpu_custom_call.1} parent=99 // pred_region
          %s2213 = sand.u32 %s200, 1
          %s2214 = scalar_lea.sflag [#allocation4], %s2213
          %s2215 = sand.u32 %s200, 1
          %s2216 = smul.addr %s2215, 64
          %s2217 = scalar_lea.vmem [#allocation13], %s2216
          %2218 = dma.done %s2214, 1024
        $region104: #{tpu_custom_call.1} parent=99 // pred_fallthru
          _
        // Predicated region
        $region105: #{tpu_custom_call.1} parent=99 // pred_check
          %p2219 = pneg %p241
        $region106: #{tpu_custom_call.1} parent=99 // pred_check_branch
          %2221 = sbr.rel (%p2219) target = $region108
        $region107: #{tpu_custom_call.1} parent=99 // pred_region
          %s2222 = sand.u32 %s40, 1
          %s2223 = scalar_lea.sflag [#allocation15], %s2222
          %s2224 = sand.u32 %s226, 1
          %s2225 = smul.addr %s2224, 64
          %s2226 = scalar_lea.vmem [#allocation14], %s2225
          %2227 = dma.done %s2223, 1024
        $region108: #{tpu_custom_call.1} parent=99 // pred_fallthru
          _
        // Predicated region
        $region109: #{tpu_custom_call.1} parent=99 // pred_check
          %p2228 = pneg %p267
        $region110: #{tpu_custom_call.1} parent=99 // pred_check_branch
          %2230 = sbr.rel (%p2228) target = $region112
        $region111: #{tpu_custom_call.1} parent=99 // pred_region
          %s2231 = sand.u32 %s40, 1
          %s2232 = scalar_lea.sflag [#allocation15], %s2231
          %s2233 = sand.u32 %s252, 1
          %s2234 = smul.addr %s2233, 32
          %s2235 = scalar_lea.vmem [#allocation16], %s2234
          %2236 = dma.done %s2232, 512
        $region112: #{tpu_custom_call.1} parent=99 // pred_fallthru
          _
        // Predicated region
        $region113: #{tpu_custom_call.1} parent=99 // pred_check
          %p2237 = pneg %p293
        $region114: #{tpu_custom_call.1} parent=99 // pred_check_branch
          %2239 = sbr.rel (%p2237) target = $region116
        $region115: #{tpu_custom_call.1} parent=99 // pred_region
          %s2240 = sand.u32 %s278, 1
          %s2241 = scalar_lea.sflag [#allocation18], %s2240
          %s2242 = sand.u32 %s278, 1
          %s2243 = smul.addr %s2242, 32
          %s2244 = scalar_lea.vmem [#allocation17], %s2243
          %2245 = dma.done %s2241, 512
        $region116: #{tpu_custom_call.1} parent=99 // pred_fallthru
          _
        // Predicated region
        $region117: #{tpu_custom_call.1} parent=99 // pred_check
          %p2246 = pneg %p319
        $region118: #{tpu_custom_call.1} parent=99 // pred_check_branch
          %2248 = sbr.rel (%p2246) target = $region120
        $region119: #{tpu_custom_call.1} parent=99 // pred_region
          %s2249 = smul.u32 2, %s40
          %p2250 = scmp.lt.s32.totalorder %s2249, 3
          %s2251 = scalar_select %p2250, %s2249, 3
          %s2252 = smul.addr %s2251, 8
          %s2253 = scalar_lea.vmem %s11, %s2252
        $region120: #{tpu_custom_call.1} parent=99 // pred_fallthru
          _
        // Predicated region
        $region121: #{tpu_custom_call.1} parent=99 // pred_check
          %p2254 = pneg %p345
        $region122: #{tpu_custom_call.1} parent=99 // pred_check_branch
          %2256 = sbr.rel (%p2254) target = $region124
        $region123: #{tpu_custom_call.1} parent=99 // pred_region
          %s2257 = smul.u32 2, %s40
          %p2258 = scmp.lt.s32.totalorder %s2257, 3
          %s2259 = scalar_select %p2258, %s2257, 3
          %s2260 = smul.addr %s2259, 8
          %s2261 = scalar_lea.vmem %s12, %s2260
        $region124: #{tpu_custom_call.1} parent=99 // pred_fallthru
          _
      $region100: #{tpu_custom_call.1} parent=5 // pred_fallthru
        _
    $region6: #{tpu_custom_call.1} parent=1 // loop_footer
      %s38 = sadd.s32 1, %s34
    $region7: #{tpu_custom_call.1} parent=1 // loop_footer_branch
      %33 = sbr.rel target = $region3
    $region8: #{tpu_custom_call.1} parent=1 // loop_exit
      _
    %2262 = vsyncpa [#allocation3], 1
    %s2263 = scalar_lea.sflag [#allocation3], 1
    %2264 = vsyncpa %s2263, 1
    %2265 = vsyncpa [#allocation6], 1
    %2266 = vsyncpa [#allocation9], 1
    %2267 = vsyncpa [#allocation12], 1
    %2268 = vsyncpa [#allocation4], 1
    %s2269 = scalar_lea.sflag [#allocation4], 1
    %2270 = vsyncpa %s2269, 1
    %2271 = vsyncpa [#allocation15], 1
    %s2272 = scalar_lea.sflag [#allocation15], 1
    %2273 = vsyncpa %s2272, 1
    %2274 = vsyncpa [#allocation18], 1
    %s2275 = scalar_lea.sflag [#allocation18], 1
    %2276 = vsyncpa %s2275, 1

// kernel: tpu_custom_call.1
$region0: #{tpu_custom_call.1}
  #allocation0 [shape = 'u32[]', space=smem, size = 0x4, offset = 0x4, fixed_abs, tag = 'smem constant byte address 0x4 - core index']
  #allocation1 [shape = 'u32[144,128]{1,0:T(1,128)}', space=vmem, size = 0x12000, scoped, tag = 'internal scratch']
  %s0 = inlined_call_operand.hbm [shape: f32[28,784], index: 0, kind: input, shape index: {}]
  %s1 = inlined_call_operand.hbm [shape: f32[784,500], index: 1, kind: input, shape index: {}]
  %s2 = inlined_call_operand.hbm [shape: f32[1,500], index: 2, kind: input, shape index: {}]
  %s3 = inlined_call_operand.hbm [shape: f32[500,256], index: 3, kind: input, shape index: {}]
  %s4 = inlined_call_operand.hbm [shape: f32[1,256], index: 4, kind: input, shape index: {}]
  %s5 = inlined_call_operand.vmem [shape: f32[256,10], index: 5, kind: input, shape index: {}]
  %s6 = inlined_call_operand.hbm [shape: f32[1,10], index: 6, kind: input, shape index: {}]
  %s7 = inlined_call_operand.hbm [shape: f32[28,500], index: 7, kind: output, shape index: {0}]
  %s8 = inlined_call_operand.hbm [shape: f32[28,500], index: 8, kind: output, shape index: {1}]
  %s9 = inlined_call_operand.hbm [shape: f32[28,256], index: 9, kind: output, shape index: {2}]
  %s10 = inlined_call_operand.hbm [shape: f32[28,256], index: 10, kind: output, shape index: {3}]
  %s11 = inlined_call_operand.vmem [shape: f32[28,10], index: 11, kind: output, shape index: {4}]
  %s12 = inlined_call_operand.vmem [shape: f32[28,10], index: 12, kind: output, shape index: {5}]
  %13 = xla_tuple %s7, %s8, %s9, %s10, %s11, %s12
  %s14 = sld [smem:[#allocation0]]
  $region125: #{tpu_custom_call.1} parent=0
    _
  %s16 = ssub.s32 1, %s14
  %s17 = scalar_select 0, %s16, %s14
  $region1: #{tpu_custom_call.1} parent=0
    #allocation2 [shape = 'u8[114688]{0}', space=vmem, size = 0x1c000, scoped, tag = 'input window, operand 0']
    #allocation3 [shape = 's32[2]{0}', space=sflag, size = 0x8, scoped, tag = 'scoped memory for tpu_custom_call.1']
    #allocation4 [shape = 's32[2]{0}', space=sflag, size = 0x8, scoped, tag = 'scoped memory for tpu_custom_call.1']
    #allocation5 [shape = 'u8[1605632]{0}', space=vmem, size = 0x188000, scoped, tag = 'input window, operand 1, single buffered']
    #allocation6 [shape = 's32[1]{0}', space=sflag, size = 0x4, scoped, tag = 'scoped memory for tpu_custom_call.1']
    #allocation7 [shape = 'u8[2048]{0}', space=vmem, size = 0x800, scoped, tag = 'input window, operand 2, single buffered']
    #allocation8 [shape = 'u8[516096]{0}', space=vmem, size = 0x7e000, scoped, tag = 'input window, operand 3, single buffered']
    #allocation9 [shape = 's32[1]{0}', space=sflag, size = 0x4, scoped, tag = 'scoped memory for tpu_custom_call.1']
    #allocation10 [shape = 'u8[1024]{0}', space=vmem, size = 0x400, scoped, tag = 'input window, operand 4, single buffered']
    #allocation11 [shape = 'u8[512]{0}', space=vmem, size = 0x400, scoped, tag = 'input window, operand 6, single buffered']
    #allocation12 [shape = 's32[1]{0}', space=sflag, size = 0x4, scoped, tag = 'scoped memory for tpu_custom_call.1']
    #allocation13 [shape = 'u8[65536]{0}', space=vmem, size = 0x10000, scoped, tag = 'output window, operand 0']
    #allocation14 [shape = 'u8[65536]{0}', space=vmem, size = 0x10000, scoped, tag = 'output window, operand 1']
    #allocation15 [shape = 's32[2]{0}', space=sflag, size = 0x8, scoped, tag = 'scoped memory for tpu_custom_call.1']
    #allocation16 [shape = 'u8[32768]{0}', space=vmem, size = 0x8000, scoped, tag = 'output window, operand 2']
    #allocation17 [shape = 'u8[32768]{0}', space=vmem, size = 0x8000, scoped, tag = 'output window, operand 3']
    #allocation18 [shape = 's32[2]{0}', space=sflag, size = 0x8, scoped, tag = 'scoped memory for tpu_custom_call.1']
    %18 = vsyncpa [#allocation3], 0
    %s19 = scalar_lea.sflag [#allocation3], 1
    %20 = vsyncpa %s19, 0
    %21 = vsyncpa [#allocation6], 0
    %22 = vsyncpa [#allocation9], 0
    %23 = vsyncpa [#allocation12], 0
    %24 = vsyncpa [#allocation4], 0
    %s25 = scalar_lea.sflag [#allocation4], 1
    %26 = vsyncpa %s25, 0
    %27 = vsyncpa [#allocation15], 0
    %s28 = scalar_lea.sflag [#allocation15], 1
    %29 = vsyncpa %s28, 0
    %30 = vsyncpa [#allocation18], 0
    %s31 = scalar_lea.sflag [#allocation18], 1
    %32 = vsyncpa %s31, 0
    loop: start=0, step=1, limit=4
    $region2: #{tpu_custom_call.1} parent=1 // loop_pre_header
      _
    $region3: #{tpu_custom_call.1} parent=1 // loop_header
      %s34 = sphi 0, %s38
      %p35 = scmp.ge.s32.totalorder %s34, 4
      %s44 = sphi 0, %s46
      %s47 = sphi 0, %s44
      %s48 = sphi 0, %s47
      %s64 = sphi 0, %s48
      %s68 = sphi 0, %s68
      %s70 = sphi 0, %s68
      %s71 = sphi 0, %s70
      %s85 = sphi 0, %s71
      %s89 = sphi 0, %s89
      %s91 = sphi 0, %s89
      %s92 = sphi 0, %s91
      %s106 = sphi 0, %s92
      %s110 = sphi 0, %s110
      %s112 = sphi 0, %s110
      %s113 = sphi 0, %s112
      %s127 = sphi 0, %s113
      %s131 = sphi 0, %s131
      %s133 = sphi 0, %s131
      %s134 = sphi 0, %s133
      %s148 = sphi 0, %s134
      %s152 = sphi 0, %s152
      %s154 = sphi 0, %s152
      %s155 = sphi 0, %s154
      %s169 = sphi 0, %s155
      %s173 = sphi 0, %s173
      %s175 = sphi 0, %s173
      %s176 = sphi 0, %s175
      %s190 = sphi 0, %s176
      %s196 = sphi 0, %s198
      %s199 = sphi 0, %s196
      %s200 = sphi 0, %s199
      %s216 = sphi 0, %s200
      %s222 = sphi 0, %s224
      %s225 = sphi 0, %s222
      %s226 = sphi 0, %s225
      %s242 = sphi 0, %s226
      %s248 = sphi 0, %s250
      %s251 = sphi 0, %s248
      %s252 = sphi 0, %s251
      %s268 = sphi 0, %s252
      %s274 = sphi 0, %s276
      %s277 = sphi 0, %s274
      %s278 = sphi 0, %s277
      %s294 = sphi 0, %s278
      %s300 = sphi 0, %s302
      %s303 = sphi 0, %s300
      %s304 = sphi 0, %s303
      %s320 = sphi 0, %s304
      %s326 = sphi 0, %s328
      %s329 = sphi 0, %s326
      %s330 = sphi 0, %s329
      %s346 = sphi 0, %s330
    $region4: #{tpu_custom_call.1} parent=1 // loop_header_branch
      %37 = sbr.rel (%p35) target = $region8
    $region5: #{tpu_custom_call.1} parent=1 // loop_body
      %s39 = ssub.s32 %s34, 1
      %s40 = ssub.s32 %s34, 2
      %s41 = sadd.s32 %s34, 1
      %s42 = ssub.s32 %s34, %s41
      %p43 = scmp.eq.s32.totalorder %s42, 0
      %s45 = sadd.s32 %s44, 1
      %s46 = scalar_select %p43, %s44, %s45
      %p49 = pneg %p43
      %p50 = scmp.eq.s32.totalorder %s34, 1
      %p51 = por %p49, %p50
      %p52 = scmp.ne.s32.totalorder %s44, %s47
      %p53 = scmp.eq.s32.totalorder %s34, 0
      %p54 = por %p52, %p53
      %p55 = scmp.ne.s32.totalorder %s44, %s47
      %p56 = scmp.eq.s32.totalorder %s39, 1
      %p57 = por %p55, %p56
      %p58 = scmp.ne.s32.totalorder %s47, %s48
      %p59 = scmp.eq.s32.totalorder %s39, 0
      %p60 = por %p58, %p59
      %p61 = scmp.ne.s32.totalorder %s47, %s48
      %p62 = scmp.eq.s32.totalorder %s40, 1
      %p63 = por %p61, %p62
      %p65 = scmp.ne.s32.totalorder %s48, %s64
      %p66 = scmp.eq.s32.totalorder %s40, 0
      %p67 = por %p65, %p66
      %s69 = sadd.s32 %s68, 1
      %p72 = scmp.eq.s32.totalorder %s34, 1
      %p73 = scmp.ne.s32.totalorder %s68, %s70
      %p74 = scmp.eq.s32.totalorder %s34, 0
      %p75 = por %p73, %p74
      %p76 = scmp.ne.s32.totalorder %s68, %s70
      %p77 = scmp.eq.s32.totalorder %s39, 1
      %p78 = por %p76, %p77
      %p79 = scmp.ne.s32.totalorder %s70, %s71
      %p80 = scmp.eq.s32.totalorder %s39, 0
      %p81 = por %p79, %p80
      %p82 = scmp.ne.s32.totalorder %s70, %s71
      %p83 = scmp.eq.s32.totalorder %s40, 1
      %p84 = por %p82, %p83
      %p86 = scmp.ne.s32.totalorder %s71, %s85
      %p87 = scmp.eq.s32.totalorder %s40, 0
      %p88 = por %p86, %p87
      %s90 = sadd.s32 %s89, 1
      %p93 = scmp.eq.s32.totalorder %s34, 1
      %p94 = scmp.ne.s32.totalorder %s89, %s91
      %p95 = scmp.eq.s32.totalorder %s34, 0
      %p96 = por %p94, %p95
      %p97 = scmp.ne.s32.totalorder %s89, %s91
      %p98 = scmp.eq.s32.totalorder %s39, 1
      %p99 = por %p97, %p98
      %p100 = scmp.ne.s32.totalorder %s91, %s92
      %p101 = scmp.eq.s32.totalorder %s39, 0
      %p102 = por %p100, %p101
      %p103 = scmp.ne.s32.totalorder %s91, %s92
      %p104 = scmp.eq.s32.totalorder %s40, 1
      %p105 = por %p103, %p104
      %p107 = scmp.ne.s32.totalorder %s92, %s106
      %p108 = scmp.eq.s32.totalorder %s40, 0
      %p109 = por %p107, %p108
      %s111 = sadd.s32 %s110, 1
      %p114 = scmp.eq.s32.totalorder %s34, 1
      %p115 = scmp.ne.s32.totalorder %s110, %s112
      %p116 = scmp.eq.s32.totalorder %s34, 0
      %p117 = por %p115, %p116
      %p118 = scmp.ne.s32.totalorder %s110, %s112
      %p119 = scmp.eq.s32.totalorder %s39, 1
      %p120 = por %p118, %p119
      %p121 = scmp.ne.s32.totalorder %s112, %s113
      %p122 = scmp.eq.s32.totalorder %s39, 0
      %p123 = por %p121, %p122
      %p124 = scmp.ne.s32.totalorder %s112, %s113
      %p125 = scmp.eq.s32.totalorder %s40, 1
      %p126 = por %p124, %p125
      %p128 = scmp.ne.s32.totalorder %s113, %s127
      %p129 = scmp.eq.s32.totalorder %s40, 0
      %p130 = por %p128, %p129
      %s132 = sadd.s32 %s131, 1
      %p135 = scmp.eq.s32.totalorder %s34, 1
      %p136 = scmp.ne.s32.totalorder %s131, %s133
      %p137 = scmp.eq.s32.totalorder %s34, 0
      %p138 = por %p136, %p137
      %p139 = scmp.ne.s32.totalorder %s131, %s133
      %p140 = scmp.eq.s32.totalorder %s39, 1
      %p141 = por %p139, %p140
      %p142 = scmp.ne.s32.totalorder %s133, %s134
      %p143 = scmp.eq.s32.totalorder %s39, 0
      %p144 = por %p142, %p143
      %p145 = scmp.ne.s32.totalorder %s133, %s134
      %p146 = scmp.eq.s32.totalorder %s40, 1
      %p147 = por %p145, %p146
      %p149 = scmp.ne.s32.totalorder %s134, %s148
      %p150 = scmp.eq.s32.totalorder %s40, 0
      %p151 = por %p149, %p150
      %s153 = sadd.s32 %s152, 1
      %p156 = scmp.eq.s32.totalorder %s34, 1
      %p157 = scmp.ne.s32.totalorder %s152, %s154
      %p158 = scmp.eq.s32.totalorder %s34, 0
      %p159 = por %p157, %p158
      %p160 = scmp.ne.s32.totalorder %s152, %s154
      %p161 = scmp.eq.s32.totalorder %s39, 1
      %p162 = por %p160, %p161
      %p163 = scmp.ne.s32.totalorder %s154, %s155
      %p164 = scmp.eq.s32.totalorder %s39, 0
      %p165 = por %p163, %p164
      %p166 = scmp.ne.s32.totalorder %s154, %s155
      %p167 = scmp.eq.s32.totalorder %s40, 1
      %p168 = por %p166, %p167
      %p170 = scmp.ne.s32.totalorder %s155, %s169
      %p171 = scmp.eq.s32.totalorder %s40, 0
      %p172 = por %p170, %p171
      %s174 = sadd.s32 %s173, 1
      %p177 = scmp.eq.s32.totalorder %s34, 1
      %p178 = scmp.ne.s32.totalorder %s173, %s175
      %p179 = scmp.eq.s32.totalorder %s34, 0
      %p180 = por %p178, %p179
      %p181 = scmp.ne.s32.totalorder %s173, %s175
      %p182 = scmp.eq.s32.totalorder %s39, 1
      %p183 = por %p181, %p182
      %p184 = scmp.ne.s32.totalorder %s175, %s176
      %p185 = scmp.eq.s32.totalorder %s39, 0
      %p186 = por %p184, %p185
      %p187 = scmp.ne.s32.totalorder %s175, %s176
      %p188 = scmp.eq.s32.totalorder %s40, 1
      %p189 = por %p187, %p188
      %p191 = scmp.ne.s32.totalorder %s176, %s190
      %p192 = scmp.eq.s32.totalorder %s40, 0
      %p193 = por %p191, %p192
      %s194 = ssub.s32 %s34, %s41
      %p195 = scmp.eq.s32.totalorder %s194, 0
      %s197 = sadd.s32 %s196, 1
      %s198 = scalar_select %p195, %s196, %s197
      %p201 = pneg %p195
      %p202 = scmp.eq.s32.totalorder %s34, 1
      %p203 = por %p201, %p202
      %p204 = scmp.ne.s32.totalorder %s196, %s199
      %p205 = scmp.eq.s32.totalorder %s34, 0
      %p206 = por %p204, %p205
      %p207 = scmp.ne.s32.totalorder %s196, %s199
      %p208 = scmp.eq.s32.totalorder %s39, 1
      %p209 = por %p207, %p208
      %p210 = scmp.ne.s32.totalorder %s199, %s200
      %p211 = scmp.eq.s32.totalorder %s39, 0
      %p212 = por %p210, %p211
      %p213 = scmp.ne.s32.totalorder %s199, %s200
      %p214 = scmp.eq.s32.totalorder %s40, 1
      %p215 = por %p213, %p214
      %p217 = scmp.ne.s32.totalorder %s200, %s216
      %p218 = scmp.eq.s32.totalorder %s40, 0
      %p219 = por %p217, %p218
      %s220 = ssub.s32 %s34, %s41
      %p221 = scmp.eq.s32.totalorder %s220, 0
      %s223 = sadd.s32 %s222, 1
      %s224 = scalar_select %p221, %s222, %s223
      %p227 = pneg %p221
      %p228 = scmp.eq.s32.totalorder %s34, 1
      %p229 = por %p227, %p228
      %p230 = scmp.ne.s32.totalorder %s222, %s225
      %p231 = scmp.eq.s32.totalorder %s34, 0
      %p232 = por %p230, %p231
      %p233 = scmp.ne.s32.totalorder %s222, %s225
      %p234 = scmp.eq.s32.totalorder %s39, 1
      %p235 = por %p233, %p234
      %p236 = scmp.ne.s32.totalorder %s225, %s226
      %p237 = scmp.eq.s32.totalorder %s39, 0
      %p238 = por %p236, %p237
      %p239 = scmp.ne.s32.totalorder %s225, %s226
      %p240 = scmp.eq.s32.totalorder %s40, 1
      %p241 = por %p239, %p240
      %p243 = scmp.ne.s32.totalorder %s226, %s242
      %p244 = scmp.eq.s32.totalorder %s40, 0
      %p245 = por %p243, %p244
      %s246 = ssub.s32 %s34, %s41
      %p247 = scmp.eq.s32.totalorder %s246, 0
      %s249 = sadd.s32 %s248, 1
      %s250 = scalar_select %p247, %s248, %s249
      %p253 = pneg %p247
      %p254 = scmp.eq.s32.totalorder %s34, 1
      %p255 = por %p253, %p254
      %p256 = scmp.ne.s32.totalorder %s248, %s251
      %p257 = scmp.eq.s32.totalorder %s34, 0
      %p258 = por %p256, %p257
      %p259 = scmp.ne.s32.totalorder %s248, %s251
      %p260 = scmp.eq.s32.totalorder %s39, 1
      %p261 = por %p259, %p260
      %p262 = scmp.ne.s32.totalorder %s251, %s252
      %p263 = scmp.eq.s32.totalorder %s39, 0
      %p264 = por %p262, %p263
      %p265 = scmp.ne.s32.totalorder %s251, %s252
      %p266 = scmp.eq.s32.totalorder %s40, 1
      %p267 = por %p265, %p266
      %p269 = scmp.ne.s32.totalorder %s252, %s268
      %p270 = scmp.eq.s32.totalorder %s40, 0
      %p271 = por %p269, %p270
      %s272 = ssub.s32 %s34, %s41
      %p273 = scmp.eq.s32.totalorder %s272, 0
      %s275 = sadd.s32 %s274, 1
      %s276 = scalar_select %p273, %s274, %s275
      %p279 = pneg %p273
      %p280 = scmp.eq.s32.totalorder %s34, 1
      %p281 = por %p279, %p280
      %p282 = scmp.ne.s32.totalorder %s274, %s277
      %p283 = scmp.eq.s32.totalorder %s34, 0
      %p284 = por %p282, %p283
      %p285 = scmp.ne.s32.totalorder %s274, %s277
      %p286 = scmp.eq.s32.totalorder %s39, 1
      %p287 = por %p285, %p286
      %p288 = scmp.ne.s32.totalorder %s277, %s278
      %p289 = scmp.eq.s32.totalorder %s39, 0
      %p290 = por %p288, %p289
      %p291 = scmp.ne.s32.totalorder %s277, %s278
      %p292 = scmp.eq.s32.totalorder %s40, 1
      %p293 = por %p291, %p292
      %p295 = scmp.ne.s32.totalorder %s278, %s294
      %p296 = scmp.eq.s32.totalorder %s40, 0
      %p297 = por %p295, %p296
      %s298 = ssub.s32 %s34, %s41
      %p299 = scmp.eq.s32.totalorder %s298, 0
      %s301 = sadd.s32 %s300, 1
      %s302 = scalar_select %p299, %s300, %s301
      %p305 = pneg %p299
      %p306 = scmp.eq.s32.totalorder %s34, 1
      %p307 = por %p305, %p306
      %p308 = scmp.ne.s32.totalorder %s300, %s303
      %p309 = scmp.eq.s32.totalorder %s34, 0
      %p310 = por %p308, %p309
      %p311 = scmp.ne.s32.totalorder %s300, %s303
      %p312 = scmp.eq.s32.totalorder %s39, 1
      %p313 = por %p311, %p312
      %p314 = scmp.ne.s32.totalorder %s303, %s304
      %p315 = scmp.eq.s32.totalorder %s39, 0
      %p316 = por %p314, %p315
      %p317 = scmp.ne.s32.totalorder %s303, %s304
      %p318 = scmp.eq.s32.totalorder %s40, 1
      %p319 = por %p317, %p318
      %p321 = scmp.ne.s32.totalorder %s304, %s320
      %p322 = scmp.eq.s32.totalorder %s40, 0
      %p323 = por %p321, %p322
      %s324 = ssub.s32 %s34, %s41
      %p325 = scmp.eq.s32.totalorder %s324, 0
      %s327 = sadd.s32 %s326, 1
      %s328 = scalar_select %p325, %s326, %s327
      %p331 = pneg %p325
      %p332 = scmp.eq.s32.totalorder %s34, 1
      %p333 = por %p331, %p332
      %p334 = scmp.ne.s32.totalorder %s326, %s329
      %p335 = scmp.eq.s32.totalorder %s34, 0
      %p336 = por %p334, %p335
      %p337 = scmp.ne.s32.totalorder %s326, %s329
      %p338 = scmp.eq.s32.totalorder %s39, 1
      %p339 = por %p337, %p338
      %p340 = scmp.ne.s32.totalorder %s329, %s330
      %p341 = scmp.eq.s32.totalorder %s39, 0
      %p342 = por %p340, %p341
      %p343 = scmp.ne.s32.totalorder %s329, %s330
      %p344 = scmp.eq.s32.totalorder %s40, 1
      %p345 = por %p343, %p344
      %p347 = scmp.ne.s32.totalorder %s330, %s346
      %p348 = scmp.eq.s32.totalorder %s40, 0
      %p349 = por %p347, %p348
      %p350 = scmp.le.s32.totalorder 1, %s34
      %p351 = scmp.lt.s32.totalorder %s34, 3
      %p352 = pnand %p350, %p351
      %p353 = pneg %p352
      // Predicated region
      $region9: #{tpu_custom_call.1} parent=5 // pred_check
        _
      $region10: #{tpu_custom_call.1} parent=5 // pred_check_branch
        %355 = sbr.rel (%p352) target = $region12
      $region11: #{tpu_custom_call.1} parent=5 // pred_region
        %s356 = ssub.s32 %s34, 1
        // Predicated region
        $region13: #{tpu_custom_call.1} parent=11 // pred_check
          %p357 = pneg %p81
        $region14: #{tpu_custom_call.1} parent=11 // pred_check_branch
          %359 = sbr.rel (%p357) target = $region16
        $region15: #{tpu_custom_call.1} parent=11 // pred_region
          %s361 = ssub.s32 50176, 50176
          %362 = vsyncadd [#allocation6], %s361
          %s363 = sshll.u32 [#allocation5], 4
          %s364 = int_to_ptr.vmem [resolvable:$true] %s363
          %369 = dma.hbm_to_vmem [thread:$0]  %s1, 50176, %s364, [#allocation6], 512, 512, 32
        $region16: #{tpu_custom_call.1} parent=11 // pred_fallthru
          _
        // Predicated region
        $region17: #{tpu_custom_call.1} parent=11 // pred_check
          %p370 = pneg %p102
        $region18: #{tpu_custom_call.1} parent=11 // pred_check_branch
          %372 = sbr.rel (%p370) target = $region20
        $region19: #{tpu_custom_call.1} parent=11 // pred_region
          %s374 = ssub.s32 64, 64
          %375 = vsyncadd [#allocation6], %s374
          %s377 = sshll.u32 [#allocation7], 4
          %s378 = int_to_ptr.vmem [resolvable:$true] %s377
          %380 = dma.hbm_to_vmem [thread:$0]  %s2, 64, %s378, [#allocation6]
        $region20: #{tpu_custom_call.1} parent=11 // pred_fallthru
          _
        // Predicated region
        $region21: #{tpu_custom_call.1} parent=11 // pred_check
          %p381 = pneg %p123
        $region22: #{tpu_custom_call.1} parent=11 // pred_check_branch
          %383 = sbr.rel (%p381) target = $region24
        $region23: #{tpu_custom_call.1} parent=11 // pred_region
          %s385 = ssub.s32 16128, 16128
          %386 = vsyncadd [#allocation9], %s385
          %s387 = sshll.u32 [#allocation8], 4
          %s388 = int_to_ptr.vmem [resolvable:$true] %s387
          %393 = dma.hbm_to_vmem [thread:$0]  %s3, 16128, %s388, [#allocation9], 256, 256, 16
        $region24: #{tpu_custom_call.1} parent=11 // pred_fallthru
          _
        // Predicated region
        $region25: #{tpu_custom_call.1} parent=11 // pred_check
          %p394 = pneg %p144
        $region26: #{tpu_custom_call.1} parent=11 // pred_check_branch
          %396 = sbr.rel (%p394) target = $region28
        $region27: #{tpu_custom_call.1} parent=11 // pred_region
          %s398 = ssub.s32 32, 32
          %399 = vsyncadd [#allocation9], %s398
          %s401 = sshll.u32 [#allocation10], 4
          %s402 = int_to_ptr.vmem [resolvable:$true] %s401
          %404 = dma.hbm_to_vmem [thread:$0]  %s4, 32, %s402, [#allocation9]
        $region28: #{tpu_custom_call.1} parent=11 // pred_fallthru
          _
        // Predicated region
        $region29: #{tpu_custom_call.1} parent=11 // pred_check
          %p405 = pneg %p165
        $region30: #{tpu_custom_call.1} parent=11 // pred_check_branch
          %407 = sbr.rel (%p405) target = $region32
        $region31: #{tpu_custom_call.1} parent=11 // pred_region
          _
        $region32: #{tpu_custom_call.1} parent=11 // pred_fallthru
          _
        // Predicated region
        $region33: #{tpu_custom_call.1} parent=11 // pred_check
          %p408 = pneg %p186
        $region34: #{tpu_custom_call.1} parent=11 // pred_check_branch
          %410 = sbr.rel (%p408) target = $region36
        $region35: #{tpu_custom_call.1} parent=11 // pred_region
          %s412 = ssub.s32 16, 16
          %413 = vsyncadd [#allocation12], %s412
          %s415 = sshll.u32 [#allocation11], 4
          %s416 = int_to_ptr.vmem [resolvable:$true] %s415
          %418 = dma.hbm_to_vmem [thread:$0]  %s6, 16, %s416, [#allocation12]
        $region36: #{tpu_custom_call.1} parent=11 // pred_fallthru
          _
      $region12: #{tpu_custom_call.1} parent=5 // pred_fallthru
        _
      %p419 = scmp.lt.s32.totalorder %s34, 2
      // Predicated region
      $region37: #{tpu_custom_call.1} parent=5 // pred_check
        %p420 = pneg %p419
      $region38: #{tpu_custom_call.1} parent=5 // pred_check_branch
        %422 = sbr.rel (%p420) target = $region40
      $region39: #{tpu_custom_call.1} parent=5 // pred_region
        // Predicated region
        $region41: #{tpu_custom_call.1} parent=39 // pred_check
          %p423 = pneg %p54
        $region42: #{tpu_custom_call.1} parent=39 // pred_check_branch
          %425 = sbr.rel (%p423) target = $region44
        $region43: #{tpu_custom_call.1} parent=39 // pred_region
          %s426 = sand.u32 %s44, 1
          %s427 = scalar_lea.sflag [#allocation3], %s426
          %s428 = sand.u32 %s44, 1
          %s429 = smul.addr %s428, 112
          %s430 = scalar_lea.vmem [#allocation2], %s429
          %s431 = smul.u32 2, %s34
          %s433 = ssub.s32 1792, 1792
          %434 = vsyncadd %s427, %s433
          %s435 = smul.addr %s431, 7
          %s436 = smul.addr %s435, 128
          %s437 = scalar_lea.hbm %s0, %s436
          %s438 = sshll.u32 %s430, 4
          %s439 = int_to_ptr.vmem [resolvable:$true] %s438
          %444 = dma.hbm_to_vmem [thread:$0]  %s437, 1792, %s439, %s427, 896, 896, 56
        $region44: #{tpu_custom_call.1} parent=39 // pred_fallthru
          _
      $region40: #{tpu_custom_call.1} parent=5 // pred_fallthru
        _
      %p445 = scmp.le.s32.totalorder 1, %s34
      %p446 = scmp.lt.s32.totalorder %s34, 3
      %p447 = pnand %p445, %p446
      %p448 = pneg %p447
      // Predicated region
      $region45: #{tpu_custom_call.1} parent=5 // pred_check
        _
      $region46: #{tpu_custom_call.1} parent=5 // pred_check_branch
        %450 = sbr.rel (%p447) target = $region48
      $region47: #{tpu_custom_call.1} parent=5 // pred_region
        %s451 = ssub.s32 %s34, 1
        %s452 = sand.u32 %s47, 1
        %s453 = scalar_lea.sflag [#allocation3], %s452
        %s454 = sand.u32 %s47, 1
        %s455 = smul.addr %s454, 112
        %s456 = scalar_lea.vmem [#allocation2], %s455
        // Predicated region
        $region49: #{tpu_custom_call.1} parent=47 // pred_check
          %p457 = pneg %p60
        $region50: #{tpu_custom_call.1} parent=47 // pred_check_branch
          %459 = sbr.rel (%p457) target = $region52
        $region51: #{tpu_custom_call.1} parent=47 // pred_region
          %460 = dma.done %s453, 1792
        $region52: #{tpu_custom_call.1} parent=47 // pred_fallthru
          _
        // Predicated region
        $region53: #{tpu_custom_call.1} parent=47 // pred_check
          %p461 = pneg %p81
        $region54: #{tpu_custom_call.1} parent=47 // pred_check_branch
          %463 = sbr.rel (%p461) target = $region56
        $region55: #{tpu_custom_call.1} parent=47 // pred_region
          %464 = dma.done [#allocation6], 50176
        $region56: #{tpu_custom_call.1} parent=47 // pred_fallthru
          _
        // Predicated region
        $region57: #{tpu_custom_call.1} parent=47 // pred_check
          %p465 = pneg %p102
        $region58: #{tpu_custom_call.1} parent=47 // pred_check_branch
          %467 = sbr.rel (%p465) target = $region60
        $region59: #{tpu_custom_call.1} parent=47 // pred_region
          %468 = dma.done [#allocation6], 64
        $region60: #{tpu_custom_call.1} parent=47 // pred_fallthru
          _
        // Predicated region
        $region61: #{tpu_custom_call.1} parent=47 // pred_check
          %p469 = pneg %p123
        $region62: #{tpu_custom_call.1} parent=47 // pred_check_branch
          %471 = sbr.rel (%p469) target = $region64
        $region63: #{tpu_custom_call.1} parent=47 // pred_region
          %472 = dma.done [#allocation9], 16128
        $region64: #{tpu_custom_call.1} parent=47 // pred_fallthru
          _
        // Predicated region
        $region65: #{tpu_custom_call.1} parent=47 // pred_check
          %p473 = pneg %p144
        $region66: #{tpu_custom_call.1} parent=47 // pred_check_branch
          %475 = sbr.rel (%p473) target = $region68
        $region67: #{tpu_custom_call.1} parent=47 // pred_region
          %476 = dma.done [#allocation9], 32
        $region68: #{tpu_custom_call.1} parent=47 // pred_fallthru
          _
        // Predicated region
        $region69: #{tpu_custom_call.1} parent=47 // pred_check
          %p477 = pneg %p186
        $region70: #{tpu_custom_call.1} parent=47 // pred_check_branch
          %479 = sbr.rel (%p477) target = $region72
        $region71: #{tpu_custom_call.1} parent=47 // pred_region
          %480 = dma.done [#allocation12], 16
        $region72: #{tpu_custom_call.1} parent=47 // pred_fallthru
          _
        %s481 = sand.u32 %s47, 1
        %s482 = scalar_lea.sflag [#allocation3], %s481
        %s483 = sand.u32 %s47, 1
        %s484 = smul.addr %s483, 112
        %s485 = scalar_lea.vmem [#allocation2], %s484
        %p486 = pneg %p60
        %p487 = pneg %p57
        %p488 = pneg %p81
        %p489 = pneg %p78
        %p490 = pneg %p102
        %p491 = pneg %p99
        %p492 = pneg %p123
        %p493 = pneg %p120
        %p494 = pneg %p144
        %p495 = pneg %p141
        %p496 = pneg %p165
        %p497 = pneg %p162
        %p498 = pneg %p186
        %p499 = pneg %p183
        %p500 = pneg %p212
        %p501 = pneg %p209
        %s502 = sand.u32 %s199, 1
        %s503 = scalar_lea.sflag [#allocation4], %s502
        %s504 = sand.u32 %s199, 1
        %s505 = smul.addr %s504, 64
        %s506 = scalar_lea.vmem [#allocation13], %s505
        %p507 = pneg %p238
        %p508 = pneg %p235
        %s509 = sand.u32 %s39, 1
        %s510 = scalar_lea.sflag [#allocation15], %s509
        %s511 = sand.u32 %s225, 1
        %s512 = smul.addr %s511, 64
        %s513 = scalar_lea.vmem [#allocation14], %s512
        %p514 = pneg %p264
        %p515 = pneg %p261
        %s516 = sand.u32 %s39, 1
        %s517 = scalar_lea.sflag [#allocation15], %s516
        %s518 = sand.u32 %s251, 1
        %s519 = smul.addr %s518, 32
        %s520 = scalar_lea.vmem [#allocation16], %s519
        %p521 = pneg %p290
        %p522 = pneg %p287
        %s523 = sand.u32 %s277, 1
        %s524 = scalar_lea.sflag [#allocation18], %s523
        %s525 = sand.u32 %s277, 1
        %s526 = smul.addr %s525, 32
        %s527 = scalar_lea.vmem [#allocation17], %s526
        %p528 = pneg %p316
        %p529 = pneg %p313
        %s530 = smul.u32 2, %s39
        %p531 = scmp.lt.s32.totalorder %s530, 3
        %s532 = scalar_select %p531, %s530, 3
        %s533 = smul.addr %s532, 8
        %s534 = scalar_lea.vmem %s11, %s533
        %p535 = pneg %p342
        %p536 = pneg %p339
        %s537 = smul.u32 2, %s39
        %p538 = scmp.lt.s32.totalorder %s537, 3
        %s539 = scalar_select %p538, %s537, 3
        %s540 = smul.addr %s539, 8
        %s541 = scalar_lea.vmem %s12, %s540
        %s542 = smul.u32 2, %s39
        %s543 = smul.u32 2, %s39
        %s544 = smul.u32 2, %s39
        %s545 = smul.u32 2, %s39
        %s546 = smul.u32 2, %s39
        %s547 = smul.u32 2, %s39
        %p548 = scmp.lt.s32.totalorder %s547, 3
        %s549 = scalar_select %p548, %s547, 3
        %s550 = smul.addr %s549, 8
        %s551 = scalar_lea.vmem %s11, %s550
        %s552 = smul.u32 2, %s39
        %s553 = smul.u32 2, %s39
        %p554 = scmp.lt.s32.totalorder %s553, 3
        %s555 = scalar_select %p554, %s553, 3
        %s556 = smul.addr %s555, 8
        %s557 = scalar_lea.vmem %s12, %s556
        %s558 = smul.u32 2, %s39
        %v559 = vld [vmem:[%s456] sm:$0xff]
        %v560 = vld [vmem:[%s456 + $0x8] sm:$0xff]
        %v561 = vld [vmem:[%s456 + $0x10] sm:$0xff]
        %v562 = vld [vmem:[%s456 + $0x18] sm:$0xff]
        %v563 = vld [vmem:[%s456 + $0x20] sm:$0xff]
        %v564 = vld [vmem:[%s456 + $0x28] sm:$0xff]
        %v565 = vld [vmem:[%s456 + $0x30] sm:$0xff]
        %v566 = vld [vmem:[%s456 + $0x38] sm:$0xff]
        %v567 = vld [vmem:[%s456 + $0x40] sm:$0xff]
        %v568 = vld [vmem:[%s456 + $0x48] sm:$0xff]
        %v569 = vld [vmem:[%s456 + $0x50] sm:$0xff]
        %v570 = vld [vmem:[%s456 + $0x58] sm:$0xff]
        %v571 = vld [vmem:[%s456 + $0x60] sm:$0xff]
        %v572 = vld [vmem:[%s456 + $0x68] sm:$0xff]
        %v573 = vld [vmem:[#allocation5] sm:$0xff]
        %v574 = vld [vmem:[#allocation5 + $0x8] sm:$0xff]
        %v575 = vld [vmem:[#allocation5 + $0x10] sm:$0xff]
        %v576 = vld [vmem:[#allocation5 + $0x18] sm:$0xff]
        %v577 = vld [vmem:[#allocation5 + $0x20] sm:$0xff]
        %v578 = vld [vmem:[#allocation5 + $0x28] sm:$0xff]
        %v579 = vld [vmem:[#allocation5 + $0x30] sm:$0xff]
        %v580 = vld [vmem:[#allocation5 + $0x38] sm:$0xff]
        %v581 = vld [vmem:[#allocation5 + $0x40] sm:$0xff]
        %v582 = vld [vmem:[#allocation5 + $0x48] sm:$0xff]
        %v583 = vld [vmem:[#allocation5 + $0x50] sm:$0xff]
        %v584 = vld [vmem:[#allocation5 + $0x58] sm:$0xff]
        %v585 = vld [vmem:[#allocation5 + $0x60] sm:$0xff]
        %v586 = vld [vmem:[#allocation5 + $0x68] sm:$0xff]
        %v587 = vld [vmem:[#allocation5 + $0x70] sm:$0xff]
        %v588 = vld [vmem:[#allocation5 + $0x78] sm:$0xff]
        %v589 = vld [vmem:[#allocation5 + $0x80] sm:$0xff]
        %v590 = vld [vmem:[#allocation5 + $0x88] sm:$0xff]
        %v591 = vld [vmem:[#allocation5 + $0x90] sm:$0xff]
        %v592 = vld [vmem:[#allocation5 + $0x98] sm:$0xff]
        %v593 = vld [vmem:[#allocation5 + $0xa0] sm:$0xff]
        %v594 = vld [vmem:[#allocation5 + $0xa8] sm:$0xff]
        %v595 = vld [vmem:[#allocation5 + $0xb0] sm:$0xff]
        %v596 = vld [vmem:[#allocation5 + $0xb8] sm:$0xff]
        %v597 = vld [vmem:[#allocation5 + $0xc0] sm:$0xff]
        %v598 = vld [vmem:[#allocation5 + $0xc8] sm:$0xff]
        %v599 = vld [vmem:[#allocation5 + $0xd0] sm:$0xff]
        %v600 = vld [vmem:[#allocation5 + $0xd8] sm:$0xff]
        %v601 = vld [vmem:[#allocation5 + $0xe0] sm:$0xff]
        %v602 = vld [vmem:[#allocation5 + $0xe8] sm:$0xff]
        %v603 = vld [vmem:[#allocation5 + $0xf0] sm:$0xff]
        %v604 = vld [vmem:[#allocation5 + $0xf8] sm:$0xff]
        %v605 = vld [vmem:[#allocation5 + $0x100] sm:$0xff]
        %v606 = vld [vmem:[#allocation5 + $0x108] sm:$0xff]
        %v607 = vld [vmem:[#allocation5 + $0x110] sm:$0xff]
        %v608 = vld [vmem:[#allocation5 + $0x118] sm:$0xff]
        %v609 = vld [vmem:[#allocation5 + $0x120] sm:$0xff]
        %v610 = vld [vmem:[#allocation5 + $0x128] sm:$0xff]
        %v611 = vld [vmem:[#allocation5 + $0x130] sm:$0xff]
        %v612 = vld [vmem:[#allocation5 + $0x138] sm:$0xff]
        %v613 = vld [vmem:[#allocation5 + $0x140] sm:$0xff]
        %v614 = vld [vmem:[#allocation5 + $0x148] sm:$0xff]
        %v615 = vld [vmem:[#allocation5 + $0x150] sm:$0xff]
        %v616 = vld [vmem:[#allocation5 + $0x158] sm:$0xff]
        %v617 = vld [vmem:[#allocation5 + $0x160] sm:$0xff]
        %v618 = vld [vmem:[#allocation5 + $0x168] sm:$0xff]
        %v619 = vld [vmem:[#allocation5 + $0x170] sm:$0xff]
        %v620 = vld [vmem:[#allocation5 + $0x178] sm:$0xff]
        %v621 = vld [vmem:[#allocation5 + $0x180] sm:$0xff]
        %v622 = vld [vmem:[#allocation5 + $0x188] sm:$0xff]
        %v623 = vld [vmem:[#allocation5 + $0x190] sm:$0xff]
        %v624 = vld [vmem:[#allocation5 + $0x198] sm:$0xff]
        %v625 = vld [vmem:[#allocation5 + $0x1a0] sm:$0xff]
        %v626 = vld [vmem:[#allocation5 + $0x1a8] sm:$0xff]
        %v627 = vld [vmem:[#allocation5 + $0x1b0] sm:$0xff]
        %v628 = vld [vmem:[#allocation5 + $0x1b8] sm:$0xff]
        %v629 = vld [vmem:[#allocation5 + $0x1c0] sm:$0xff]
        %v630 = vld [vmem:[#allocation5 + $0x1c8] sm:$0xff]
        %v631 = vld [vmem:[#allocation5 + $0x1d0] sm:$0xff]
        %v632 = vld [vmem:[#allocation5 + $0x1d8] sm:$0xff]
        %v633 = vld [vmem:[#allocation5 + $0x1e0] sm:$0xff]
        %v634 = vld [vmem:[#allocation5 + $0x1e8] sm:$0xff]
        %v635 = vld [vmem:[#allocation5 + $0x1f0] sm:$0xff]
        %v636 = vld [vmem:[#allocation5 + $0x1f8] sm:$0xff]
        %v637 = vld [vmem:[#allocation5 + $0x200] sm:$0xff]
        %v638 = vld [vmem:[#allocation5 + $0x208] sm:$0xff]
        %v639 = vld [vmem:[#allocation5 + $0x210] sm:$0xff]
        %v640 = vld [vmem:[#allocation5 + $0x218] sm:$0xff]
        %v641 = vld [vmem:[#allocation5 + $0x220] sm:$0xff]
        %v642 = vld [vmem:[#allocation5 + $0x228] sm:$0xff]
        %v643 = vld [vmem:[#allocation5 + $0x230] sm:$0xff]
        %v644 = vld [vmem:[#allocation5 + $0x238] sm:$0xff]
        %v645 = vld [vmem:[#allocation5 + $0x240] sm:$0xff]
        %v646 = vld [vmem:[#allocation5 + $0x248] sm:$0xff]
        %v647 = vld [vmem:[#allocation5 + $0x250] sm:$0xff]
        %v648 = vld [vmem:[#allocation5 + $0x258] sm:$0xff]
        %v649 = vld [vmem:[#allocation5 + $0x260] sm:$0xff]
        %v650 = vld [vmem:[#allocation5 + $0x268] sm:$0xff]
        %v651 = vld [vmem:[#allocation5 + $0x270] sm:$0xff]
        %v652 = vld [vmem:[#allocation5 + $0x278] sm:$0xff]
        %v653 = vld [vmem:[#allocation5 + $0x280] sm:$0xff]
        %v654 = vld [vmem:[#allocation5 + $0x288] sm:$0xff]
        %v655 = vld [vmem:[#allocation5 + $0x290] sm:$0xff]
        %v656 = vld [vmem:[#allocation5 + $0x298] sm:$0xff]
        %v657 = vld [vmem:[#allocation5 + $0x2a0] sm:$0xff]
        %v658 = vld [vmem:[#allocation5 + $0x2a8] sm:$0xff]
        %v659 = vld [vmem:[#allocation5 + $0x2b0] sm:$0xff]
        %v660 = vld [vmem:[#allocation5 + $0x2b8] sm:$0xff]
        %v661 = vld [vmem:[#allocation5 + $0x2c0] sm:$0xff]
        %v662 = vld [vmem:[#allocation5 + $0x2c8] sm:$0xff]
        %v663 = vld [vmem:[#allocation5 + $0x2d0] sm:$0xff]
        %v664 = vld [vmem:[#allocation5 + $0x2d8] sm:$0xff]
        %v665 = vld [vmem:[#allocation5 + $0x2e0] sm:$0xff]
        %v666 = vld [vmem:[#allocation5 + $0x2e8] sm:$0xff]
        %v667 = vld [vmem:[#allocation5 + $0x2f0] sm:$0xff]
        %v668 = vld [vmem:[#allocation5 + $0x2f8] sm:$0xff]
        %v669 = vld [vmem:[#allocation5 + $0x300] sm:$0xff]
        %v670 = vld [vmem:[#allocation5 + $0x308] sm:$0xff]
        %v671 = vld [vmem:[#allocation5 + $0x310] sm:$0xff]
        %v672 = vld [vmem:[#allocation5 + $0x318] sm:$0xff]
        %v673 = vld [vmem:[#allocation5 + $0x320] sm:$0xff]
        %v674 = vld [vmem:[#allocation5 + $0x328] sm:$0xff]
        %v675 = vld [vmem:[#allocation5 + $0x330] sm:$0xff]
        %v676 = vld [vmem:[#allocation5 + $0x338] sm:$0xff]
        %v677 = vld [vmem:[#allocation5 + $0x340] sm:$0xff]
        %v678 = vld [vmem:[#allocation5 + $0x348] sm:$0xff]
        %v679 = vld [vmem:[#allocation5 + $0x350] sm:$0xff]
        %v680 = vld [vmem:[#allocation5 + $0x358] sm:$0xff]
        %v681 = vld [vmem:[#allocation5 + $0x360] sm:$0xff]
        %v682 = vld [vmem:[#allocation5 + $0x368] sm:$0xff]
        %v683 = vld [vmem:[#allocation5 + $0x370] sm:$0xff]
        %v684 = vld [vmem:[#allocation5 + $0x378] sm:$0xff]
        %v685 = vld [vmem:[#allocation5 + $0x380] sm:$0xff]
        %v686 = vld [vmem:[#allocation5 + $0x388] sm:$0xff]
        %v687 = vld [vmem:[#allocation5 + $0x390] sm:$0xff]
        %v688 = vld [vmem:[#allocation5 + $0x398] sm:$0xff]
        %v689 = vld [vmem:[#allocation5 + $0x3a0] sm:$0xff]
        %v690 = vld [vmem:[#allocation5 + $0x3a8] sm:$0xff]
        %v691 = vld [vmem:[#allocation5 + $0x3b0] sm:$0xff]
        %v692 = vld [vmem:[#allocation5 + $0x3b8] sm:$0xff]
        %v693 = vld [vmem:[#allocation5 + $0x3c0] sm:$0xff]
        %v694 = vld [vmem:[#allocation5 + $0x3c8] sm:$0xff]
        %v695 = vld [vmem:[#allocation5 + $0x3d0] sm:$0xff]
        %v696 = vld [vmem:[#allocation5 + $0x3d8] sm:$0xff]
        %v697 = vld [vmem:[#allocation5 + $0x3e0] sm:$0xff]
        %v698 = vld [vmem:[#allocation5 + $0x3e8] sm:$0xff]
        %v699 = vld [vmem:[#allocation5 + $0x3f0] sm:$0xff]
        %v700 = vld [vmem:[#allocation5 + $0x3f8] sm:$0xff]
        %v701 = vld [vmem:[#allocation5 + $0x400] sm:$0xff]
        %v702 = vld [vmem:[#allocation5 + $0x408] sm:$0xff]
        %v703 = vld [vmem:[#allocation5 + $0x410] sm:$0xff]
        %v704 = vld [vmem:[#allocation5 + $0x418] sm:$0xff]
        %v705 = vld [vmem:[#allocation5 + $0x420] sm:$0xff]
        %v706 = vld [vmem:[#allocation5 + $0x428] sm:$0xff]
        %v707 = vld [vmem:[#allocation5 + $0x430] sm:$0xff]
        %v708 = vld [vmem:[#allocation5 + $0x438] sm:$0xff]
        %v709 = vld [vmem:[#allocation5 + $0x440] sm:$0xff]
        %v710 = vld [vmem:[#allocation5 + $0x448] sm:$0xff]
        %v711 = vld [vmem:[#allocation5 + $0x450] sm:$0xff]
        %v712 = vld [vmem:[#allocation5 + $0x458] sm:$0xff]
        %v713 = vld [vmem:[#allocation5 + $0x460] sm:$0xff]
        %v714 = vld [vmem:[#allocation5 + $0x468] sm:$0xff]
        %v715 = vld [vmem:[#allocation5 + $0x470] sm:$0xff]
        %v716 = vld [vmem:[#allocation5 + $0x478] sm:$0xff]
        %v717 = vld [vmem:[#allocation5 + $0x480] sm:$0xff]
        %v718 = vld [vmem:[#allocation5 + $0x488] sm:$0xff]
        %v719 = vld [vmem:[#allocation5 + $0x490] sm:$0xff]
        %v720 = vld [vmem:[#allocation5 + $0x498] sm:$0xff]
        %v721 = vld [vmem:[#allocation5 + $0x4a0] sm:$0xff]
        %v722 = vld [vmem:[#allocation5 + $0x4a8] sm:$0xff]
        %v723 = vld [vmem:[#allocation5 + $0x4b0] sm:$0xff]
        %v724 = vld [vmem:[#allocation5 + $0x4b8] sm:$0xff]
        %v725 = vld [vmem:[#allocation5 + $0x4c0] sm:$0xff]
        %v726 = vld [vmem:[#allocation5 + $0x4c8] sm:$0xff]
        %v727 = vld [vmem:[#allocation5 + $0x4d0] sm:$0xff]
        %v728 = vld [vmem:[#allocation5 + $0x4d8] sm:$0xff]
        %v729 = vld [vmem:[#allocation5 + $0x4e0] sm:$0xff]
        %v730 = vld [vmem:[#allocation5 + $0x4e8] sm:$0xff]
        %v731 = vld [vmem:[#allocation5 + $0x4f0] sm:$0xff]
        %v732 = vld [vmem:[#allocation5 + $0x4f8] sm:$0xff]
        %v733 = vld [vmem:[#allocation5 + $0x500] sm:$0xff]
        %v734 = vld [vmem:[#allocation5 + $0x508] sm:$0xff]
        %v735 = vld [vmem:[#allocation5 + $0x510] sm:$0xff]
        %v736 = vld [vmem:[#allocation5 + $0x518] sm:$0xff]
        %v737 = vld [vmem:[#allocation5 + $0x520] sm:$0xff]
        %v738 = vld [vmem:[#allocation5 + $0x528] sm:$0xff]
        %v739 = vld [vmem:[#allocation5 + $0x530] sm:$0xff]
        %v740 = vld [vmem:[#allocation5 + $0x538] sm:$0xff]
        %v741 = vld [vmem:[#allocation5 + $0x540] sm:$0xff]
        %v742 = vld [vmem:[#allocation5 + $0x548] sm:$0xff]
        %v743 = vld [vmem:[#allocation5 + $0x550] sm:$0xff]
        %v744 = vld [vmem:[#allocation5 + $0x558] sm:$0xff]
        %v745 = vld [vmem:[#allocation5 + $0x560] sm:$0xff]
        %v746 = vld [vmem:[#allocation5 + $0x568] sm:$0xff]
        %v747 = vld [vmem:[#allocation5 + $0x570] sm:$0xff]
        %v748 = vld [vmem:[#allocation5 + $0x578] sm:$0xff]
        %v749 = vld [vmem:[#allocation5 + $0x580] sm:$0xff]
        %v750 = vld [vmem:[#allocation5 + $0x588] sm:$0xff]
        %v751 = vld [vmem:[#allocation5 + $0x590] sm:$0xff]
        %v752 = vld [vmem:[#allocation5 + $0x598] sm:$0xff]
        %v753 = vld [vmem:[#allocation5 + $0x5a0] sm:$0xff]
        %v754 = vld [vmem:[#allocation5 + $0x5a8] sm:$0xff]
        %v755 = vld [vmem:[#allocation5 + $0x5b0] sm:$0xff]
        %v756 = vld [vmem:[#allocation5 + $0x5b8] sm:$0xff]
        %v757 = vld [vmem:[#allocation5 + $0x5c0] sm:$0xff]
        %v758 = vld [vmem:[#allocation5 + $0x5c8] sm:$0xff]
        %v759 = vld [vmem:[#allocation5 + $0x5d0] sm:$0xff]
        %v760 = vld [vmem:[#allocation5 + $0x5d8] sm:$0xff]
        %v761 = vld [vmem:[#allocation5 + $0x5e0] sm:$0xff]
        %v762 = vld [vmem:[#allocation5 + $0x5e8] sm:$0xff]
        %v763 = vld [vmem:[#allocation5 + $0x5f0] sm:$0xff]
        %v764 = vld [vmem:[#allocation5 + $0x5f8] sm:$0xff]
        %v765 = vld [vmem:[#allocation5 + $0x600] sm:$0xff]
        %v766 = vld [vmem:[#allocation5 + $0x608] sm:$0xff]
        %v767 = vld [vmem:[#allocation5 + $0x610] sm:$0xff]
        %v768 = vld [vmem:[#allocation5 + $0x618] sm:$0xff]
        %v769 = vld [vmem:[#allocation5 + $0x620] sm:$0xff]
        %v770 = vld [vmem:[#allocation5 + $0x628] sm:$0xff]
        %v771 = vld [vmem:[#allocation5 + $0x630] sm:$0xff]
        %v772 = vld [vmem:[#allocation5 + $0x638] sm:$0xff]
        %v773 = vld [vmem:[#allocation5 + $0x640] sm:$0xff]
        %v774 = vld [vmem:[#allocation5 + $0x648] sm:$0xff]
        %v775 = vld [vmem:[#allocation5 + $0x650] sm:$0xff]
        %v776 = vld [vmem:[#allocation5 + $0x658] sm:$0xff]
        %v777 = vld [vmem:[#allocation5 + $0x660] sm:$0xff]
        %v778 = vld [vmem:[#allocation5 + $0x668] sm:$0xff]
        %v779 = vld [vmem:[#allocation5 + $0x670] sm:$0xff]
        %v780 = vld [vmem:[#allocation5 + $0x678] sm:$0xff]
        %v781 = vld [vmem:[#allocation5 + $0x680] sm:$0xff]
        %v782 = vld [vmem:[#allocation5 + $0x688] sm:$0xff]
        %v783 = vld [vmem:[#allocation5 + $0x690] sm:$0xff]
        %v784 = vld [vmem:[#allocation5 + $0x698] sm:$0xff]
        %v785 = vld [vmem:[#allocation5 + $0x6a0] sm:$0xff]
        %v786 = vld [vmem:[#allocation5 + $0x6a8] sm:$0xff]
        %v787 = vld [vmem:[#allocation5 + $0x6b0] sm:$0xff]
        %v788 = vld [vmem:[#allocation5 + $0x6b8] sm:$0xff]
        %v789 = vld [vmem:[#allocation5 + $0x6c0] sm:$0xff]
        %v790 = vld [vmem:[#allocation5 + $0x6c8] sm:$0xff]
        %v791 = vld [vmem:[#allocation5 + $0x6d0] sm:$0xff]
        %v792 = vld [vmem:[#allocation5 + $0x6d8] sm:$0xff]
        %v793 = vld [vmem:[#allocation5 + $0x6e0] sm:$0xff]
        %v794 = vld [vmem:[#allocation5 + $0x6e8] sm:$0xff]
        %v795 = vld [vmem:[#allocation5 + $0x6f0] sm:$0xff]
        %v796 = vld [vmem:[#allocation5 + $0x6f8] sm:$0xff]
        %v797 = vld [vmem:[#allocation5 + $0x700] sm:$0xff]
        %v798 = vld [vmem:[#allocation5 + $0x708] sm:$0xff]
        %v799 = vld [vmem:[#allocation5 + $0x710] sm:$0xff]
        %v800 = vld [vmem:[#allocation5 + $0x718] sm:$0xff]
        %v801 = vld [vmem:[#allocation5 + $0x720] sm:$0xff]
        %v802 = vld [vmem:[#allocation5 + $0x728] sm:$0xff]
        %v803 = vld [vmem:[#allocation5 + $0x730] sm:$0xff]
        %v804 = vld [vmem:[#allocation5 + $0x738] sm:$0xff]
        %v805 = vld [vmem:[#allocation5 + $0x740] sm:$0xff]
        %v806 = vld [vmem:[#allocation5 + $0x748] sm:$0xff]
        %v807 = vld [vmem:[#allocation5 + $0x750] sm:$0xff]
        %v808 = vld [vmem:[#allocation5 + $0x758] sm:$0xff]
        %v809 = vld [vmem:[#allocation5 + $0x760] sm:$0xff]
        %v810 = vld [vmem:[#allocation5 + $0x768] sm:$0xff]
        %v811 = vld [vmem:[#allocation5 + $0x770] sm:$0xff]
        %v812 = vld [vmem:[#allocation5 + $0x778] sm:$0xff]
        %v813 = vld [vmem:[#allocation5 + $0x780] sm:$0xff]
        %v814 = vld [vmem:[#allocation5 + $0x788] sm:$0xff]
        %v815 = vld [vmem:[#allocation5 + $0x790] sm:$0xff]
        %v816 = vld [vmem:[#allocation5 + $0x798] sm:$0xff]
        %v817 = vld [vmem:[#allocation5 + $0x7a0] sm:$0xff]
        %v818 = vld [vmem:[#allocation5 + $0x7a8] sm:$0xff]
        %v819 = vld [vmem:[#allocation5 + $0x7b0] sm:$0xff]
        %v820 = vld [vmem:[#allocation5 + $0x7b8] sm:$0xff]
        %v821 = vld [vmem:[#allocation5 + $0x7c0] sm:$0xff]
        %v822 = vld [vmem:[#allocation5 + $0x7c8] sm:$0xff]
        %v823 = vld [vmem:[#allocation5 + $0x7d0] sm:$0xff]
        %v824 = vld [vmem:[#allocation5 + $0x7d8] sm:$0xff]
        %v825 = vld [vmem:[#allocation5 + $0x7e0] sm:$0xff]
        %v826 = vld [vmem:[#allocation5 + $0x7e8] sm:$0xff]
        %v827 = vld [vmem:[#allocation5 + $0x7f0] sm:$0xff]
        %v828 = vld [vmem:[#allocation5 + $0x7f8] sm:$0xff]
        %v829 = vld [vmem:[#allocation5 + $0x800] sm:$0xff]
        %v830 = vld [vmem:[#allocation5 + $0x808] sm:$0xff]
        %v831 = vld [vmem:[#allocation5 + $0x810] sm:$0xff]
        %v832 = vld [vmem:[#allocation5 + $0x818] sm:$0xff]
        %v833 = vld [vmem:[#allocation5 + $0x820] sm:$0xff]
        %v834 = vld [vmem:[#allocation5 + $0x828] sm:$0xff]
        %v835 = vld [vmem:[#allocation5 + $0x830] sm:$0xff]
        %v836 = vld [vmem:[#allocation5 + $0x838] sm:$0xff]
        %v837 = vld [vmem:[#allocation5 + $0x840] sm:$0xff]
        %v838 = vld [vmem:[#allocation5 + $0x848] sm:$0xff]
        %v839 = vld [vmem:[#allocation5 + $0x850] sm:$0xff]
        %v840 = vld [vmem:[#allocation5 + $0x858] sm:$0xff]
        %v841 = vld [vmem:[#allocation5 + $0x860] sm:$0xff]
        %v842 = vld [vmem:[#allocation5 + $0x868] sm:$0xff]
        %v843 = vld [vmem:[#allocation5 + $0x870] sm:$0xff]
        %v844 = vld [vmem:[#allocation5 + $0x878] sm:$0xff]
        %v845 = vld [vmem:[#allocation5 + $0x880] sm:$0xff]
        %v846 = vld [vmem:[#allocation5 + $0x888] sm:$0xff]
        %v847 = vld [vmem:[#allocation5 + $0x890] sm:$0xff]
        %v848 = vld [vmem:[#allocation5 + $0x898] sm:$0xff]
        %v849 = vld [vmem:[#allocation5 + $0x8a0] sm:$0xff]
        %v850 = vld [vmem:[#allocation5 + $0x8a8] sm:$0xff]
        %v851 = vld [vmem:[#allocation5 + $0x8b0] sm:$0xff]
        %v852 = vld [vmem:[#allocation5 + $0x8b8] sm:$0xff]
        %v853 = vld [vmem:[#allocation5 + $0x8c0] sm:$0xff]
        %v854 = vld [vmem:[#allocation5 + $0x8c8] sm:$0xff]
        %v855 = vld [vmem:[#allocation5 + $0x8d0] sm:$0xff]
        %v856 = vld [vmem:[#allocation5 + $0x8d8] sm:$0xff]
        %v857 = vld [vmem:[#allocation5 + $0x8e0] sm:$0xff]
        %v858 = vld [vmem:[#allocation5 + $0x8e8] sm:$0xff]
        %v859 = vld [vmem:[#allocation5 + $0x8f0] sm:$0xff]
        %v860 = vld [vmem:[#allocation5 + $0x8f8] sm:$0xff]
        %v861 = vld [vmem:[#allocation5 + $0x900] sm:$0xff]
        %v862 = vld [vmem:[#allocation5 + $0x908] sm:$0xff]
        %v863 = vld [vmem:[#allocation5 + $0x910] sm:$0xff]
        %v864 = vld [vmem:[#allocation5 + $0x918] sm:$0xff]
        %v865 = vld [vmem:[#allocation5 + $0x920] sm:$0xff]
        %v866 = vld [vmem:[#allocation5 + $0x928] sm:$0xff]
        %v867 = vld [vmem:[#allocation5 + $0x930] sm:$0xff]
        %v868 = vld [vmem:[#allocation5 + $0x938] sm:$0xff]
        %v869 = vld [vmem:[#allocation5 + $0x940] sm:$0xff]
        %v870 = vld [vmem:[#allocation5 + $0x948] sm:$0xff]
        %v871 = vld [vmem:[#allocation5 + $0x950] sm:$0xff]
        %v872 = vld [vmem:[#allocation5 + $0x958] sm:$0xff]
        %v873 = vld [vmem:[#allocation5 + $0x960] sm:$0xff]
        %v874 = vld [vmem:[#allocation5 + $0x968] sm:$0xff]
        %v875 = vld [vmem:[#allocation5 + $0x970] sm:$0xff]
        %v876 = vld [vmem:[#allocation5 + $0x978] sm:$0xff]
        %v877 = vld [vmem:[#allocation5 + $0x980] sm:$0xff]
        %v878 = vld [vmem:[#allocation5 + $0x988] sm:$0xff]
        %v879 = vld [vmem:[#allocation5 + $0x990] sm:$0xff]
        %v880 = vld [vmem:[#allocation5 + $0x998] sm:$0xff]
        %v881 = vld [vmem:[#allocation5 + $0x9a0] sm:$0xff]
        %v882 = vld [vmem:[#allocation5 + $0x9a8] sm:$0xff]
        %v883 = vld [vmem:[#allocation5 + $0x9b0] sm:$0xff]
        %v884 = vld [vmem:[#allocation5 + $0x9b8] sm:$0xff]
        %v885 = vld [vmem:[#allocation5 + $0x9c0] sm:$0xff]
        %v886 = vld [vmem:[#allocation5 + $0x9c8] sm:$0xff]
        %v887 = vld [vmem:[#allocation5 + $0x9d0] sm:$0xff]
        %v888 = vld [vmem:[#allocation5 + $0x9d8] sm:$0xff]
        %v889 = vld [vmem:[#allocation5 + $0x9e0] sm:$0xff]
        %v890 = vld [vmem:[#allocation5 + $0x9e8] sm:$0xff]
        %v891 = vld [vmem:[#allocation5 + $0x9f0] sm:$0xff]
        %v892 = vld [vmem:[#allocation5 + $0x9f8] sm:$0xff]
        %v893 = vld [vmem:[#allocation5 + $0xa00] sm:$0xff]
        %v894 = vld [vmem:[#allocation5 + $0xa08] sm:$0xff]
        %v895 = vld [vmem:[#allocation5 + $0xa10] sm:$0xff]
        %v896 = vld [vmem:[#allocation5 + $0xa18] sm:$0xff]
        %v897 = vld [vmem:[#allocation5 + $0xa20] sm:$0xff]
        %v898 = vld [vmem:[#allocation5 + $0xa28] sm:$0xff]
        %v899 = vld [vmem:[#allocation5 + $0xa30] sm:$0xff]
        %v900 = vld [vmem:[#allocation5 + $0xa38] sm:$0xff]
        %v901 = vld [vmem:[#allocation5 + $0xa40] sm:$0xff]
        %v902 = vld [vmem:[#allocation5 + $0xa48] sm:$0xff]
        %v903 = vld [vmem:[#allocation5 + $0xa50] sm:$0xff]
        %v904 = vld [vmem:[#allocation5 + $0xa58] sm:$0xff]
        %v905 = vld [vmem:[#allocation5 + $0xa60] sm:$0xff]
        %v906 = vld [vmem:[#allocation5 + $0xa68] sm:$0xff]
        %v907 = vld [vmem:[#allocation5 + $0xa70] sm:$0xff]
        %v908 = vld [vmem:[#allocation5 + $0xa78] sm:$0xff]
        %v909 = vld [vmem:[#allocation5 + $0xa80] sm:$0xff]
        %v910 = vld [vmem:[#allocation5 + $0xa88] sm:$0xff]
        %v911 = vld [vmem:[#allocation5 + $0xa90] sm:$0xff]
        %v912 = vld [vmem:[#allocation5 + $0xa98] sm:$0xff]
        %v913 = vld [vmem:[#allocation5 + $0xaa0] sm:$0xff]
        %v914 = vld [vmem:[#allocation5 + $0xaa8] sm:$0xff]
        %v915 = vld [vmem:[#allocation5 + $0xab0] sm:$0xff]
        %v916 = vld [vmem:[#allocation5 + $0xab8] sm:$0xff]
        %v917 = vld [vmem:[#allocation5 + $0xac0] sm:$0xff]
        %v918 = vld [vmem:[#allocation5 + $0xac8] sm:$0xff]
        %v919 = vld [vmem:[#allocation5 + $0xad0] sm:$0xff]
        %v920 = vld [vmem:[#allocation5 + $0xad8] sm:$0xff]
        %v921 = vld [vmem:[#allocation5 + $0xae0] sm:$0xff]
        %v922 = vld [vmem:[#allocation5 + $0xae8] sm:$0xff]
        %v923 = vld [vmem:[#allocation5 + $0xaf0] sm:$0xff]
        %v924 = vld [vmem:[#allocation5 + $0xaf8] sm:$0xff]
        %v925 = vld [vmem:[#allocation5 + $0xb00] sm:$0xff]
        %v926 = vld [vmem:[#allocation5 + $0xb08] sm:$0xff]
        %v927 = vld [vmem:[#allocation5 + $0xb10] sm:$0xff]
        %v928 = vld [vmem:[#allocation5 + $0xb18] sm:$0xff]
        %v929 = vld [vmem:[#allocation5 + $0xb20] sm:$0xff]
        %v930 = vld [vmem:[#allocation5 + $0xb28] sm:$0xff]
        %v931 = vld [vmem:[#allocation5 + $0xb30] sm:$0xff]
        %v932 = vld [vmem:[#allocation5 + $0xb38] sm:$0xff]
        %v933 = vld [vmem:[#allocation5 + $0xb40] sm:$0xff]
        %v934 = vld [vmem:[#allocation5 + $0xb48] sm:$0xff]
        %v935 = vld [vmem:[#allocation5 + $0xb50] sm:$0xff]
        %v936 = vld [vmem:[#allocation5 + $0xb58] sm:$0xff]
        %v937 = vld [vmem:[#allocation5 + $0xb60] sm:$0xff]
        %v938 = vld [vmem:[#allocation5 + $0xb68] sm:$0xff]
        %v939 = vld [vmem:[#allocation5 + $0xb70] sm:$0xff]
        %v940 = vld [vmem:[#allocation5 + $0xb78] sm:$0xff]
        %v941 = vld [vmem:[#allocation5 + $0xb80] sm:$0xff]
        %v942 = vld [vmem:[#allocation5 + $0xb88] sm:$0xff]
        %v943 = vld [vmem:[#allocation5 + $0xb90] sm:$0xff]
        %v944 = vld [vmem:[#allocation5 + $0xb98] sm:$0xff]
        %v945 = vld [vmem:[#allocation5 + $0xba0] sm:$0xff]
        %v946 = vld [vmem:[#allocation5 + $0xba8] sm:$0xff]
        %v947 = vld [vmem:[#allocation5 + $0xbb0] sm:$0xff]
        %v948 = vld [vmem:[#allocation5 + $0xbb8] sm:$0xff]
        %v949 = vld [vmem:[#allocation5 + $0xbc0] sm:$0xff]
        %v950 = vld [vmem:[#allocation5 + $0xbc8] sm:$0xff]
        %v951 = vld [vmem:[#allocation5 + $0xbd0] sm:$0xff]
        %v952 = vld [vmem:[#allocation5 + $0xbd8] sm:$0xff]
        %v953 = vld [vmem:[#allocation5 + $0xbe0] sm:$0xff]
        %v954 = vld [vmem:[#allocation5 + $0xbe8] sm:$0xff]
        %v955 = vld [vmem:[#allocation5 + $0xbf0] sm:$0xff]
        %v956 = vld [vmem:[#allocation5 + $0xbf8] sm:$0xff]
        %v957 = vld [vmem:[#allocation5 + $0xc00] sm:$0xff]
        %v958 = vld [vmem:[#allocation5 + $0xc08] sm:$0xff]
        %v959 = vld [vmem:[#allocation5 + $0xc10] sm:$0xff]
        %v960 = vld [vmem:[#allocation5 + $0xc18] sm:$0xff]
        %v961 = vld [vmem:[#allocation5 + $0xc20] sm:$0xff]
        %v962 = vld [vmem:[#allocation5 + $0xc28] sm:$0xff]
        %v963 = vld [vmem:[#allocation5 + $0xc30] sm:$0xff]
        %v964 = vld [vmem:[#allocation5 + $0xc38] sm:$0xff]
        %v965 = vld [vmem:[#allocation7] sm:$0xf]
        %v967 = vlaneseq
        %v968 = vshrl.u32 %v967, 7
        %v969 = vsub.s32 0, %v968
        %v970 = vrot.slane %v965, %v969
        %v971 = vlaneseq
        %v972 = vshrl.u32 %v971, 7
        %v973 = vsub.s32 1, %v972
        %v974 = vrot.slane %v965, %v973
        %v975 = vlaneseq
        %v976 = vshrl.u32 %v975, 7
        %v977 = vsub.s32 2, %v976
        %v978 = vrot.slane %v965, %v977
        %v979 = vlaneseq
        %v980 = vshrl.u32 %v979, 7
        %v981 = vsub.s32 3, %v980
        %v982 = vrot.slane %v965, %v981
        %vm987 = vcmask 130048
        %v989 = vsel %vm987, %v565, 0
        %v992 = vsel %vm987, %v572, 0
        %994 = vmatprep.subr.mxu0 %v574
        %995 = vmatpush1.msra.mxu0 %v573
        %996 = vmatprep.subr.mxu0 %v578
        %997 = vmatpush1.msra.mxu0 %v577
        %998 = vmatprep.subr.mxu0 %v582
        %999 = vmatpush1.msra.mxu0 %v581
        %1000 = vmatprep.subr.mxu0 %v586
        %1001 = vmatpush1.msra.mxu0 %v585
        %1002 = vmatprep.subr.mxu0 %v590
        %1003 = vmatpush1.msra.mxu0 %v589
        %1004 = vmatprep.subr.mxu0 %v594
        %1005 = vmatpush1.msra.mxu0 %v593
        %1006 = vmatprep.subr.mxu0 %v598
        %1007 = vmatpush1.msra.mxu0 %v597
        %1008 = vmatprep.subr.mxu0 %v602
        %1009 = vmatpush1.msra.mxu0 %v601
        %1010 = vmatprep.subr.mxu0 %v606
        %1011 = vmatpush1.msra.mxu0 %v605
        %1012 = vmatprep.subr.mxu0 %v610
        %1013 = vmatpush1.msra.mxu0 %v609
        %1014 = vmatprep.subr.mxu0 %v614
        %1015 = vmatpush1.msra.mxu0 %v613
        %1016 = vmatprep.subr.mxu0 %v618
        %1017 = vmatpush1.msra.mxu0 %v617
        %1018 = vmatprep.subr.mxu0 %v622
        %1019 = vmatpush1.msra.mxu0 %v621
        %1020 = vmatprep.subr.mxu0 %v626
        %1021 = vmatpush1.msra.mxu0 %v625
        %1022 = vmatprep.subr.mxu0 %v630
        %1023 = vmatpush1.msra.mxu0 %v629
        %1024 = vmatprep.subr.mxu0 %v634
        %1025 = vmatpush1.msra.mxu0 %v633
        %1026 = vmatprep.subr.mxu0 %v638
        %1027 = vmatpush1.msra.mxu0 %v637
        %1028 = vmatprep.subr.mxu0 %v642
        %1029 = vmatpush1.msra.mxu0 %v641
        %1030 = vmatprep.subr.mxu0 %v646
        %1031 = vmatpush1.msra.mxu0 %v645
        %1032 = vmatprep.subr.mxu0 %v650
        %1033 = vmatpush1.msra.mxu0 %v649
        %1034 = vmatprep.subr.mxu0 %v654
        %1035 = vmatpush1.msra.mxu0 %v653
        %1036 = vmatprep.subr.mxu0 %v658
        %1037 = vmatpush1.msra.mxu0 %v657
        %1038 = vmatprep.subr.mxu0 %v662
        %1039 = vmatpush1.msra.mxu0 %v661
        %1040 = vmatprep.subr.mxu0 %v666
        %1041 = vmatpush1.msra.mxu0 %v665
        %1042 = vmatprep.subr.mxu0 %v670
        %1043 = vmatpush1.msra.mxu0 %v669
        %1044 = vmatprep.subr.mxu0 %v674
        %1045 = vmatpush1.msra.mxu0 %v673
        %1046 = vmatprep.subr.mxu0 %v678
        %1047 = vmatpush1.msra.mxu0 %v677
        %1048 = vmatprep.subr.mxu0 %v682
        %1049 = vmatpush1.msra.mxu0 %v681
        %1050 = vmatprep.subr.mxu0 %v686
        %1051 = vmatpush1.msra.mxu0 %v685
        %1052 = vmatprep.subr.mxu0 %v690
        %1053 = vmatpush1.msra.mxu0 %v689
        %1054 = vmatprep.subr.mxu0 %v694
        %1055 = vmatpush1.msra.mxu0 %v693
        %1056 = vmatprep.subr.mxu0 %v698
        %1057 = vmatpush1.msra.mxu0 %v697
        %1058 = vmatprep.mubr.f32.mxu0 %v560
        %1059 = vmatmul.mubr.f32.gmra.mrb[0].mxu0 %v559
        %v1060 = vpop.f32.mrb[0].mxu0
        %v1061 = vadd.f32 %v970, %v1060
        %v1062 = vpop.f32.mrb[0].mxu0
        %v1063 = vadd.f32 %v974, %v1062
        %1064 = vmatprep.mubr.f32.mxu0 %v567
        %1065 = vmatmul.mubr.f32.gmra.mrb[0].mxu0 %v566
        %v1066 = vpop.f32.mrb[0].mxu0
        %v1067 = vadd.f32 %v970, %v1066
        %v1068 = vpop.f32.mrb[0].mxu0
        %v1069 = vadd.f32 %v974, %v1068
        %1070 = vdwg.mxu0
        %1071 = vmatprep.subr.mxu0 %v702
        %1072 = vmatpush1.msra.mxu0 %v701
        %1073 = vmatprep.subr.mxu0 %v706
        %1074 = vmatpush1.msra.mxu0 %v705
        %1075 = vmatprep.subr.mxu0 %v710
        %1076 = vmatpush1.msra.mxu0 %v709
        %1077 = vmatprep.subr.mxu0 %v714
        %1078 = vmatpush1.msra.mxu0 %v713
        %1079 = vmatprep.subr.mxu0 %v718
        %1080 = vmatpush1.msra.mxu0 %v717
        %1081 = vmatprep.subr.mxu0 %v722
        %1082 = vmatpush1.msra.mxu0 %v721
        %1083 = vmatprep.subr.mxu0 %v726
        %1084 = vmatpush1.msra.mxu0 %v725
        %1085 = vmatprep.subr.mxu0 %v730
        %1086 = vmatpush1.msra.mxu0 %v729
        %1087 = vmatprep.subr.mxu0 %v734
        %1088 = vmatpush1.msra.mxu0 %v733
        %1089 = vmatprep.subr.mxu0 %v738
        %1090 = vmatpush1.msra.mxu0 %v737
        %1091 = vmatprep.subr.mxu0 %v742
        %1092 = vmatpush1.msra.mxu0 %v741
        %1093 = vmatprep.subr.mxu0 %v746
        %1094 = vmatpush1.msra.mxu0 %v745
        %1095 = vmatprep.subr.mxu0 %v750
        %1096 = vmatpush1.msra.mxu0 %v749
        %1097 = vmatprep.subr.mxu0 %v754
        %1098 = vmatpush1.msra.mxu0 %v753
        %1099 = vmatprep.subr.mxu0 %v758
        %1100 = vmatpush1.msra.mxu0 %v757
        %1101 = vmatprep.subr.mxu0 %v762
        %1102 = vmatpush1.msra.mxu0 %v761
        %1103 = vmatprep.subr.mxu0 %v766
        %1104 = vmatpush1.msra.mxu0 %v765
        %1105 = vmatprep.subr.mxu0 %v770
        %1106 = vmatpush1.msra.mxu0 %v769
        %1107 = vmatprep.subr.mxu0 %v774
        %1108 = vmatpush1.msra.mxu0 %v773
        %1109 = vmatprep.subr.mxu0 %v778
        %1110 = vmatpush1.msra.mxu0 %v777
        %1111 = vmatprep.subr.mxu0 %v782
        %1112 = vmatpush1.msra.mxu0 %v781
        %1113 = vmatprep.subr.mxu0 %v786
        %1114 = vmatpush1.msra.mxu0 %v785
        %1115 = vmatprep.subr.mxu0 %v790
        %1116 = vmatpush1.msra.mxu0 %v789
        %1117 = vmatprep.subr.mxu0 %v794
        %1118 = vmatpush1.msra.mxu0 %v793
        %1119 = vmatprep.subr.mxu0 %v798
        %1120 = vmatpush1.msra.mxu0 %v797
        %1121 = vmatprep.subr.mxu0 %v802
        %1122 = vmatpush1.msra.mxu0 %v801
        %1123 = vmatprep.subr.mxu0 %v806
        %1124 = vmatpush1.msra.mxu0 %v805
        %1125 = vmatprep.subr.mxu0 %v810
        %1126 = vmatpush1.msra.mxu0 %v809
        %1127 = vmatprep.subr.mxu0 %v814
        %1128 = vmatpush1.msra.mxu0 %v813
        %1129 = vmatprep.subr.mxu0 %v818
        %1130 = vmatpush1.msra.mxu0 %v817
        %1131 = vmatprep.subr.mxu0 %v822
        %1132 = vmatpush1.msra.mxu0 %v821
        %1133 = vmatprep.subr.mxu0 %v826
        %1134 = vmatpush1.msra.mxu0 %v825
        %1135 = vmatprep.mubr.f32.mxu0 %v562
        %1136 = vmatmul.mubr.f32.gmra.mrb[0].mxu0 %v561
        %v1137 = vpop.f32.mrb[0].mxu0
        %v1138 = vadd.f32 %v1061, %v1137
        %v1139 = vpop.f32.mrb[0].mxu0
        %v1140 = vadd.f32 %v1063, %v1139
        %1141 = vmatprep.mubr.f32.mxu0 %v569
        %1142 = vmatmul.mubr.f32.gmra.mrb[0].mxu0 %v568
        %v1143 = vpop.f32.mrb[0].mxu0
        %v1144 = vadd.f32 %v1067, %v1143
        %v1145 = vpop.f32.mrb[0].mxu0
        %v1146 = vadd.f32 %v1069, %v1145
        %1147 = vdwg.mxu0
        %1148 = vmatprep.subr.mxu0 %v830
        %1149 = vmatpush1.msra.mxu0 %v829
        %1150 = vmatprep.subr.mxu0 %v834
        %1151 = vmatpush1.msra.mxu0 %v833
        %1152 = vmatprep.subr.mxu0 %v838
        %1153 = vmatpush1.msra.mxu0 %v837
        %1154 = vmatprep.subr.mxu0 %v842
        %1155 = vmatpush1.msra.mxu0 %v841
        %1156 = vmatprep.subr.mxu0 %v846
        %1157 = vmatpush1.msra.mxu0 %v845
        %1158 = vmatprep.subr.mxu0 %v850
        %1159 = vmatpush1.msra.mxu0 %v849
        %1160 = vmatprep.subr.mxu0 %v854
        %1161 = vmatpush1.msra.mxu0 %v853
        %1162 = vmatprep.subr.mxu0 %v858
        %1163 = vmatpush1.msra.mxu0 %v857
        %1164 = vmatprep.subr.mxu0 %v862
        %1165 = vmatpush1.msra.mxu0 %v861
        %1166 = vmatprep.subr.mxu0 %v866
        %1167 = vmatpush1.msra.mxu0 %v865
        %1168 = vmatprep.subr.mxu0 %v870
        %1169 = vmatpush1.msra.mxu0 %v869
        %1170 = vmatprep.subr.mxu0 %v874
        %1171 = vmatpush1.msra.mxu0 %v873
        %1172 = vmatprep.subr.mxu0 %v878
        %1173 = vmatpush1.msra.mxu0 %v877
        %1174 = vmatprep.subr.mxu0 %v882
        %1175 = vmatpush1.msra.mxu0 %v881
        %1176 = vmatprep.subr.mxu0 %v886
        %1177 = vmatpush1.msra.mxu0 %v885
        %1178 = vmatprep.subr.mxu0 %v890
        %1179 = vmatpush1.msra.mxu0 %v889
        %1180 = vmatprep.subr.mxu0 %v894
        %1181 = vmatpush1.msra.mxu0 %v893
        %1182 = vmatprep.subr.mxu0 %v898
        %1183 = vmatpush1.msra.mxu0 %v897
        %1184 = vmatprep.subr.mxu0 %v902
        %1185 = vmatpush1.msra.mxu0 %v901
        %1186 = vmatprep.subr.mxu0 %v906
        %1187 = vmatpush1.msra.mxu0 %v905
        %1188 = vmatprep.subr.mxu0 %v910
        %1189 = vmatpush1.msra.mxu0 %v909
        %1190 = vmatprep.subr.mxu0 %v914
        %1191 = vmatpush1.msra.mxu0 %v913
        %1192 = vmatprep.subr.mxu0 %v918
        %1193 = vmatpush1.msra.mxu0 %v917
        %1194 = vmatprep.subr.mxu0 %v922
        %1195 = vmatpush1.msra.mxu0 %v921
        %1196 = vmatprep.subr.mxu0 %v926
        %1197 = vmatpush1.msra.mxu0 %v925
        %1198 = vmatprep.subr.mxu0 %v930
        %1199 = vmatpush1.msra.mxu0 %v929
        %1200 = vmatprep.subr.mxu0 %v934
        %1201 = vmatpush1.msra.mxu0 %v933
        %1202 = vmatprep.subr.mxu0 %v938
        %1203 = vmatpush1.msra.mxu0 %v937
        %1204 = vmatprep.subr.mxu0 %v942
        %1205 = vmatpush1.msra.mxu0 %v941
        %1206 = vmatprep.subr.mxu0 %v946
        %1207 = vmatpush1.msra.mxu0 %v945
        %1208 = vmatprep.subr.mxu0 %v950
        %1209 = vmatpush1.msra.mxu0 %v949
        %1210 = vmatprep.subr.mxu0 %v954
        %1211 = vmatpush1.msra.mxu0 %v953
        %1212 = vmatprep.mubr.f32.mxu0 %v564
        %1213 = vmatmul.mubr.f32.gmra.mrb[0].mxu0 %v563
        %v1214 = vpop.f32.mrb[0].mxu0
        %v1215 = vadd.f32 %v1138, %v1214
        %v1216 = vpop.f32.mrb[0].mxu0
        %v1217 = vadd.f32 %v1140, %v1216
        %1218 = vmatprep.mubr.f32.mxu0 %v571
        %1219 = vmatmul.mubr.f32.gmra.mrb[0].mxu0 %v570
        %v1220 = vpop.f32.mrb[0].mxu0
        %v1221 = vadd.f32 %v1144, %v1220
        %v1222 = vpop.f32.mrb[0].mxu0
        %v1223 = vadd.f32 %v1146, %v1222
        %1224 = vdwg.mxu0
        %1225 = vmatprep.subr.mxu0 %v958
        %1226 = vmatpush1.msra.mxu0 %v957
        %1227 = vmatprep.subr.mxu0 %v962
        %1228 = vmatpush1.msra.mxu0 %v961
        %1229 = vmatprep.subr.mxu0 0.0
        %1230 = vmatpush1.msra.mxu0 0.0
        %1231 = vmatprep.subr.mxu0 0.0
        %1232 = vmatpush1.msra.mxu0 0.0
        %1233 = vmatprep.subr.mxu0 0.0
        %1234 = vmatpush1.msra.mxu0 0.0
        %1235 = vmatprep.subr.mxu0 0.0
        %1236 = vmatpush1.msra.mxu0 0.0
        %1237 = vmatprep.subr.mxu0 0.0
        %1238 = vmatpush1.msra.mxu0 0.0
        %1239 = vmatprep.subr.mxu0 0.0
        %1240 = vmatpush1.msra.mxu0 0.0
        %1241 = vmatprep.subr.mxu0 0.0
        %1242 = vmatpush1.msra.mxu0 0.0
        %1243 = vmatprep.subr.mxu0 0.0
        %1244 = vmatpush1.msra.mxu0 0.0
        %1245 = vmatprep.subr.mxu0 0.0
        %1246 = vmatpush1.msra.mxu0 0.0
        %1247 = vmatprep.subr.mxu0 0.0
        %1248 = vmatpush1.msra.mxu0 0.0
        %1249 = vmatprep.subr.mxu0 0.0
        %1250 = vmatpush1.msra.mxu0 0.0
        %1251 = vmatprep.subr.mxu0 0.0
        %1252 = vmatpush1.msra.mxu0 0.0
        %1253 = vmatprep.subr.mxu0 0.0
        %1254 = vmatpush1.msra.mxu0 0.0
        %1255 = vmatprep.subr.mxu0 0.0
        %1256 = vmatpush1.msra.mxu0 0.0
        %1257 = vmatprep.subr.mxu0 0.0
        %1258 = vmatpush1.msra.mxu0 0.0
        %1259 = vmatprep.subr.mxu0 0.0
        %1260 = vmatpush1.msra.mxu0 0.0
        %1261 = vmatprep.subr.mxu0 0.0
        %1262 = vmatpush1.msra.mxu0 0.0
        %1263 = vmatprep.subr.mxu0 0.0
        %1264 = vmatpush1.msra.mxu0 0.0
        %1265 = vmatprep.subr.mxu0 0.0
        %1266 = vmatpush1.msra.mxu0 0.0
        %1267 = vmatprep.subr.mxu0 0.0
        %1268 = vmatpush1.msra.mxu0 0.0
        %1269 = vmatprep.subr.mxu0 0.0
        %1270 = vmatpush1.msra.mxu0 0.0
        %1271 = vmatprep.subr.mxu0 0.0
        %1272 = vmatpush1.msra.mxu0 0.0
        %1273 = vmatprep.subr.mxu0 0.0
        %1274 = vmatpush1.msra.mxu0 0.0
        %1275 = vmatprep.subr.mxu0 0.0
        %1276 = vmatpush1.msra.mxu0 0.0
        %1277 = vmatprep.subr.mxu0 0.0
        %1278 = vmatpush1.msra.mxu0 0.0
        %1279 = vmatprep.subr.mxu0 0.0
        %1280 = vmatpush1.msra.mxu0 0.0
        %1281 = vmatprep.subr.mxu0 0.0
        %1282 = vmatpush1.msra.mxu0 0.0
        %1283 = vmatprep.subr.mxu0 0.0
        %1284 = vmatpush1.msra.mxu0 0.0
        %1285 = vmatprep.subr.mxu0 0.0
        %1286 = vmatpush1.msra.mxu0 0.0
        %1287 = vmatprep.subr.mxu0 0.0
        %1288 = vmatpush1.msra.mxu0 0.0
        %1289 = vmatprep.mubr.f32.mxu0 0.0
        %1290 = vmatmul.mubr.f32.gmra.mrb[0].mxu0 %v989
        %v1291 = vpop.f32.mrb[0].mxu0
        %v1292 = vadd.f32 %v1215, %v1291
        %v1293 = vpop.f32.mrb[0].mxu0
        %v1294 = vadd.f32 %v1217, %v1293
        %1295 = vmatprep.mubr.f32.mxu0 0.0
        %1296 = vmatmul.mubr.f32.gmra.mrb[0].mxu0 %v992
        %v1297 = vpop.f32.mrb[0].mxu0
        %v1298 = vadd.f32 %v1221, %v1297
        %v1299 = vpop.f32.mrb[0].mxu0
        %v1300 = vadd.f32 %v1223, %v1299
        %1301 = vdwg.mxu0
        %1302 = vmatprep.subr.mxu0 %v576
        %1303 = vmatpush1.msra.mxu0 %v575
        %1304 = vmatprep.subr.mxu0 %v580
        %1305 = vmatpush1.msra.mxu0 %v579
        %1306 = vmatprep.subr.mxu0 %v584
        %1307 = vmatpush1.msra.mxu0 %v583
        %1308 = vmatprep.subr.mxu0 %v588
        %1309 = vmatpush1.msra.mxu0 %v587
        %1310 = vmatprep.subr.mxu0 %v592
        %1311 = vmatpush1.msra.mxu0 %v591
        %1312 = vmatprep.subr.mxu0 %v596
        %1313 = vmatpush1.msra.mxu0 %v595
        %1314 = vmatprep.subr.mxu0 %v600
        %1315 = vmatpush1.msra.mxu0 %v599
        %1316 = vmatprep.subr.mxu0 %v604
        %1317 = vmatpush1.msra.mxu0 %v603
        %1318 = vmatprep.subr.mxu0 %v608
        %1319 = vmatpush1.msra.mxu0 %v607
        %1320 = vmatprep.subr.mxu0 %v612
        %1321 = vmatpush1.msra.mxu0 %v611
        %1322 = vmatprep.subr.mxu0 %v616
        %1323 = vmatpush1.msra.mxu0 %v615
        %1324 = vmatprep.subr.mxu0 %v620
        %1325 = vmatpush1.msra.mxu0 %v619
        %1326 = vmatprep.subr.mxu0 %v624
        %1327 = vmatpush1.msra.mxu0 %v623
        %1328 = vmatprep.subr.mxu0 %v628
        %1329 = vmatpush1.msra.mxu0 %v627
        %1330 = vmatprep.subr.mxu0 %v632
        %1331 = vmatpush1.msra.mxu0 %v631
        %1332 = vmatprep.subr.mxu0 %v636
        %1333 = vmatpush1.msra.mxu0 %v635
        %1334 = vmatprep.subr.mxu0 %v640
        %1335 = vmatpush1.msra.mxu0 %v639
        %1336 = vmatprep.subr.mxu0 %v644
        %1337 = vmatpush1.msra.mxu0 %v643
        %1338 = vmatprep.subr.mxu0 %v648
        %1339 = vmatpush1.msra.mxu0 %v647
        %1340 = vmatprep.subr.mxu0 %v652
        %1341 = vmatpush1.msra.mxu0 %v651
        %1342 = vmatprep.subr.mxu0 %v656
        %1343 = vmatpush1.msra.mxu0 %v655
        %1344 = vmatprep.subr.mxu0 %v660
        %1345 = vmatpush1.msra.mxu0 %v659
        %1346 = vmatprep.subr.mxu0 %v664
        %1347 = vmatpush1.msra.mxu0 %v663
        %1348 = vmatprep.subr.mxu0 %v668
        %1349 = vmatpush1.msra.mxu0 %v667
        %1350 = vmatprep.subr.mxu0 %v672
        %1351 = vmatpush1.msra.mxu0 %v671
        %1352 = vmatprep.subr.mxu0 %v676
        %1353 = vmatpush1.msra.mxu0 %v675
        %1354 = vmatprep.subr.mxu0 %v680
        %1355 = vmatpush1.msra.mxu0 %v679
        %1356 = vmatprep.subr.mxu0 %v684
        %1357 = vmatpush1.msra.mxu0 %v683
        %1358 = vmatprep.subr.mxu0 %v688
        %1359 = vmatpush1.msra.mxu0 %v687
        %1360 = vmatprep.subr.mxu0 %v692
        %1361 = vmatpush1.msra.mxu0 %v691
        %1362 = vmatprep.subr.mxu0 %v696
        %1363 = vmatpush1.msra.mxu0 %v695
        %1364 = vmatprep.subr.mxu0 %v700
        %1365 = vmatpush1.msra.mxu0 %v699
        %1366 = vmatprep.mubr.f32.mxu0 %v560
        %1367 = vmatmul.mubr.f32.gmra.mrb[0].mxu0 %v559
        %v1368 = vpop.f32.mrb[0].mxu0
        %v1369 = vadd.f32 %v978, %v1368
        %v1370 = vpop.f32.mrb[0].mxu0
        %v1371 = vadd.f32 %v982, %v1370
        %1372 = vmatprep.mubr.f32.mxu0 %v567
        %1373 = vmatmul.mubr.f32.gmra.mrb[0].mxu0 %v566
        %v1374 = vpop.f32.mrb[0].mxu0
        %v1375 = vadd.f32 %v978, %v1374
        %v1376 = vpop.f32.mrb[0].mxu0
        %v1377 = vadd.f32 %v982, %v1376
        %1378 = vdwg.mxu0
        %1379 = vmatprep.subr.mxu0 %v704
        %1380 = vmatpush1.msra.mxu0 %v703
        %1381 = vmatprep.subr.mxu0 %v708
        %1382 = vmatpush1.msra.mxu0 %v707
        %1383 = vmatprep.subr.mxu0 %v712
        %1384 = vmatpush1.msra.mxu0 %v711
        %1385 = vmatprep.subr.mxu0 %v716
        %1386 = vmatpush1.msra.mxu0 %v715
        %1387 = vmatprep.subr.mxu0 %v720
        %1388 = vmatpush1.msra.mxu0 %v719
        %1389 = vmatprep.subr.mxu0 %v724
        %1390 = vmatpush1.msra.mxu0 %v723
        %1391 = vmatprep.subr.mxu0 %v728
        %1392 = vmatpush1.msra.mxu0 %v727
        %1393 = vmatprep.subr.mxu0 %v732
        %1394 = vmatpush1.msra.mxu0 %v731
        %1395 = vmatprep.subr.mxu0 %v736
        %1396 = vmatpush1.msra.mxu0 %v735
        %1397 = vmatprep.subr.mxu0 %v740
        %1398 = vmatpush1.msra.mxu0 %v739
        %1399 = vmatprep.subr.mxu0 %v744
        %1400 = vmatpush1.msra.mxu0 %v743
        %1401 = vmatprep.subr.mxu0 %v748
        %1402 = vmatpush1.msra.mxu0 %v747
        %1403 = vmatprep.subr.mxu0 %v752
        %1404 = vmatpush1.msra.mxu0 %v751
        %1405 = vmatprep.subr.mxu0 %v756
        %1406 = vmatpush1.msra.mxu0 %v755
        %1407 = vmatprep.subr.mxu0 %v760
        %1408 = vmatpush1.msra.mxu0 %v759
        %1409 = vmatprep.subr.mxu0 %v764
        %1410 = vmatpush1.msra.mxu0 %v763
        %1411 = vmatprep.subr.mxu0 %v768
        %1412 = vmatpush1.msra.mxu0 %v767
        %1413 = vmatprep.subr.mxu0 %v772
        %1414 = vmatpush1.msra.mxu0 %v771
        %1415 = vmatprep.subr.mxu0 %v776
        %1416 = vmatpush1.msra.mxu0 %v775
        %1417 = vmatprep.subr.mxu0 %v780
        %1418 = vmatpush1.msra.mxu0 %v779
        %1419 = vmatprep.subr.mxu0 %v784
        %1420 = vmatpush1.msra.mxu0 %v783
        %1421 = vmatprep.subr.mxu0 %v788
        %1422 = vmatpush1.msra.mxu0 %v787
        %1423 = vmatprep.subr.mxu0 %v792
        %1424 = vmatpush1.msra.mxu0 %v791
        %1425 = vmatprep.subr.mxu0 %v796
        %1426 = vmatpush1.msra.mxu0 %v795
        %1427 = vmatprep.subr.mxu0 %v800
        %1428 = vmatpush1.msra.mxu0 %v799
        %1429 = vmatprep.subr.mxu0 %v804
        %1430 = vmatpush1.msra.mxu0 %v803
        %1431 = vmatprep.subr.mxu0 %v808
        %1432 = vmatpush1.msra.mxu0 %v807
        %1433 = vmatprep.subr.mxu0 %v812
        %1434 = vmatpush1.msra.mxu0 %v811
        %1435 = vmatprep.subr.mxu0 %v816
        %1436 = vmatpush1.msra.mxu0 %v815
        %1437 = vmatprep.subr.mxu0 %v820
        %1438 = vmatpush1.msra.mxu0 %v819
        %1439 = vmatprep.subr.mxu0 %v824
        %1440 = vmatpush1.msra.mxu0 %v823
        %1441 = vmatprep.subr.mxu0 %v828
        %1442 = vmatpush1.msra.mxu0 %v827
        %1443 = vmatprep.mubr.f32.mxu0 %v562
        %1444 = vmatmul.mubr.f32.gmra.mrb[0].mxu0 %v561
        %v1445 = vpop.f32.mrb[0].mxu0
        %v1446 = vadd.f32 %v1369, %v1445
        %v1447 = vpop.f32.mrb[0].mxu0
        %v1448 = vadd.f32 %v1371, %v1447
        %1449 = vmatprep.mubr.f32.mxu0 %v569
        %1450 = vmatmul.mubr.f32.gmra.mrb[0].mxu0 %v568
        %v1451 = vpop.f32.mrb[0].mxu0
        %v1452 = vadd.f32 %v1375, %v1451
        %v1453 = vpop.f32.mrb[0].mxu0
        %v1454 = vadd.f32 %v1377, %v1453
        %1455 = vdwg.mxu0
        %1456 = vmatprep.subr.mxu0 %v832
        %1457 = vmatpush1.msra.mxu0 %v831
        %1458 = vmatprep.subr.mxu0 %v836
        %1459 = vmatpush1.msra.mxu0 %v835
        %1460 = vmatprep.subr.mxu0 %v840
        %1461 = vmatpush1.msra.mxu0 %v839
        %1462 = vmatprep.subr.mxu0 %v844
        %1463 = vmatpush1.msra.mxu0 %v843
        %1464 = vmatprep.subr.mxu0 %v848
        %1465 = vmatpush1.msra.mxu0 %v847
        %1466 = vmatprep.subr.mxu0 %v852
        %1467 = vmatpush1.msra.mxu0 %v851
        %1468 = vmatprep.subr.mxu0 %v856
        %1469 = vmatpush1.msra.mxu0 %v855
        %1470 = vmatprep.subr.mxu0 %v860
        %1471 = vmatpush1.msra.mxu0 %v859
        %1472 = vmatprep.subr.mxu0 %v864
        %1473 = vmatpush1.msra.mxu0 %v863
        %1474 = vmatprep.subr.mxu0 %v868
        %1475 = vmatpush1.msra.mxu0 %v867
        %1476 = vmatprep.subr.mxu0 %v872
        %1477 = vmatpush1.msra.mxu0 %v871
        %1478 = vmatprep.subr.mxu0 %v876
        %1479 = vmatpush1.msra.mxu0 %v875
        %1480 = vmatprep.subr.mxu0 %v880
        %1481 = vmatpush1.msra.mxu0 %v879
        %1482 = vmatprep.subr.mxu0 %v884
        %1483 = vmatpush1.msra.mxu0 %v883
        %1484 = vmatprep.subr.mxu0 %v888
        %1485 = vmatpush1.msra.mxu0 %v887
        %1486 = vmatprep.subr.mxu0 %v892
        %1487 = vmatpush1.msra.mxu0 %v891
        %1488 = vmatprep.subr.mxu0 %v896
        %1489 = vmatpush1.msra.mxu0 %v895
        %1490 = vmatprep.subr.mxu0 %v900
        %1491 = vmatpush1.msra.mxu0 %v899
        %1492 = vmatprep.subr.mxu0 %v904
        %1493 = vmatpush1.msra.mxu0 %v903
        %1494 = vmatprep.subr.mxu0 %v908
        %1495 = vmatpush1.msra.mxu0 %v907
        %1496 = vmatprep.subr.mxu0 %v912
        %1497 = vmatpush1.msra.mxu0 %v911
        %1498 = vmatprep.subr.mxu0 %v916
        %1499 = vmatpush1.msra.mxu0 %v915
        %1500 = vmatprep.subr.mxu0 %v920
        %1501 = vmatpush1.msra.mxu0 %v919
        %1502 = vmatprep.subr.mxu0 %v924
        %1503 = vmatpush1.msra.mxu0 %v923
        %1504 = vmatprep.subr.mxu0 %v928
        %1505 = vmatpush1.msra.mxu0 %v927
        %1506 = vmatprep.subr.mxu0 %v932
        %1507 = vmatpush1.msra.mxu0 %v931
        %1508 = vmatprep.subr.mxu0 %v936
        %1509 = vmatpush1.msra.mxu0 %v935
        %1510 = vmatprep.subr.mxu0 %v940
        %1511 = vmatpush1.msra.mxu0 %v939
        %1512 = vmatprep.subr.mxu0 %v944
        %1513 = vmatpush1.msra.mxu0 %v943
        %1514 = vmatprep.subr.mxu0 %v948
        %1515 = vmatpush1.msra.mxu0 %v947
        %1516 = vmatprep.subr.mxu0 %v952
        %1517 = vmatpush1.msra.mxu0 %v951
        %1518 = vmatprep.subr.mxu0 %v956
        %1519 = vmatpush1.msra.mxu0 %v955
        %1520 = vmatprep.mubr.f32.mxu0 %v564
        %1521 = vmatmul.mubr.f32.gmra.mrb[0].mxu0 %v563
        %v1522 = vpop.f32.mrb[0].mxu0
        %v1523 = vadd.f32 %v1446, %v1522
        %v1524 = vpop.f32.mrb[0].mxu0
        %v1525 = vadd.f32 %v1448, %v1524
        %1526 = vmatprep.mubr.f32.mxu0 %v571
        %1527 = vmatmul.mubr.f32.gmra.mrb[0].mxu0 %v570
        %v1528 = vpop.f32.mrb[0].mxu0
        %v1529 = vadd.f32 %v1452, %v1528
        %v1530 = vpop.f32.mrb[0].mxu0
        %v1531 = vadd.f32 %v1454, %v1530
        %1532 = vdwg.mxu0
        %1533 = vmatprep.subr.mxu0 %v960
        %1534 = vmatpush1.msra.mxu0 %v959
        %1535 = vmatprep.subr.mxu0 %v964
        %1536 = vmatpush1.msra.mxu0 %v963
        %1537 = vmatprep.subr.mxu0 0.0
        %1538 = vmatpush1.msra.mxu0 0.0
        %1539 = vmatprep.subr.mxu0 0.0
        %1540 = vmatpush1.msra.mxu0 0.0
        %1541 = vmatprep.subr.mxu0 0.0
        %1542 = vmatpush1.msra.mxu0 0.0
        %1543 = vmatprep.subr.mxu0 0.0
        %1544 = vmatpush1.msra.mxu0 0.0
        %1545 = vmatprep.subr.mxu0 0.0
        %1546 = vmatpush1.msra.mxu0 0.0
        %1547 = vmatprep.subr.mxu0 0.0
        %1548 = vmatpush1.msra.mxu0 0.0
        %1549 = vmatprep.subr.mxu0 0.0
        %1550 = vmatpush1.msra.mxu0 0.0
        %1551 = vmatprep.subr.mxu0 0.0
        %1552 = vmatpush1.msra.mxu0 0.0
        %1553 = vmatprep.subr.mxu0 0.0
        %1554 = vmatpush1.msra.mxu0 0.0
        %1555 = vmatprep.subr.mxu0 0.0
        %1556 = vmatpush1.msra.mxu0 0.0
        %1557 = vmatprep.subr.mxu0 0.0
        %1558 = vmatpush1.msra.mxu0 0.0
        %1559 = vmatprep.subr.mxu0 0.0
        %1560 = vmatpush1.msra.mxu0 0.0
        %1561 = vmatprep.subr.mxu0 0.0
        %1562 = vmatpush1.msra.mxu0 0.0
        %1563 = vmatprep.subr.mxu0 0.0
        %1564 = vmatpush1.msra.mxu0 0.0
        %1565 = vmatprep.subr.mxu0 0.0
        %1566 = vmatpush1.msra.mxu0 0.0
        %1567 = vmatprep.subr.mxu0 0.0
        %1568 = vmatpush1.msra.mxu0 0.0
        %1569 = vmatprep.subr.mxu0 0.0
        %1570 = vmatpush1.msra.mxu0 0.0
        %1571 = vmatprep.subr.mxu0 0.0
        %1572 = vmatpush1.msra.mxu0 0.0
        %1573 = vmatprep.subr.mxu0 0.0
        %1574 = vmatpush1.msra.mxu0 0.0
        %1575 = vmatprep.subr.mxu0 0.0
        %1576 = vmatpush1.msra.mxu0 0.0
        %1577 = vmatprep.subr.mxu0 0.0
        %1578 = vmatpush1.msra.mxu0 0.0
        %1579 = vmatprep.subr.mxu0 0.0
        %1580 = vmatpush1.msra.mxu0 0.0
        %1581 = vmatprep.subr.mxu0 0.0
        %1582 = vmatpush1.msra.mxu0 0.0
        %1583 = vmatprep.subr.mxu0 0.0
        %1584 = vmatpush1.msra.mxu0 0.0
        %1585 = vmatprep.subr.mxu0 0.0
        %1586 = vmatpush1.msra.mxu0 0.0
        %1587 = vmatprep.subr.mxu0 0.0
        %1588 = vmatpush1.msra.mxu0 0.0
        %1589 = vmatprep.subr.mxu0 0.0
        %1590 = vmatpush1.msra.mxu0 0.0
        %1591 = vmatprep.subr.mxu0 0.0
        %1592 = vmatpush1.msra.mxu0 0.0
        %1593 = vmatprep.subr.mxu0 0.0
        %1594 = vmatpush1.msra.mxu0 0.0
        %1595 = vmatprep.subr.mxu0 0.0
        %1596 = vmatpush1.msra.mxu0 0.0
        %1597 = vmatprep.mubr.f32.mxu0 0.0
        %1598 = vmatmul.mubr.f32.gmra.mrb[0].mxu0 %v989
        %v1599 = vpop.f32.mrb[0].mxu0
        %v1600 = vadd.f32 %v1523, %v1599
        %v1601 = vpop.f32.mrb[0].mxu0
        %v1602 = vadd.f32 %v1525, %v1601
        %1603 = vmatprep.mubr.f32.mxu0 0.0
        %1604 = vmatmul.mubr.f32.gmra.mrb[0].mxu0 %v992
        %v1605 = vpop.f32.mrb[0].mxu0
        %v1606 = vadd.f32 %v1529, %v1605
        %v1607 = vpop.f32.mrb[0].mxu0
        %v1608 = vadd.f32 %v1531, %v1607
        %1609 = vdwg.mxu0
        %v1610 = vtanh.pop %v1292
        %v1611 = vtanh.pop %v1294
        %v1612 = vtanh.pop %v1600
        %v1613 = vtanh.pop %v1602
        %v1614 = vtanh.pop %v1298
        %v1615 = vtanh.pop %v1300
        %v1616 = vtanh.pop %v1606
        %v1617 = vtanh.pop %v1608
        %v1618 = vld [vmem:[#allocation8] sm:$0xff]
        %v1619 = vld [vmem:[#allocation8 + $0x8] sm:$0xff]
        %v1620 = vld [vmem:[#allocation8 + $0x10] sm:$0xff]
        %v1621 = vld [vmem:[#allocation8 + $0x18] sm:$0xff]
        %v1622 = vld [vmem:[#allocation8 + $0x20] sm:$0xff]
        %v1623 = vld [vmem:[#allocation8 + $0x28] sm:$0xff]
        %v1624 = vld [vmem:[#allocation8 + $0x30] sm:$0xff]
        %v1625 = vld [vmem:[#allocation8 + $0x38] sm:$0xff]
        %v1626 = vld [vmem:[#allocation8 + $0x40] sm:$0xff]
        %v1627 = vld [vmem:[#allocation8 + $0x48] sm:$0xff]
        %v1628 = vld [vmem:[#allocation8 + $0x50] sm:$0xff]
        %v1629 = vld [vmem:[#allocation8 + $0x58] sm:$0xff]
        %v1630 = vld [vmem:[#allocation8 + $0x60] sm:$0xff]
        %v1631 = vld [vmem:[#allocation8 + $0x68] sm:$0xff]
        %v1632 = vld [vmem:[#allocation8 + $0x70] sm:$0xff]
        %v1633 = vld [vmem:[#allocation8 + $0x78] sm:$0xff]
        %v1634 = vld [vmem:[#allocation8 + $0x80] sm:$0xff]
        %v1635 = vld [vmem:[#allocation8 + $0x88] sm:$0xff]
        %v1636 = vld [vmem:[#allocation8 + $0x90] sm:$0xff]
        %v1637 = vld [vmem:[#allocation8 + $0x98] sm:$0xff]
        %v1638 = vld [vmem:[#allocation8 + $0xa0] sm:$0xff]
        %v1639 = vld [vmem:[#allocation8 + $0xa8] sm:$0xff]
        %v1640 = vld [vmem:[#allocation8 + $0xb0] sm:$0xff]
        %v1641 = vld [vmem:[#allocation8 + $0xb8] sm:$0xff]
        %v1642 = vld [vmem:[#allocation8 + $0xc0] sm:$0xff]
        %v1643 = vld [vmem:[#allocation8 + $0xc8] sm:$0xff]
        %v1644 = vld [vmem:[#allocation8 + $0xd0] sm:$0xff]
        %v1645 = vld [vmem:[#allocation8 + $0xd8] sm:$0xff]
        %v1646 = vld [vmem:[#allocation8 + $0xe0] sm:$0xff]
        %v1647 = vld [vmem:[#allocation8 + $0xe8] sm:$0xff]
        %v1648 = vld [vmem:[#allocation8 + $0xf0] sm:$0xff]
        %v1649 = vld [vmem:[#allocation8 + $0xf8] sm:$0xff]
        %v1650 = vld [vmem:[#allocation8 + $0x100] sm:$0xff]
        %v1651 = vld [vmem:[#allocation8 + $0x108] sm:$0xff]
        %v1652 = vld [vmem:[#allocation8 + $0x110] sm:$0xff]
        %v1653 = vld [vmem:[#allocation8 + $0x118] sm:$0xff]
        %v1654 = vld [vmem:[#allocation8 + $0x120] sm:$0xff]
        %v1655 = vld [vmem:[#allocation8 + $0x128] sm:$0xff]
        %v1656 = vld [vmem:[#allocation8 + $0x130] sm:$0xff]
        %v1657 = vld [vmem:[#allocation8 + $0x138] sm:$0xff]
        %v1658 = vld [vmem:[#allocation8 + $0x140] sm:$0xff]
        %v1659 = vld [vmem:[#allocation8 + $0x148] sm:$0xff]
        %v1660 = vld [vmem:[#allocation8 + $0x150] sm:$0xff]
        %v1661 = vld [vmem:[#allocation8 + $0x158] sm:$0xff]
        %v1662 = vld [vmem:[#allocation8 + $0x160] sm:$0xff]
        %v1663 = vld [vmem:[#allocation8 + $0x168] sm:$0xff]
        %v1664 = vld [vmem:[#allocation8 + $0x170] sm:$0xff]
        %v1665 = vld [vmem:[#allocation8 + $0x178] sm:$0xff]
        %v1666 = vld [vmem:[#allocation8 + $0x180] sm:$0xff]
        %v1667 = vld [vmem:[#allocation8 + $0x188] sm:$0xff]
        %v1668 = vld [vmem:[#allocation8 + $0x190] sm:$0xff]
        %v1669 = vld [vmem:[#allocation8 + $0x198] sm:$0xff]
        %v1670 = vld [vmem:[#allocation8 + $0x1a0] sm:$0xff]
        %v1671 = vld [vmem:[#allocation8 + $0x1a8] sm:$0xff]
        %v1672 = vld [vmem:[#allocation8 + $0x1b0] sm:$0xff]
        %v1673 = vld [vmem:[#allocation8 + $0x1b8] sm:$0xff]
        %v1674 = vld [vmem:[#allocation8 + $0x1c0] sm:$0xff]
        %v1675 = vld [vmem:[#allocation8 + $0x1c8] sm:$0xff]
        %v1676 = vld [vmem:[#allocation8 + $0x1d0] sm:$0xff]
        %v1677 = vld [vmem:[#allocation8 + $0x1d8] sm:$0xff]
        %v1678 = vld [vmem:[#allocation8 + $0x1e0] sm:$0xff]
        %v1679 = vld [vmem:[#allocation8 + $0x1e8] sm:$0xff]
        %v1680 = vld [vmem:[#allocation8 + $0x1f0] sm:$0xff]
        %v1681 = vld [vmem:[#allocation8 + $0x1f8] sm:$0xff]
        %v1682 = vld [vmem:[#allocation8 + $0x200] sm:$0xff]
        %v1683 = vld [vmem:[#allocation8 + $0x208] sm:$0xff]
        %v1684 = vld [vmem:[#allocation8 + $0x210] sm:$0xff]
        %v1685 = vld [vmem:[#allocation8 + $0x218] sm:$0xff]
        %v1686 = vld [vmem:[#allocation8 + $0x220] sm:$0xff]
        %v1687 = vld [vmem:[#allocation8 + $0x228] sm:$0xff]
        %v1688 = vld [vmem:[#allocation8 + $0x230] sm:$0xff]
        %v1689 = vld [vmem:[#allocation8 + $0x238] sm:$0xff]
        %v1690 = vld [vmem:[#allocation8 + $0x240] sm:$0xff]
        %v1691 = vld [vmem:[#allocation8 + $0x248] sm:$0xff]
        %v1692 = vld [vmem:[#allocation8 + $0x250] sm:$0xff]
        %v1693 = vld [vmem:[#allocation8 + $0x258] sm:$0xff]
        %v1694 = vld [vmem:[#allocation8 + $0x260] sm:$0xff]
        %v1695 = vld [vmem:[#allocation8 + $0x268] sm:$0xff]
        %v1696 = vld [vmem:[#allocation8 + $0x270] sm:$0xff]
        %v1697 = vld [vmem:[#allocation8 + $0x278] sm:$0xff]
        %v1698 = vld [vmem:[#allocation8 + $0x280] sm:$0xff]
        %v1699 = vld [vmem:[#allocation8 + $0x288] sm:$0xff]
        %v1700 = vld [vmem:[#allocation8 + $0x290] sm:$0xff]
        %v1701 = vld [vmem:[#allocation8 + $0x298] sm:$0xff]
        %v1702 = vld [vmem:[#allocation8 + $0x2a0] sm:$0xff]
        %v1703 = vld [vmem:[#allocation8 + $0x2a8] sm:$0xff]
        %v1704 = vld [vmem:[#allocation8 + $0x2b0] sm:$0xff]
        %v1705 = vld [vmem:[#allocation8 + $0x2b8] sm:$0xff]
        %v1706 = vld [vmem:[#allocation8 + $0x2c0] sm:$0xff]
        %v1707 = vld [vmem:[#allocation8 + $0x2c8] sm:$0xff]
        %v1708 = vld [vmem:[#allocation8 + $0x2d0] sm:$0xff]
        %v1709 = vld [vmem:[#allocation8 + $0x2d8] sm:$0xff]
        %v1710 = vld [vmem:[#allocation8 + $0x2e0] sm:$0xff]
        %v1711 = vld [vmem:[#allocation8 + $0x2e8] sm:$0xff]
        %v1712 = vld [vmem:[#allocation8 + $0x2f0] sm:$0xff]
        %v1713 = vld [vmem:[#allocation8 + $0x2f8] sm:$0xff]
        %v1714 = vld [vmem:[#allocation8 + $0x300] sm:$0xff]
        %v1715 = vld [vmem:[#allocation8 + $0x308] sm:$0xff]
        %v1716 = vld [vmem:[#allocation8 + $0x310] sm:$0xff]
        %v1717 = vld [vmem:[#allocation8 + $0x318] sm:$0xff]
        %v1718 = vld [vmem:[#allocation8 + $0x320] sm:$0xff]
        %v1719 = vld [vmem:[#allocation8 + $0x328] sm:$0xff]
        %v1720 = vld [vmem:[#allocation8 + $0x330] sm:$0xff]
        %v1721 = vld [vmem:[#allocation8 + $0x338] sm:$0xff]
        %v1722 = vld [vmem:[#allocation8 + $0x340] sm:$0xff]
        %v1723 = vld [vmem:[#allocation8 + $0x348] sm:$0xff]
        %v1724 = vld [vmem:[#allocation8 + $0x350] sm:$0xff]
        %v1725 = vld [vmem:[#allocation8 + $0x358] sm:$0xff]
        %v1726 = vld [vmem:[#allocation8 + $0x360] sm:$0xff]
        %v1727 = vld [vmem:[#allocation8 + $0x368] sm:$0xff]
        %v1728 = vld [vmem:[#allocation8 + $0x370] sm:$0xff]
        %v1729 = vld [vmem:[#allocation8 + $0x378] sm:$0xff]
        %v1730 = vld [vmem:[#allocation8 + $0x380] sm:$0xff]
        %v1731 = vld [vmem:[#allocation8 + $0x388] sm:$0xff]
        %v1732 = vld [vmem:[#allocation8 + $0x390] sm:$0xff]
        %v1733 = vld [vmem:[#allocation8 + $0x398] sm:$0xff]
        %v1734 = vld [vmem:[#allocation8 + $0x3a0] sm:$0xff]
        %v1735 = vld [vmem:[#allocation8 + $0x3a8] sm:$0xff]
        %v1736 = vld [vmem:[#allocation8 + $0x3b0] sm:$0xff]
        %v1737 = vld [vmem:[#allocation8 + $0x3b8] sm:$0xff]
        %v1738 = vld [vmem:[#allocation8 + $0x3c0] sm:$0xff]
        %v1739 = vld [vmem:[#allocation8 + $0x3c8] sm:$0xff]
        %v1740 = vld [vmem:[#allocation8 + $0x3d0] sm:$0xff]
        %v1741 = vld [vmem:[#allocation8 + $0x3d8] sm:$0xff]
        %v1742 = vld [vmem:[#allocation8 + $0x3e0] sm:$0xf]
        %v1743 = vld [vmem:[#allocation8 + $0x3e8] sm:$0xf]
        %v1744 = vld [vmem:[#allocation10] sm:$0x3]
        %v1746 = vlaneseq
        %v1747 = vshrl.u32 %v1746, 7
        %v1748 = vsub.s32 0, %v1747
        %v1749 = vrot.slane %v1744, %v1748
        %v1750 = vlaneseq
        %v1751 = vshrl.u32 %v1750, 7
        %v1752 = vsub.s32 1, %v1751
        %v1753 = vrot.slane %v1744, %v1752
        %vm1756 = vcmask 949248
        %v1758 = vsel %vm1756, %v1613, 0
        %v1761 = vsel %vm1756, %v1617, 0
        %vm1763 = vcmask 1043456
        %v1765 = vsel %vm1763, %v1742, 0
        %v1768 = vsel %vm1763, %v1743, 0
        %1770 = vmatprep.subr.mxu0 %v1619
        %1771 = vmatpush1.msra.mxu0 %v1618
        %1772 = vmatprep.subr.mxu0 %v1621
        %1773 = vmatpush1.msra.mxu0 %v1620
        %1774 = vmatprep.subr.mxu0 %v1623
        %1775 = vmatpush1.msra.mxu0 %v1622
        %1776 = vmatprep.subr.mxu0 %v1625
        %1777 = vmatpush1.msra.mxu0 %v1624
        %1778 = vmatprep.subr.mxu0 %v1627
        %1779 = vmatpush1.msra.mxu0 %v1626
        %1780 = vmatprep.subr.mxu0 %v1629
        %1781 = vmatpush1.msra.mxu0 %v1628
        %1782 = vmatprep.subr.mxu0 %v1631
        %1783 = vmatpush1.msra.mxu0 %v1630
        %1784 = vmatprep.subr.mxu0 %v1633
        %1785 = vmatpush1.msra.mxu0 %v1632
        %1786 = vmatprep.subr.mxu0 %v1635
        %1787 = vmatpush1.msra.mxu0 %v1634
        %1788 = vmatprep.subr.mxu0 %v1637
        %1789 = vmatpush1.msra.mxu0 %v1636
        %1790 = vmatprep.subr.mxu0 %v1639
        %1791 = vmatpush1.msra.mxu0 %v1638
        %1792 = vmatprep.subr.mxu0 %v1641
        %1793 = vmatpush1.msra.mxu0 %v1640
        %1794 = vmatprep.subr.mxu0 %v1643
        %1795 = vmatpush1.msra.mxu0 %v1642
        %1796 = vmatprep.subr.mxu0 %v1645
        %1797 = vmatpush1.msra.mxu0 %v1644
        %1798 = vmatprep.subr.mxu0 %v1647
        %1799 = vmatpush1.msra.mxu0 %v1646
        %1800 = vmatprep.subr.mxu0 %v1649
        %1801 = vmatpush1.msra.mxu0 %v1648
        %1802 = vmatprep.subr.mxu0 %v1651
        %1803 = vmatpush1.msra.mxu0 %v1650
        %1804 = vmatprep.subr.mxu0 %v1653
        %1805 = vmatpush1.msra.mxu0 %v1652
        %1806 = vmatprep.subr.mxu0 %v1655
        %1807 = vmatpush1.msra.mxu0 %v1654
        %1808 = vmatprep.subr.mxu0 %v1657
        %1809 = vmatpush1.msra.mxu0 %v1656
        %1810 = vmatprep.subr.mxu0 %v1659
        %1811 = vmatpush1.msra.mxu0 %v1658
        %1812 = vmatprep.subr.mxu0 %v1661
        %1813 = vmatpush1.msra.mxu0 %v1660
        %1814 = vmatprep.subr.mxu0 %v1663
        %1815 = vmatpush1.msra.mxu0 %v1662
        %1816 = vmatprep.subr.mxu0 %v1665
        %1817 = vmatpush1.msra.mxu0 %v1664
        %1818 = vmatprep.subr.mxu0 %v1667
        %1819 = vmatpush1.msra.mxu0 %v1666
        %1820 = vmatprep.subr.mxu0 %v1669
        %1821 = vmatpush1.msra.mxu0 %v1668
        %1822 = vmatprep.subr.mxu0 %v1671
        %1823 = vmatpush1.msra.mxu0 %v1670
        %1824 = vmatprep.subr.mxu0 %v1673
        %1825 = vmatpush1.msra.mxu0 %v1672
        %1826 = vmatprep.subr.mxu0 %v1675
        %1827 = vmatpush1.msra.mxu0 %v1674
        %1828 = vmatprep.subr.mxu0 %v1677
        %1829 = vmatpush1.msra.mxu0 %v1676
        %1830 = vmatprep.subr.mxu0 %v1679
        %1831 = vmatpush1.msra.mxu0 %v1678
        %1832 = vmatprep.subr.mxu0 %v1681
        %1833 = vmatpush1.msra.mxu0 %v1680
        %1834 = vmatprep.mubr.f32.mxu0 %v1611
        %1835 = vmatmul.mubr.f32.gmra.mrb[0].mxu0 %v1610
        %v1836 = vpop.f32.mrb[0].mxu0
        %v1837 = vadd.f32 %v1749, %v1836
        %v1838 = vpop.f32.mrb[0].mxu0
        %v1839 = vadd.f32 %v1753, %v1838
        %1840 = vmatprep.mubr.f32.mxu0 %v1615
        %1841 = vmatmul.mubr.f32.gmra.mrb[0].mxu0 %v1614
        %v1842 = vpop.f32.mrb[0].mxu0
        %v1843 = vadd.f32 %v1749, %v1842
        %v1844 = vpop.f32.mrb[0].mxu0
        %v1845 = vadd.f32 %v1753, %v1844
        %1846 = vdwg.mxu0
        %1847 = vmatprep.subr.mxu0 %v1683
        %1848 = vmatpush1.msra.mxu0 %v1682
        %1849 = vmatprep.subr.mxu0 %v1685
        %1850 = vmatpush1.msra.mxu0 %v1684
        %1851 = vmatprep.subr.mxu0 %v1687
        %1852 = vmatpush1.msra.mxu0 %v1686
        %1853 = vmatprep.subr.mxu0 %v1689
        %1854 = vmatpush1.msra.mxu0 %v1688
        %1855 = vmatprep.subr.mxu0 %v1691
        %1856 = vmatpush1.msra.mxu0 %v1690
        %1857 = vmatprep.subr.mxu0 %v1693
        %1858 = vmatpush1.msra.mxu0 %v1692
        %1859 = vmatprep.subr.mxu0 %v1695
        %1860 = vmatpush1.msra.mxu0 %v1694
        %1861 = vmatprep.subr.mxu0 %v1697
        %1862 = vmatpush1.msra.mxu0 %v1696
        %1863 = vmatprep.subr.mxu0 %v1699
        %1864 = vmatpush1.msra.mxu0 %v1698
        %1865 = vmatprep.subr.mxu0 %v1701
        %1866 = vmatpush1.msra.mxu0 %v1700
        %1867 = vmatprep.subr.mxu0 %v1703
        %1868 = vmatpush1.msra.mxu0 %v1702
        %1869 = vmatprep.subr.mxu0 %v1705
        %1870 = vmatpush1.msra.mxu0 %v1704
        %1871 = vmatprep.subr.mxu0 %v1707
        %1872 = vmatpush1.msra.mxu0 %v1706
        %1873 = vmatprep.subr.mxu0 %v1709
        %1874 = vmatpush1.msra.mxu0 %v1708
        %1875 = vmatprep.subr.mxu0 %v1711
        %1876 = vmatpush1.msra.mxu0 %v1710
        %1877 = vmatprep.subr.mxu0 %v1713
        %1878 = vmatpush1.msra.mxu0 %v1712
        %1879 = vmatprep.subr.mxu0 %v1715
        %1880 = vmatpush1.msra.mxu0 %v1714
        %1881 = vmatprep.subr.mxu0 %v1717
        %1882 = vmatpush1.msra.mxu0 %v1716
        %1883 = vmatprep.subr.mxu0 %v1719
        %1884 = vmatpush1.msra.mxu0 %v1718
        %1885 = vmatprep.subr.mxu0 %v1721
        %1886 = vmatpush1.msra.mxu0 %v1720
        %1887 = vmatprep.subr.mxu0 %v1723
        %1888 = vmatpush1.msra.mxu0 %v1722
        %1889 = vmatprep.subr.mxu0 %v1725
        %1890 = vmatpush1.msra.mxu0 %v1724
        %1891 = vmatprep.subr.mxu0 %v1727
        %1892 = vmatpush1.msra.mxu0 %v1726
        %1893 = vmatprep.subr.mxu0 %v1729
        %1894 = vmatpush1.msra.mxu0 %v1728
        %1895 = vmatprep.subr.mxu0 %v1731
        %1896 = vmatpush1.msra.mxu0 %v1730
        %1897 = vmatprep.subr.mxu0 %v1733
        %1898 = vmatpush1.msra.mxu0 %v1732
        %1899 = vmatprep.subr.mxu0 %v1735
        %1900 = vmatpush1.msra.mxu0 %v1734
        %1901 = vmatprep.subr.mxu0 %v1737
        %1902 = vmatpush1.msra.mxu0 %v1736
        %1903 = vmatprep.subr.mxu0 %v1739
        %1904 = vmatpush1.msra.mxu0 %v1738
        %1905 = vmatprep.subr.mxu0 %v1741
        %1906 = vmatpush1.msra.mxu0 %v1740
        %1907 = vmatprep.subr.mxu0 %v1768
        %1908 = vmatpush1.msra.mxu0 %v1765
        %1909 = vmatprep.subr.mxu0 0.0
        %1910 = vmatpush1.msra.mxu0 0.0
        %1911 = vmatprep.mubr.f32.mxu0 %v1758
        %1912 = vmatmul.mubr.f32.gmra.mrb[0].mxu0 %v1612
        %v1913 = vpop.f32.mrb[0].mxu0
        %v1914 = vadd.f32 %v1837, %v1913
        %v1915 = vpop.f32.mrb[0].mxu0
        %v1916 = vadd.f32 %v1839, %v1915
        %1917 = vmatprep.mubr.f32.mxu0 %v1761
        %1918 = vmatmul.mubr.f32.gmra.mrb[0].mxu0 %v1616
        %v1919 = vpop.f32.mrb[0].mxu0
        %v1920 = vadd.f32 %v1843, %v1919
        %v1921 = vpop.f32.mrb[0].mxu0
        %v1922 = vadd.f32 %v1845, %v1921
        %1923 = vdwg.mxu0
        %v1924 = vtanh.pop %v1914
        %v1925 = vtanh.pop %v1916
        %v1926 = vtanh.pop %v1920
        %v1927 = vtanh.pop %v1922
        %v1928 = vld [vmem:[%s5] sm:$0xff]
        %v1929 = vld [vmem:[%s5 + $0x8] sm:$0xff]
        %v1930 = vld [vmem:[%s5 + $0x10] sm:$0xff]
        %v1931 = vld [vmem:[%s5 + $0x18] sm:$0xff]
        %v1932 = vld [vmem:[%s5 + $0x20] sm:$0xff]
        %v1933 = vld [vmem:[%s5 + $0x28] sm:$0xff]
        %v1934 = vld [vmem:[%s5 + $0x30] sm:$0xff]
        %v1935 = vld [vmem:[%s5 + $0x38] sm:$0xff]
        %v1936 = vld [vmem:[%s5 + $0x40] sm:$0xff]
        %v1937 = vld [vmem:[%s5 + $0x48] sm:$0xff]
        %v1938 = vld [vmem:[%s5 + $0x50] sm:$0xff]
        %v1939 = vld [vmem:[%s5 + $0x58] sm:$0xff]
        %v1940 = vld [vmem:[%s5 + $0x60] sm:$0xff]
        %v1941 = vld [vmem:[%s5 + $0x68] sm:$0xff]
        %v1942 = vld [vmem:[%s5 + $0x70] sm:$0xff]
        %v1943 = vld [vmem:[%s5 + $0x78] sm:$0xff]
        %v1944 = vld [vmem:[%s5 + $0x80] sm:$0xff]
        %v1945 = vld [vmem:[%s5 + $0x88] sm:$0xff]
        %v1946 = vld [vmem:[%s5 + $0x90] sm:$0xff]
        %v1947 = vld [vmem:[%s5 + $0x98] sm:$0xff]
        %v1948 = vld [vmem:[%s5 + $0xa0] sm:$0xff]
        %v1949 = vld [vmem:[%s5 + $0xa8] sm:$0xff]
        %v1950 = vld [vmem:[%s5 + $0xb0] sm:$0xff]
        %v1951 = vld [vmem:[%s5 + $0xb8] sm:$0xff]
        %v1952 = vld [vmem:[%s5 + $0xc0] sm:$0xff]
        %v1953 = vld [vmem:[%s5 + $0xc8] sm:$0xff]
        %v1954 = vld [vmem:[%s5 + $0xd0] sm:$0xff]
        %v1955 = vld [vmem:[%s5 + $0xd8] sm:$0xff]
        %v1956 = vld [vmem:[%s5 + $0xe0] sm:$0xff]
        %v1957 = vld [vmem:[%s5 + $0xe8] sm:$0xff]
        %v1958 = vld [vmem:[%s5 + $0xf0] sm:$0xff]
        %v1959 = vld [vmem:[%s5 + $0xf8] sm:$0xff]
        %v1960 = vld [vmem:[#allocation11] sm:$0x1]
        %v1962 = vlaneseq
        %v1963 = vshrl.u32 %v1962, 7
        %v1964 = vsub.s32 0, %v1963
        %v1965 = vrot.slane %v1960, %v1964
        %1967 = vmatprep.subr.mxu0 0.0
        %1968 = vmatpush1.msra.mxu0 %v1928
        %1969 = vmatprep.subr.mxu0 0.0
        %1970 = vmatpush1.msra.mxu0 %v1929
        %1971 = vmatprep.subr.mxu0 0.0
        %1972 = vmatpush1.msra.mxu0 %v1930
        %1973 = vmatprep.subr.mxu0 0.0
        %1974 = vmatpush1.msra.mxu0 %v1931
        %1975 = vmatprep.subr.mxu0 0.0
        %1976 = vmatpush1.msra.mxu0 %v1932
        %1977 = vmatprep.subr.mxu0 0.0
        %1978 = vmatpush1.msra.mxu0 %v1933
        %1979 = vmatprep.subr.mxu0 0.0
        %1980 = vmatpush1.msra.mxu0 %v1934
        %1981 = vmatprep.subr.mxu0 0.0
        %1982 = vmatpush1.msra.mxu0 %v1935
        %1983 = vmatprep.subr.mxu0 0.0
        %1984 = vmatpush1.msra.mxu0 %v1936
        %1985 = vmatprep.subr.mxu0 0.0
        %1986 = vmatpush1.msra.mxu0 %v1937
        %1987 = vmatprep.subr.mxu0 0.0
        %1988 = vmatpush1.msra.mxu0 %v1938
        %1989 = vmatprep.subr.mxu0 0.0
        %1990 = vmatpush1.msra.mxu0 %v1939
        %1991 = vmatprep.subr.mxu0 0.0
        %1992 = vmatpush1.msra.mxu0 %v1940
        %1993 = vmatprep.subr.mxu0 0.0
        %1994 = vmatpush1.msra.mxu0 %v1941
        %1995 = vmatprep.subr.mxu0 0.0
        %1996 = vmatpush1.msra.mxu0 %v1942
        %1997 = vmatprep.subr.mxu0 0.0
        %1998 = vmatpush1.msra.mxu0 %v1943
        %1999 = vmatprep.subr.mxu0 0.0
        %2000 = vmatpush1.msra.mxu0 %v1944
        %2001 = vmatprep.subr.mxu0 0.0
        %2002 = vmatpush1.msra.mxu0 %v1945
        %2003 = vmatprep.subr.mxu0 0.0
        %2004 = vmatpush1.msra.mxu0 %v1946
        %2005 = vmatprep.subr.mxu0 0.0
        %2006 = vmatpush1.msra.mxu0 %v1947
        %2007 = vmatprep.subr.mxu0 0.0
        %2008 = vmatpush1.msra.mxu0 %v1948
        %2009 = vmatprep.subr.mxu0 0.0
        %2010 = vmatpush1.msra.mxu0 %v1949
        %2011 = vmatprep.subr.mxu0 0.0
        %2012 = vmatpush1.msra.mxu0 %v1950
        %2013 = vmatprep.subr.mxu0 0.0
        %2014 = vmatpush1.msra.mxu0 %v1951
        %2015 = vmatprep.subr.mxu0 0.0
        %2016 = vmatpush1.msra.mxu0 %v1952
        %2017 = vmatprep.subr.mxu0 0.0
        %2018 = vmatpush1.msra.mxu0 %v1953
        %2019 = vmatprep.subr.mxu0 0.0
        %2020 = vmatpush1.msra.mxu0 %v1954
        %2021 = vmatprep.subr.mxu0 0.0
        %2022 = vmatpush1.msra.mxu0 %v1955
        %2023 = vmatprep.subr.mxu0 0.0
        %2024 = vmatpush1.msra.mxu0 %v1956
        %2025 = vmatprep.subr.mxu0 0.0
        %2026 = vmatpush1.msra.mxu0 %v1957
        %2027 = vmatprep.subr.mxu0 0.0
        %2028 = vmatpush1.msra.mxu0 %v1958
        %2029 = vmatprep.subr.mxu0 0.0
        %2030 = vmatpush1.msra.mxu0 %v1959
        %2031 = vmatprep.mubr.f32.mxu0 %v1925
        %2032 = vmatmul.mubr.f32.gmra.mrb[0].mxu0 %v1924
        %v2033 = vpop.f32.mrb[0].mxu0
        %v2034 = vadd.f32 %v1965, %v2033
        %v2035 = vpop.f32.mrb[0].mxu0
        %2036 = vmatprep.mubr.f32.mxu0 %v1927
        %2037 = vmatmul.mubr.f32.gmra.mrb[0].mxu0 %v1926
        %v2038 = vpop.f32.mrb[0].mxu0
        %v2039 = vadd.f32 %v1965, %v2038
        %v2040 = vpop.f32.mrb[0].mxu0
        %2041 = vdwg.mxu0
        %vm2042 = vcmask 80896
        %v2043 = vsel %vm2042, %v2034, -inf
        %2044 = vmax.xlane.f32.xlu0 %v2043
        %v2045 = vpop.xlane.xlu0 %2044
        %v2046 = vsel %vm2042, %v2039, -inf
        %2047 = vmax.xlane.f32.xlu0 %v2046
        %v2048 = vpop.xlane.xlu0 %2047
        %v2049 = vsub.f32 %v2034, %v2045
        %v2050 = vsub.f32 %v2039, %v2048
        %v2051 = vmul.f32 %v2049, 1.442695
        %v2052 = vpow.pop %v2051
        %v2053 = vmul.f32 %v2050, 1.442695
        %v2054 = vpow.pop %v2053
        %v2055 = vsel %vm2042, %v2052, 0.0
        %2056 = vadd.xlane.f32.xlu0 %v2055
        %v2057 = vpop.xlane.xlu0 %2056
        %v2058 = vsel %vm2042, %v2054, 0.0
        %2059 = vadd.xlane.f32.xlu0 %v2058
        %v2060 = vpop.xlane.xlu0 %2059
        %v2061 = vrcp.pop %v2057
        %v2062 = vrcp.pop %v2060
        %v2063 = vmul.f32 %v2057, %v2061
        %v2064 = vmul.f32 %v2060, %v2062
        %v2065 = vsub.f32 2.0, %v2063
        %v2066 = vsub.f32 2.0, %v2064
        %v2067 = vmul.f32 %v2061, %v2065
        %v2068 = vmul.f32 %v2062, %v2066
        %v2069 = vmul.f32 %v2052, %v2067
        %v2070 = vmul.f32 %v2054, %v2068
        %2071 = vst [vmem:[%s506] sm:$0xff] %v1292
        %2072 = vst [vmem:[%s506 + $0x8] sm:$0xff] %v1294
        %2073 = vst [vmem:[%s506 + $0x10] sm:$0xff] %v1600
        %2074 = vst.msk [vmem:[%s506 + $0x18] sm:$0xff] %vm1756, %v1602
        %2075 = vst [vmem:[%s506 + $0x20] sm:$0xff] %v1298
        %2076 = vst [vmem:[%s506 + $0x28] sm:$0xff] %v1300
        %2077 = vst [vmem:[%s506 + $0x30] sm:$0xff] %v1606
        %2078 = vst.msk [vmem:[%s506 + $0x38] sm:$0xff] %vm1756, %v1608
        %2079 = vst [vmem:[%s513] sm:$0xff] %v1610
        %2080 = vst [vmem:[%s513 + $0x8] sm:$0xff] %v1611
        %2081 = vst [vmem:[%s513 + $0x10] sm:$0xff] %v1612
        %2082 = vst.msk [vmem:[%s513 + $0x18] sm:$0xff] %vm1756, %v1613
        %2083 = vst [vmem:[%s513 + $0x20] sm:$0xff] %v1614
        %2084 = vst [vmem:[%s513 + $0x28] sm:$0xff] %v1615
        %2085 = vst [vmem:[%s513 + $0x30] sm:$0xff] %v1616
        %2086 = vst.msk [vmem:[%s513 + $0x38] sm:$0xff] %vm1756, %v1617
        %2087 = vst [vmem:[%s520] sm:$0xff] %v1914
        %2088 = vst [vmem:[%s520 + $0x8] sm:$0xff] %v1916
        %2089 = vst [vmem:[%s520 + $0x10] sm:$0xff] %v1920
        %2090 = vst [vmem:[%s520 + $0x18] sm:$0xff] %v1922
        %2091 = vst [vmem:[%s527] sm:$0xff] %v1924
        %2092 = vst [vmem:[%s527 + $0x8] sm:$0xff] %v1925
        %2093 = vst [vmem:[%s527 + $0x10] sm:$0xff] %v1926
        %2094 = vst [vmem:[%s527 + $0x18] sm:$0xff] %v1927
        %2095 = vst.msk [vmem:[%s551] sm:$0xff] %vm2042, %v2034
        %2096 = vst.msk [vmem:[%s551 + $0x8] sm:$0xff] %vm2042, %v2039
        %2097 = vst.msk [vmem:[%s557] sm:$0xff] %vm2042, %v2069
        %2098 = vst.msk [vmem:[%s557 + $0x8] sm:$0xff] %vm2042, %v2070
        %s2099 = sand.u32 %s199, 1
        %s2100 = scalar_lea.sflag [#allocation4], %s2099
        %s2101 = sand.u32 %s199, 1
        %s2102 = smul.addr %s2101, 64
        %s2103 = scalar_lea.vmem [#allocation13], %s2102
        %s2104 = sand.u32 %s39, 1
        %s2105 = scalar_lea.sflag [#allocation15], %s2104
        %s2106 = sand.u32 %s225, 1
        %s2107 = smul.addr %s2106, 64
        %s2108 = scalar_lea.vmem [#allocation14], %s2107
        %s2109 = sand.u32 %s39, 1
        %s2110 = scalar_lea.sflag [#allocation15], %s2109
        %s2111 = sand.u32 %s251, 1
        %s2112 = smul.addr %s2111, 32
        %s2113 = scalar_lea.vmem [#allocation16], %s2112
        %s2114 = sand.u32 %s277, 1
        %s2115 = scalar_lea.sflag [#allocation18], %s2114
        %s2116 = sand.u32 %s277, 1
        %s2117 = smul.addr %s2116, 32
        %s2118 = scalar_lea.vmem [#allocation17], %s2117
        %s2119 = smul.u32 2, %s39
        %p2120 = scmp.lt.s32.totalorder %s2119, 3
        %s2121 = scalar_select %p2120, %s2119, 3
        %s2122 = smul.addr %s2121, 8
        %s2123 = scalar_lea.vmem %s11, %s2122
        %s2124 = smul.u32 2, %s39
        %p2125 = scmp.lt.s32.totalorder %s2124, 3
        %s2126 = scalar_select %p2125, %s2124, 3
        %s2127 = smul.addr %s2126, 8
        %s2128 = scalar_lea.vmem %s12, %s2127
        // Predicated region
        $region73: #{tpu_custom_call.1} parent=47 // pred_check
          %p2129 = pneg %p209
        $region74: #{tpu_custom_call.1} parent=47 // pred_check_branch
          %2131 = sbr.rel (%p2129) target = $region76
        $region75: #{tpu_custom_call.1} parent=47 // pred_region
          %s2132 = smul.u32 2, %s39
          %s2134 = ssub.s32 1024, 1024
          %2135 = vsyncadd %s2100, %s2134
          %s2136 = smul.addr %s2132, 4
          %s2137 = smul.addr %s2136, 128
          %s2138 = scalar_lea.hbm %s7, %s2137
          %s2139 = sshll.u32 %s2103, 4
          %s2140 = int_to_ptr.vmem [resolvable:$true] %s2139
          %2145 = dma.vmem_to_hbm [thread:$0]  %s2140, 1024, %s2138, %s2100, 512, 512, 32
        $region76: #{tpu_custom_call.1} parent=47 // pred_fallthru
          _
        // Predicated region
        $region77: #{tpu_custom_call.1} parent=47 // pred_check
          %p2146 = pneg %p235
        $region78: #{tpu_custom_call.1} parent=47 // pred_check_branch
          %2148 = sbr.rel (%p2146) target = $region80
        $region79: #{tpu_custom_call.1} parent=47 // pred_region
          %s2149 = smul.u32 2, %s39
          %s2151 = ssub.s32 1024, 1024
          %2152 = vsyncadd %s2105, %s2151
          %s2153 = smul.addr %s2149, 4
          %s2154 = smul.addr %s2153, 128
          %s2155 = scalar_lea.hbm %s8, %s2154
          %s2156 = sshll.u32 %s2108, 4
          %s2157 = int_to_ptr.vmem [resolvable:$true] %s2156
          %2162 = dma.vmem_to_hbm [thread:$0]  %s2157, 1024, %s2155, %s2105, 512, 512, 32
        $region80: #{tpu_custom_call.1} parent=47 // pred_fallthru
          _
        // Predicated region
        $region81: #{tpu_custom_call.1} parent=47 // pred_check
          %p2163 = pneg %p261
        $region82: #{tpu_custom_call.1} parent=47 // pred_check_branch
          %2165 = sbr.rel (%p2163) target = $region84
        $region83: #{tpu_custom_call.1} parent=47 // pred_region
          %s2166 = smul.u32 2, %s39
          %s2168 = ssub.s32 512, 512
          %2169 = vsyncadd %s2110, %s2168
          %s2170 = smul.addr %s2166, 2
          %s2171 = smul.addr %s2170, 128
          %s2172 = scalar_lea.hbm %s9, %s2171
          %s2173 = sshll.u32 %s2113, 4
          %s2174 = int_to_ptr.vmem [resolvable:$true] %s2173
          %2179 = dma.vmem_to_hbm [thread:$0]  %s2174, 512, %s2172, %s2110, 256, 256, 16
        $region84: #{tpu_custom_call.1} parent=47 // pred_fallthru
          _
        // Predicated region
        $region85: #{tpu_custom_call.1} parent=47 // pred_check
          %p2180 = pneg %p287
        $region86: #{tpu_custom_call.1} parent=47 // pred_check_branch
          %2182 = sbr.rel (%p2180) target = $region88
        $region87: #{tpu_custom_call.1} parent=47 // pred_region
          %s2183 = smul.u32 2, %s39
          %s2185 = ssub.s32 512, 512
          %2186 = vsyncadd %s2115, %s2185
          %s2187 = smul.addr %s2183, 2
          %s2188 = smul.addr %s2187, 128
          %s2189 = scalar_lea.hbm %s10, %s2188
          %s2190 = sshll.u32 %s2118, 4
          %s2191 = int_to_ptr.vmem [resolvable:$true] %s2190
          %2196 = dma.vmem_to_hbm [thread:$0]  %s2191, 512, %s2189, %s2115, 256, 256, 16
        $region88: #{tpu_custom_call.1} parent=47 // pred_fallthru
          _
        // Predicated region
        $region89: #{tpu_custom_call.1} parent=47 // pred_check
          %p2197 = pneg %p313
        $region90: #{tpu_custom_call.1} parent=47 // pred_check_branch
          %2199 = sbr.rel (%p2197) target = $region92
        $region91: #{tpu_custom_call.1} parent=47 // pred_region
          %s2200 = smul.u32 2, %s39
        $region92: #{tpu_custom_call.1} parent=47 // pred_fallthru
          _
        // Predicated region
        $region93: #{tpu_custom_call.1} parent=47 // pred_check
          %p2201 = pneg %p339
        $region94: #{tpu_custom_call.1} parent=47 // pred_check_branch
          %2203 = sbr.rel (%p2201) target = $region96
        $region95: #{tpu_custom_call.1} parent=47 // pred_region
          %s2204 = smul.u32 2, %s39
        $region96: #{tpu_custom_call.1} parent=47 // pred_fallthru
          _
      $region48: #{tpu_custom_call.1} parent=5 // pred_fallthru
        _
      %p2205 = scmp.le.s32.totalorder 2, %s34
      // Predicated region
      $region97: #{tpu_custom_call.1} parent=5 // pred_check
        %p2206 = pneg %p2205
      $region98: #{tpu_custom_call.1} parent=5 // pred_check_branch
        %2208 = sbr.rel (%p2206) target = $region100
      $region99: #{tpu_custom_call.1} parent=5 // pred_region
        %s2209 = ssub.s32 %s34, 2
        // Predicated region
        $region101: #{tpu_custom_call.1} parent=99 // pred_check
          %p2210 = pneg %p215
        $region102: #{tpu_custom_call.1} parent=99 // pred_check_branch
          %2212 = sbr.rel (%p2210) target = $region104
        $region103: #{tpu_custom_call.1} parent=99 // pred_region
          %s2213 = sand.u32 %s200, 1
          %s2214 = scalar_lea.sflag [#allocation4], %s2213
          %s2215 = sand.u32 %s200, 1
          %s2216 = smul.addr %s2215, 64
          %s2217 = scalar_lea.vmem [#allocation13], %s2216
          %2218 = dma.done %s2214, 1024
        $region104: #{tpu_custom_call.1} parent=99 // pred_fallthru
          _
        // Predicated region
        $region105: #{tpu_custom_call.1} parent=99 // pred_check
          %p2219 = pneg %p241
        $region106: #{tpu_custom_call.1} parent=99 // pred_check_branch
          %2221 = sbr.rel (%p2219) target = $region108
        $region107: #{tpu_custom_call.1} parent=99 // pred_region
          %s2222 = sand.u32 %s40, 1
          %s2223 = scalar_lea.sflag [#allocation15], %s2222
          %s2224 = sand.u32 %s226, 1
          %s2225 = smul.addr %s2224, 64
          %s2226 = scalar_lea.vmem [#allocation14], %s2225
          %2227 = dma.done %s2223, 1024
        $region108: #{tpu_custom_call.1} parent=99 // pred_fallthru
          _
        // Predicated region
        $region109: #{tpu_custom_call.1} parent=99 // pred_check
          %p2228 = pneg %p267
        $region110: #{tpu_custom_call.1} parent=99 // pred_check_branch
          %2230 = sbr.rel (%p2228) target = $region112
        $region111: #{tpu_custom_call.1} parent=99 // pred_region
          %s2231 = sand.u32 %s40, 1
          %s2232 = scalar_lea.sflag [#allocation15], %s2231
          %s2233 = sand.u32 %s252, 1
          %s2234 = smul.addr %s2233, 32
          %s2235 = scalar_lea.vmem [#allocation16], %s2234
          %2236 = dma.done %s2232, 512
        $region112: #{tpu_custom_call.1} parent=99 // pred_fallthru
          _
        // Predicated region
        $region113: #{tpu_custom_call.1} parent=99 // pred_check
          %p2237 = pneg %p293
        $region114: #{tpu_custom_call.1} parent=99 // pred_check_branch
          %2239 = sbr.rel (%p2237) target = $region116
        $region115: #{tpu_custom_call.1} parent=99 // pred_region
          %s2240 = sand.u32 %s278, 1
          %s2241 = scalar_lea.sflag [#allocation18], %s2240
          %s2242 = sand.u32 %s278, 1
          %s2243 = smul.addr %s2242, 32
          %s2244 = scalar_lea.vmem [#allocation17], %s2243
          %2245 = dma.done %s2241, 512
        $region116: #{tpu_custom_call.1} parent=99 // pred_fallthru
          _
        // Predicated region
        $region117: #{tpu_custom_call.1} parent=99 // pred_check
          %p2246 = pneg %p319
        $region118: #{tpu_custom_call.1} parent=99 // pred_check_branch
          %2248 = sbr.rel (%p2246) target = $region120
        $region119: #{tpu_custom_call.1} parent=99 // pred_region
          %s2249 = smul.u32 2, %s40
          %p2250 = scmp.lt.s32.totalorder %s2249, 3
          %s2251 = scalar_select %p2250, %s2249, 3
          %s2252 = smul.addr %s2251, 8
          %s2253 = scalar_lea.vmem %s11, %s2252
        $region120: #{tpu_custom_call.1} parent=99 // pred_fallthru
          _
        // Predicated region
        $region121: #{tpu_custom_call.1} parent=99 // pred_check
          %p2254 = pneg %p345
        $region122: #{tpu_custom_call.1} parent=99 // pred_check_branch
          %2256 = sbr.rel (%p2254) target = $region124
        $region123: #{tpu_custom_call.1} parent=99 // pred_region
          %s2257 = smul.u32 2, %s40
          %p2258 = scmp.lt.s32.totalorder %s2257, 3
          %s2259 = scalar_select %p2258, %s2257, 3
          %s2260 = smul.addr %s2259, 8
          %s2261 = scalar_lea.vmem %s12, %s2260
        $region124: #{tpu_custom_call.1} parent=99 // pred_fallthru
          _
      $region100: #{tpu_custom_call.1} parent=5 // pred_fallthru
        _
    $region6: #{tpu_custom_call.1} parent=1 // loop_footer
      %s38 = sadd.s32 1, %s34
    $region7: #{tpu_custom_call.1} parent=1 // loop_footer_branch
      %33 = sbr.rel target = $region3
    $region8: #{tpu_custom_call.1} parent=1 // loop_exit
      _
    %2262 = vsyncpa [#allocation3], 1
    %s2263 = scalar_lea.sflag [#allocation3], 1
    %2264 = vsyncpa %s2263, 1
    %2265 = vsyncpa [#allocation6], 1
    %2266 = vsyncpa [#allocation9], 1
    %2267 = vsyncpa [#allocation12], 1
    %2268 = vsyncpa [#allocation4], 1
    %s2269 = scalar_lea.sflag [#allocation4], 1
    %2270 = vsyncpa %s2269, 1
    %2271 = vsyncpa [#allocation15], 1
    %s2272 = scalar_lea.sflag [#allocation15], 1
    %2273 = vsyncpa %s2272, 1
    %2274 = vsyncpa [#allocation18], 1
    %s2275 = scalar_lea.sflag [#allocation18], 1
    %2276 = vsyncpa %s2275, 1

</llo_original>
